<compile_context>
chip_gen: v7x
topology: tpu7x:2x2x1
jax: 0.10.0
libtpu: 0.0.40
codegen_flags: <defaults>
</compile_context>

<pallas_src>
import jax
import jax.numpy as jnp
from jax.experimental import pallas as pl
from jax.experimental.pallas import tpu as pltpu


def _round_up(n, m):
    return ((n + m - 1) // m) * m


# ----------------------------------------------------------------------------
# Kernel factory: one fused MLP forward over a (TM, dims[0]) row tile.
# ----------------------------------------------------------------------------
def make_mlp_kernel(n_layers, has_bias, apply_act, activation, matmul_dtype):
    def kernel(x_ref, *refs):
        out_ref = refs[-1]
        param_refs = refs[:-1]

        # Row tile loaded once; each weight / bias is read exactly once
        # (no per-iteration re-loads / re-broadcasts).
        x = x_ref[...]

        idx = 0
        for l in range(n_layers):
            w = param_refs[idx][...]            # (in_l, out_l), matmul_dtype
            idx += 1
            y = jnp.dot(
                x.astype(matmul_dtype), w,
                preferred_element_type=jnp.float32,
            )                                   # (TM, out_l), f32 accumulation
            if has_bias[l]:
                b = param_refs[idx][...]        # (1, out_l), f32
                idx += 1
                y = y + b                       # broadcast over rows
            if apply_act[l]:
                y = activation(y)               # full-width EUP/VPU work, f32
            x = y

        out_ref[...] = x.astype(out_ref.dtype)

    return kernel


# ----------------------------------------------------------------------------
# One-time parameter prep (do this at init, NOT per forward call):
#   weights (out,in) -> (in,out) cast to the MXU operand dtype,
#   biases  (out,)   -> (1,out) kept in f32 (added after f32 accumulation).
# ----------------------------------------------------------------------------
def prepare_mlp_params(params, matmul_dtype=jnp.bfloat16):
    prepped = []
    for (w, b) in params:
        wt = jnp.asarray(w).T.astype(matmul_dtype)
        bb = None if b is None else jnp.asarray(b).reshape(1, -1).astype(jnp.float32)
        prepped.append((wt, bb))
    return prepped


def _choose_row_tile(N, tile_m):
    tm = min(tile_m, _round_up(max(N, 8), 8))
    # Prefer >= 2 tiles so both v7x TensorCores get work (free on v5e/v6e).
    if pl.cdiv(N, tm) == 1 and tm >= 256:
        tm //= 2
    return tm


# ----------------------------------------------------------------------------
# Wrapper: builds BlockSpecs / grid and calls pallas_call.
# `prepped_params` comes from prepare_mlp_params (weights (in,out), bias (1,out)).
# ----------------------------------------------------------------------------
def mlp_pallas(x, prepped_params, *, activation, activate_last=False,
               tile_m=256, single_buffer_params=True):
    N, d_in = x.shape
    n_layers = len(prepped_params)
    dims = [d_in] + [w.shape[1] for (w, _) in prepped_params]
    matmul_dtype = prepped_params[0][0].dtype

    has_bias = tuple(b is not None for (_, b) in prepped_params)
    apply_act = tuple(
        (activation is not None) and ((l < n_layers - 1) or activate_last)
        for l in range(n_layers)
    )

    tm = _choose_row_tile(N, tile_m)
    grid = (pl.cdiv(N, tm),)     # ragged last block: Pallas masks the writes

    flat_params = []
    for (w, b) in prepped_params:
        flat_params.append(w)
        if b is not None:
            flat_params.append(b)

    x_spec = pl.BlockSpec((tm, dims[0]), lambda i: (i, 0))
    out_spec = pl.BlockSpec((tm, dims[-1]), lambda i: (i, 0))

    kernel = make_mlp_kernel(n_layers, has_bias, apply_act, activation,
                             matmul_dtype)

    # Advisory cost estimate for XLA's scheduler.
    flops = 2 * N * sum(di * do for di, do in zip(dims[:-1], dims[1:]))
    transcendentals = N * sum(do for do, a in zip(dims[1:], apply_act) if a)
    param_bytes = sum(int(p.size) * p.dtype.itemsize for p in flat_params)
    bytes_accessed = (x.size * x.dtype.itemsize
                      + N * dims[-1] * x.dtype.itemsize
                      + param_bytes)
    cost = pl.CostEstimate(flops=int(flops), transcendentals=int(transcendentals),
                           bytes_accessed=int(bytes_accessed))

    # VMEM footprint: resident params (+ streaming x/out tiles double-buffered
    # + f32 intermediates).  Only raise the scoped limit when the 32 MiB
    # default would not fit (cap at v7x's 64 MiB physical).
    stream_bytes = 2 * tm * (dims[0] + dims[-1]) * x.dtype.itemsize
    inter_bytes = 2 * tm * max(dims) * 4
    vmem_needed = (param_bytes * (1 if single_buffer_params else 2)
                   + stream_bytes + inter_bytes)
    vmem_limit = (min(int(vmem_needed * 1.25), 64 << 20)
                  if vmem_needed > (32 << 20) else None)

    def build(single_buffer):
        param_specs = []
        for p in flat_params:
            kwargs = {"pipeline_mode": pl.Buffered(1)} if single_buffer else {}
            # Constant index_map -> parameter resident in VMEM, fetched once.
            param_specs.append(pl.BlockSpec(p.shape, lambda i: (0, 0), **kwargs))
        return pl.pallas_call(
            kernel,
            out_shape=jax.ShapeDtypeStruct((N, dims[-1]), x.dtype),
            grid_spec=pltpu.PrefetchScalarGridSpec(
                num_scalar_prefetch=0,
                grid=grid,
                in_specs=[x_spec] + param_specs,
                out_specs=out_spec,
            ),
            compiler_params=pltpu.CompilerParams(
                dimension_semantics=("parallel",),
                vmem_limit_bytes=vmem_limit,
            ),
            cost_estimate=cost,
        )

    if single_buffer_params:
        try:
            return build(True)(x, *flat_params)
        except Exception:
            # Fallback for jax versions that reject pipeline_mode=Buffered(1).
            pass
    return build(False)(x, *flat_params)


# ----------------------------------------------------------------------------
# Deterministic parameter init (mimics torch.nn.Linear: uniform(-k, k) with
# k = 1/sqrt(fan_in) for both weight and bias).  Weights stored torch-style
# (out, in); prepare_mlp_params converts them once.
# ----------------------------------------------------------------------------
def init_mlp_params(key, dims, bias_last=True):
    params = []
    n_layers = len(dims) - 1
    keys = jax.random.split(key, 2 * n_layers)
    for l, (in_dim, out_dim) in enumerate(zip(dims[:-1], dims[1:])):
        bound = 1.0 / float(in_dim) ** 0.5
        kw, kb = keys[2 * l], keys[2 * l + 1]
        w = jax.random.uniform(kw, (out_dim, in_dim), jnp.float32, -bound, bound)
        use_bias = True if l < n_layers - 1 else bias_last
        b = (jax.random.uniform(kb, (out_dim,), jnp.float32, -bound, bound)
             if use_bias else None)
        params.append((w, b))
    return params


# ----------------------------------------------------------------------------
# Pure-JAX reference (mirrors the PyTorch module) for correctness checks.
# ----------------------------------------------------------------------------
def reference_mlp(x, params, *, activation, activate_last=False):
    n_layers = len(params)
    for l, (w, b) in enumerate(params):
        x = x @ w.T
        if b is not None:
            x = x + b
        if activation is not None and (l < n_layers - 1 or activate_last):
            x = activation(x)
    return x


if __name__ == "__main__":
    key = jax.random.PRNGKey(0)

    # MLP(64 -> 128 -> 128 -> 128), SiLU between layers, activate_last=False,
    # bias_last=True.  512 rows -> two 256-row tiles (both v7x TCs get work).
    dims = [64, 128, 128, 128]
    N = 512
    activation = jax.nn.silu          # "swish", a standard matgl MLP activation
    activate_last = False
    bias_last = True

    k_x, k_p = jax.random.split(key)
    x = jax.random.normal(k_x, (N, dims[0]), jnp.float32)
    params = init_mlp_params(k_p, dims, bias_last=bias_last)
    ref = reference_mlp(x, params, activation=activation,
                        activate_last=activate_last)

    # (a) Correctness path: f32 MXU operands, tight tolerance.
    p_f32 = prepare_mlp_params(params, matmul_dtype=jnp.float32)
    out_f32 = mlp_pallas(x, p_f32, activation=activation,
                         activate_last=activate_last)
    jax.block_until_ready(out_f32)
    assert out_f32.shape == (N, dims[-1])
    assert jnp.allclose(out_f32, ref, rtol=1e-4, atol=1e-4), (
        float(jnp.max(jnp.abs(out_f32 - ref))))

    # (b) Performance path: bf16 MXU operands, f32 accumulation (~3x MXU
    # throughput); tolerance loosened accordingly.
    p_bf16 = prepare_mlp_params(params, matmul_dtype=jnp.bfloat16)
    out_bf16 = mlp_pallas(x, p_bf16, activation=activation,
                          activate_last=activate_last)
    jax.block_until_ready(out_bf16)
    assert jnp.allclose(out_bf16, ref, rtol=3e-2, atol=3e-2), (
        float(jnp.max(jnp.abs(out_bf16 - ref))))

    # (c) Ragged batch (no jnp.pad anywhere): last row tile is masked by
    # Pallas.  Also exercises bias_last=False and activate_last=True.
    N2 = 300
    x2 = jax.random.normal(jax.random.PRNGKey(1), (N2, dims[0]), jnp.float32)
    params2 = init_mlp_params(jax.random.PRNGKey(2), dims, bias_last=False)
    ref2 = reference_mlp(x2, params2, activation=activation, activate_last=True)
    out2 = mlp_pallas(x2, prepare_mlp_params(params2, jnp.float32),
                      activation=activation, activate_last=True)
    jax.block_until_ready(out2)
    assert out2.shape == (N2, dims[-1])
    assert jnp.allclose(out2, ref2, rtol=1e-4, atol=1e-4), (
        float(jnp.max(jnp.abs(out2 - ref2))))

    print("KERNEL_OK")
</pallas_src>

<mosaic_0001>
module attributes {stable_mosaic.version = 11 : i64} {
  func.func @kernel(%arg0: i32, %arg1: memref<256x64xf32, #tpu.memory_space<vmem>>, %arg2: memref<64x128xf32, #tpu.memory_space<vmem>>, %arg3: memref<1x128xf32, #tpu.memory_space<vmem>>, %arg4: memref<128x128xf32, #tpu.memory_space<vmem>>, %arg5: memref<1x128xf32, #tpu.memory_space<vmem>>, %arg6: memref<128x128xf32, #tpu.memory_space<vmem>>, %arg7: memref<1x128xf32, #tpu.memory_space<vmem>>, %arg8: memref<256x128xf32, #tpu.memory_space<vmem>>) attributes {dimension_semantics = [#tpu.dimension_semantics<parallel>], iteration_bounds = array<i64: 2>, scalar_prefetch = 0 : i64, scratch_operands = 0 : i64, tpu.core_type = #tpu.core_type<tc>, window_params = [{transform_indices = @transform_0, window_bounds = array<i64: 256, 64>}, {pipeline_mode = #tpu.pipeline_mode<synchronous>, transform_indices = @transform_1, window_bounds = array<i64: 64, 128>}, {pipeline_mode = #tpu.pipeline_mode<synchronous>, transform_indices = @transform_2, window_bounds = array<i64: 1, 128>}, {pipeline_mode = #tpu.pipeline_mode<synchronous>, transform_indices = @transform_3, window_bounds = array<i64: 128, 128>}, {pipeline_mode = #tpu.pipeline_mode<synchronous>, transform_indices = @transform_4, window_bounds = array<i64: 1, 128>}, {pipeline_mode = #tpu.pipeline_mode<synchronous>, transform_indices = @transform_5, window_bounds = array<i64: 128, 128>}, {pipeline_mode = #tpu.pipeline_mode<synchronous>, transform_indices = @transform_6, window_bounds = array<i64: 1, 128>}, {transform_indices = @transform_7, window_bounds = array<i64: 256, 128>}]} {
    %c0 = arith.constant 0 : index
    %c0_0 = arith.constant 0 : index
    %0 = vector.load %arg1[%c0, %c0_0] : memref<256x64xf32, #tpu.memory_space<vmem>>, vector<256x64xf32>
    %c0_1 = arith.constant 0 : index
    %c0_2 = arith.constant 0 : index
    %1 = vector.load %arg2[%c0_1, %c0_2] : memref<64x128xf32, #tpu.memory_space<vmem>>, vector<64x128xf32>
    %cst = arith.constant dense<0.000000e+00> : vector<256x128xf32>
    %2 = tpu.matmul %0, %1, %cst {dimension_numbers = #tpu.dot_dimension_numbers<[1], [0], [0], [1], [0, 0, 1, 1], [], []>} : vector<256x64xf32>, vector<64x128xf32>, vector<256x128xf32> -> vector<256x128xf32>
    %c0_3 = arith.constant 0 : index
    %c0_4 = arith.constant 0 : index
    %3 = vector.load %arg3[%c0_3, %c0_4] : memref<1x128xf32, #tpu.memory_space<vmem>>, vector<1x128xf32>
    %4 = vector.broadcast %3 : vector<1x128xf32> to vector<256x128xf32>
    %5 = arith.addf %2, %4 : vector<256x128xf32>
    %6 = arith.negf %5 : vector<256x128xf32>
    %7 = math.exp %6 : vector<256x128xf32>
    %cst_5 = arith.constant 1.000000e+00 : f32
    %8 = vector.broadcast %cst_5 : f32 to vector<256x128xf32>
    %9 = arith.addf %8, %7 : vector<256x128xf32>
    %10 = arith.divf %8, %9 : vector<256x128xf32>
    %11 = arith.mulf %5, %10 : vector<256x128xf32>
    %c0_6 = arith.constant 0 : index
    %c0_7 = arith.constant 0 : index
    %12 = vector.load %arg4[%c0_6, %c0_7] : memref<128x128xf32, #tpu.memory_space<vmem>>, vector<128x128xf32>
    %cst_8 = arith.constant dense<0.000000e+00> : vector<256x128xf32>
    %13 = tpu.matmul %11, %12, %cst_8 {dimension_numbers = #tpu.dot_dimension_numbers<[1], [0], [0], [1], [0, 0, 1, 1], [], []>} : vector<256x128xf32>, vector<128x128xf32>, vector<256x128xf32> -> vector<256x128xf32>
    %c0_9 = arith.constant 0 : index
    %c0_10 = arith.constant 0 : index
    %14 = vector.load %arg5[%c0_9, %c0_10] : memref<1x128xf32, #tpu.memory_space<vmem>>, vector<1x128xf32>
    %15 = vector.broadcast %14 : vector<1x128xf32> to vector<256x128xf32>
    %16 = arith.addf %13, %15 : vector<256x128xf32>
    %17 = arith.negf %16 : vector<256x128xf32>
    %18 = math.exp %17 : vector<256x128xf32>
    %cst_11 = arith.constant 1.000000e+00 : f32
    %19 = vector.broadcast %cst_11 : f32 to vector<256x128xf32>
    %20 = arith.addf %19, %18 : vector<256x128xf32>
    %21 = arith.divf %19, %20 : vector<256x128xf32>
    %22 = arith.mulf %16, %21 : vector<256x128xf32>
    %c0_12 = arith.constant 0 : index
    %c0_13 = arith.constant 0 : index
    %23 = vector.load %arg6[%c0_12, %c0_13] : memref<128x128xf32, #tpu.memory_space<vmem>>, vector<128x128xf32>
    %cst_14 = arith.constant dense<0.000000e+00> : vector<256x128xf32>
    %24 = tpu.matmul %22, %23, %cst_14 {dimension_numbers = #tpu.dot_dimension_numbers<[1], [0], [0], [1], [0, 0, 1, 1], [], []>} : vector<256x128xf32>, vector<128x128xf32>, vector<256x128xf32> -> vector<256x128xf32>
    %c0_15 = arith.constant 0 : index
    %c0_16 = arith.constant 0 : index
    %25 = vector.load %arg7[%c0_15, %c0_16] : memref<1x128xf32, #tpu.memory_space<vmem>>, vector<1x128xf32>
    %26 = vector.broadcast %25 : vector<1x128xf32> to vector<256x128xf32>
    %27 = arith.addf %24, %26 : vector<256x128xf32>
    %c0_17 = arith.constant 0 : index
    %c0_18 = arith.constant 0 : index
    %28 = vector.load %arg8[%c0_17, %c0_18] : memref<256x128xf32, #tpu.memory_space<vmem>>, vector<256x128xf32>
    tpu.vector_store %arg8[%c0_17, %c0_18], %27 {strides = array<i32>} : memref<256x128xf32, #tpu.memory_space<vmem>>, vector<256x128xf32>,
    return
  }
  func.func @transform_0(%arg0: i32) -> (i32, i32) {
    %c0_i32 = arith.constant 0 : i32
    %c0_i32_0 = arith.constant 0 : i32
    return %arg0, %c0_i32 : i32, i32
  }
  func.func @transform_1(%arg0: i32) -> (i32, i32) {
    %c0_i32 = arith.constant 0 : i32
    %c0_i32_0 = arith.constant 0 : i32
    %c0_i32_1 = arith.constant 0 : i32
    return %c0_i32, %c0_i32_0 : i32, i32
  }
  func.func @transform_2(%arg0: i32) -> (i32, i32) {
    %c0_i32 = arith.constant 0 : i32
    %c0_i32_0 = arith.constant 0 : i32
    %c0_i32_1 = arith.constant 0 : i32
    return %c0_i32, %c0_i32_0 : i32, i32
  }
  func.func @transform_3(%arg0: i32) -> (i32, i32) {
    %c0_i32 = arith.constant 0 : i32
    %c0_i32_0 = arith.constant 0 : i32
    %c0_i32_1 = arith.constant 0 : i32
    return %c0_i32, %c0_i32_0 : i32, i32
  }
  func.func @transform_4(%arg0: i32) -> (i32, i32) {
    %c0_i32 = arith.constant 0 : i32
    %c0_i32_0 = arith.constant 0 : i32
    %c0_i32_1 = arith.constant 0 : i32
    return %c0_i32, %c0_i32_0 : i32, i32
  }
  func.func @transform_5(%arg0: i32) -> (i32, i32) {
    %c0_i32 = arith.constant 0 : i32
    %c0_i32_0 = arith.constant 0 : i32
    %c0_i32_1 = arith.constant 0 : i32
    return %c0_i32, %c0_i32_0 : i32, i32
  }
  func.func @transform_6(%arg0: i32) -> (i32, i32) {
    %c0_i32 = arith.constant 0 : i32
    %c0_i32_0 = arith.constant 0 : i32
    %c0_i32_1 = arith.constant 0 : i32
    return %c0_i32, %c0_i32_0 : i32, i32
  }
  func.func @transform_7(%arg0: i32) -> (i32, i32) {
    %c0_i32 = arith.constant 0 : i32
    %c0_i32_0 = arith.constant 0 : i32
    return %arg0, %c0_i32 : i32, i32
  }
}

module attributes {stable_mosaic.version = 11 : i64} {
  func.func @kernel(%arg0: i32, %arg1: memref<256x64xf32, #tpu.memory_space<vmem>>, %arg2: memref<64x128xf32, #tpu.memory_space<vmem>>, %arg3: memref<1x128xf32, #tpu.memory_space<vmem>>, %arg4: memref<128x128xf32, #tpu.memory_space<vmem>>, %arg5: memref<1x128xf32, #tpu.memory_space<vmem>>, %arg6: memref<128x128xf32, #tpu.memory_space<vmem>>, %arg7: memref<1x128xf32, #tpu.memory_space<vmem>>, %arg8: memref<256x128xf32, #tpu.memory_space<vmem>>) attributes {dimension_semantics = [#tpu.dimension_semantics<parallel>], iteration_bounds = array<i64: 2>, scalar_prefetch = 0 : i64, scratch_operands = 0 : i64, tpu.core_type = #tpu.core_type<tc>, window_params = [{transform_indices = @transform_0, window_bounds = array<i64: 256, 64>}, {pipeline_mode = #tpu.pipeline_mode<synchronous>, transform_indices = @transform_1, window_bounds = array<i64: 64, 128>}, {pipeline_mode = #tpu.pipeline_mode<synchronous>, transform_indices = @transform_2, window_bounds = array<i64: 1, 128>}, {pipeline_mode = #tpu.pipeline_mode<synchronous>, transform_indices = @transform_3, window_bounds = array<i64: 128, 128>}, {pipeline_mode = #tpu.pipeline_mode<synchronous>, transform_indices = @transform_4, window_bounds = array<i64: 1, 128>}, {pipeline_mode = #tpu.pipeline_mode<synchronous>, transform_indices = @transform_5, window_bounds = array<i64: 128, 128>}, {pipeline_mode = #tpu.pipeline_mode<synchronous>, transform_indices = @transform_6, window_bounds = array<i64: 1, 128>}, {transform_indices = @transform_7, window_bounds = array<i64: 256, 128>}]} {
    %c0 = arith.constant 0 : index
    %c0_0 = arith.constant 0 : index
    %0 = vector.load %arg1[%c0, %c0_0] : memref<256x64xf32, #tpu.memory_space<vmem>>, vector<256x64xf32>
    %c0_1 = arith.constant 0 : index
    %c0_2 = arith.constant 0 : index
    %1 = vector.load %arg2[%c0_1, %c0_2] : memref<64x128xf32, #tpu.memory_space<vmem>>, vector<64x128xf32>
    %cst = arith.constant dense<0.000000e+00> : vector<256x128xf32>
    %2 = tpu.matmul %0, %1, %cst {dimension_numbers = #tpu.dot_dimension_numbers<[1], [0], [0], [1], [0, 0, 1, 1], [], []>} : vector<256x64xf32>, vector<64x128xf32>, vector<256x128xf32> -> vector<256x128xf32>
    %c0_3 = arith.constant 0 : index
    %c0_4 = arith.constant 0 : index
    %3 = vector.load %arg3[%c0_3, %c0_4] : memref<1x128xf32, #tpu.memory_space<vmem>>, vector<1x128xf32>
    %4 = vector.broadcast %3 : vector<1x128xf32> to vector<256x128xf32>
    %5 = arith.addf %2, %4 : vector<256x128xf32>
    %6 = arith.negf %5 : vector<256x128xf32>
    %7 = math.exp %6 : vector<256x128xf32>
    %cst_5 = arith.constant 1.000000e+00 : f32
    %8 = vector.broadcast %cst_5 : f32 to vector<256x128xf32>
    %9 = arith.addf %8, %7 : vector<256x128xf32>
    %10 = arith.divf %8, %9 : vector<256x128xf32>
    %11 = arith.mulf %5, %10 : vector<256x128xf32>
    %c0_6 = arith.constant 0 : index
    %c0_7 = arith.constant 0 : index
    %12 = vector.load %arg4[%c0_6, %c0_7] : memref<128x128xf32, #tpu.memory_space<vmem>>, vector<128x128xf32>
    %cst_8 = arith.constant dense<0.000000e+00> : vector<256x128xf32>
    %13 = tpu.matmul %11, %12, %cst_8 {dimension_numbers = #tpu.dot_dimension_numbers<[1], [0], [0], [1], [0, 0, 1, 1], [], []>} : vector<256x128xf32>, vector<128x128xf32>, vector<256x128xf32> -> vector<256x128xf32>
    %c0_9 = arith.constant 0 : index
    %c0_10 = arith.constant 0 : index
    %14 = vector.load %arg5[%c0_9, %c0_10] : memref<1x128xf32, #tpu.memory_space<vmem>>, vector<1x128xf32>
    %15 = vector.broadcast %14 : vector<1x128xf32> to vector<256x128xf32>
    %16 = arith.addf %13, %15 : vector<256x128xf32>
    %17 = arith.negf %16 : vector<256x128xf32>
    %18 = math.exp %17 : vector<256x128xf32>
    %cst_11 = arith.constant 1.000000e+00 : f32
    %19 = vector.broadcast %cst_11 : f32 to vector<256x128xf32>
    %20 = arith.addf %19, %18 : vector<256x128xf32>
    %21 = arith.divf %19, %20 : vector<256x128xf32>
    %22 = arith.mulf %16, %21 : vector<256x128xf32>
    %c0_12 = arith.constant 0 : index
    %c0_13 = arith.constant 0 : index
    %23 = vector.load %arg6[%c0_12, %c0_13] : memref<128x128xf32, #tpu.memory_space<vmem>>, vector<128x128xf32>
    %cst_14 = arith.constant dense<0.000000e+00> : vector<256x128xf32>
    %24 = tpu.matmul %22, %23, %cst_14 {dimension_numbers = #tpu.dot_dimension_numbers<[1], [0], [0], [1], [0, 0, 1, 1], [], []>} : vector<256x128xf32>, vector<128x128xf32>, vector<256x128xf32> -> vector<256x128xf32>
    %c0_15 = arith.constant 0 : index
    %c0_16 = arith.constant 0 : index
    %25 = vector.load %arg7[%c0_15, %c0_16] : memref<1x128xf32, #tpu.memory_space<vmem>>, vector<1x128xf32>
    %26 = vector.broadcast %25 : vector<1x128xf32> to vector<256x128xf32>
    %27 = arith.addf %24, %26 : vector<256x128xf32>
    %c0_17 = arith.constant 0 : index
    %c0_18 = arith.constant 0 : index
    %28 = vector.load %arg8[%c0_17, %c0_18] : memref<256x128xf32, #tpu.memory_space<vmem>>, vector<256x128xf32>
    tpu.vector_store %arg8[%c0_17, %c0_18], %27 {strides = array<i32>} : memref<256x128xf32, #tpu.memory_space<vmem>>, vector<256x128xf32>,
    return
  }
  func.func @transform_0(%arg0: i32) -> (i32, i32) {
    %c0_i32 = arith.constant 0 : i32
    %c0_i32_0 = arith.constant 0 : i32
    return %arg0, %c0_i32 : i32, i32
  }
  func.func @transform_1(%arg0: i32) -> (i32, i32) {
    %c0_i32 = arith.constant 0 : i32
    %c0_i32_0 = arith.constant 0 : i32
    %c0_i32_1 = arith.constant 0 : i32
    return %c0_i32, %c0_i32_0 : i32, i32
  }
  func.func @transform_2(%arg0: i32) -> (i32, i32) {
    %c0_i32 = arith.constant 0 : i32
    %c0_i32_0 = arith.constant 0 : i32
    %c0_i32_1 = arith.constant 0 : i32
    return %c0_i32, %c0_i32_0 : i32, i32
  }
  func.func @transform_3(%arg0: i32) -> (i32, i32) {
    %c0_i32 = arith.constant 0 : i32
    %c0_i32_0 = arith.constant 0 : i32
    %c0_i32_1 = arith.constant 0 : i32
    return %c0_i32, %c0_i32_0 : i32, i32
  }
  func.func @transform_4(%arg0: i32) -> (i32, i32) {
    %c0_i32 = arith.constant 0 : i32
    %c0_i32_0 = arith.constant 0 : i32
    %c0_i32_1 = arith.constant 0 : i32
    return %c0_i32, %c0_i32_0 : i32, i32
  }
  func.func @transform_5(%arg0: i32) -> (i32, i32) {
    %c0_i32 = arith.constant 0 : i32
    %c0_i32_0 = arith.constant 0 : i32
    %c0_i32_1 = arith.constant 0 : i32
    return %c0_i32, %c0_i32_0 : i32, i32
  }
  func.func @transform_6(%arg0: i32) -> (i32, i32) {
    %c0_i32 = arith.constant 0 : i32
    %c0_i32_0 = arith.constant 0 : i32
    %c0_i32_1 = arith.constant 0 : i32
    return %c0_i32, %c0_i32_0 : i32, i32
  }
  func.func @transform_7(%arg0: i32) -> (i32, i32) {
    %c0_i32 = arith.constant 0 : i32
    %c0_i32_0 = arith.constant 0 : i32
    return %arg0, %c0_i32 : i32, i32
  }
}

</mosaic_0001>

<llo_original>
// kernel: tpu_custom_call.1
$region0: #{tpu_custom_call.1}
  #allocation0 [shape = 'u32[]', space=smem, size = 0x4, offset = 0x4, fixed_abs, tag = 'smem constant byte address 0x4 - core index']
  #allocation1 [shape = 'u32[144,128]{1,0:T(1,128)}', space=vmem, size = 0x12000, scoped, tag = 'internal scratch']
  %s0 = inlined_call_operand.vmem [shape: f32[512,64], index: 0, kind: input, shape index: {}]
  %s1 = inlined_call_operand.vmem [shape: f32[64,128], index: 1, kind: input, shape index: {}]
  %s2 = inlined_call_operand.vmem [shape: f32[1,128], index: 2, kind: input, shape index: {}]
  %s3 = inlined_call_operand.vmem [shape: f32[128,128], index: 3, kind: input, shape index: {}]
  %s4 = inlined_call_operand.vmem [shape: f32[1,128], index: 4, kind: input, shape index: {}]
  %s5 = inlined_call_operand.vmem [shape: f32[128,128], index: 5, kind: input, shape index: {}]
  %s6 = inlined_call_operand.vmem [shape: f32[1,128], index: 6, kind: input, shape index: {}]
  %s7 = inlined_call_operand.hbm [shape: f32[512,128], index: 7, kind: output, shape index: {}]
  %s8 = sld [smem:[#allocation0]]
  $region61: #{tpu_custom_call.1} parent=0
    _
  %s10 = ssub.s32 1, %s8
  %s11 = scalar_select 0, %s10, %s8
  $region1: #{tpu_custom_call.1} parent=0
    #allocation2 [shape = 'u8[262144]{0}', space=vmem, size = 0x40000, scoped, tag = 'output window, operand 0']
    #allocation3 [shape = 's32[2]{0}', space=sflag, size = 0x8, scoped, tag = 'scoped memory for tpu_custom_call.1']
    %12 = vsyncpa [#allocation3], 0
    %s13 = scalar_lea.sflag [#allocation3], 1
    %14 = vsyncpa %s13, 0
    loop: start=0, step=1, limit=4
    $region2: #{tpu_custom_call.1} parent=1 // loop_pre_header
      _
    $region3: #{tpu_custom_call.1} parent=1 // loop_header
      %s16 = sphi 0, %s20
      %p17 = scmp.ge.s32.totalorder %s16, 4
      %s26 = sphi 0, %s28
      %s29 = sphi 0, %s26
      %s30 = sphi 0, %s29
      %s46 = sphi 0, %s30
      %s50 = sphi 0, %s50
      %s52 = sphi 0, %s50
      %s53 = sphi 0, %s52
      %s67 = sphi 0, %s53
      %s71 = sphi 0, %s71
      %s73 = sphi 0, %s71
      %s74 = sphi 0, %s73
      %s88 = sphi 0, %s74
      %s92 = sphi 0, %s92
      %s94 = sphi 0, %s92
      %s95 = sphi 0, %s94
      %s109 = sphi 0, %s95
      %s113 = sphi 0, %s113
      %s115 = sphi 0, %s113
      %s116 = sphi 0, %s115
      %s130 = sphi 0, %s116
      %s134 = sphi 0, %s134
      %s136 = sphi 0, %s134
      %s137 = sphi 0, %s136
      %s151 = sphi 0, %s137
      %s155 = sphi 0, %s155
      %s157 = sphi 0, %s155
      %s158 = sphi 0, %s157
      %s172 = sphi 0, %s158
      %s178 = sphi 0, %s180
      %s181 = sphi 0, %s178
      %s182 = sphi 0, %s181
      %s198 = sphi 0, %s182
    $region4: #{tpu_custom_call.1} parent=1 // loop_header_branch
      %19 = sbr.rel (%p17) target = $region8
    $region5: #{tpu_custom_call.1} parent=1 // loop_body
      %s21 = ssub.s32 %s16, 1
      %s22 = ssub.s32 %s16, 2
      %s23 = sadd.s32 %s16, 1
      %s24 = ssub.s32 %s16, %s23
      %p25 = scmp.eq.s32.totalorder %s24, 0
      %s27 = sadd.s32 %s26, 1
      %s28 = scalar_select %p25, %s26, %s27
      %p31 = pneg %p25
      %p32 = scmp.eq.s32.totalorder %s16, 1
      %p33 = por %p31, %p32
      %p34 = scmp.ne.s32.totalorder %s26, %s29
      %p35 = scmp.eq.s32.totalorder %s16, 0
      %p36 = por %p34, %p35
      %p37 = scmp.ne.s32.totalorder %s26, %s29
      %p38 = scmp.eq.s32.totalorder %s21, 1
      %p39 = por %p37, %p38
      %p40 = scmp.ne.s32.totalorder %s29, %s30
      %p41 = scmp.eq.s32.totalorder %s21, 0
      %p42 = por %p40, %p41
      %p43 = scmp.ne.s32.totalorder %s29, %s30
      %p44 = scmp.eq.s32.totalorder %s22, 1
      %p45 = por %p43, %p44
      %p47 = scmp.ne.s32.totalorder %s30, %s46
      %p48 = scmp.eq.s32.totalorder %s22, 0
      %p49 = por %p47, %p48
      %s51 = sadd.s32 %s50, 1
      %p54 = scmp.eq.s32.totalorder %s16, 1
      %p55 = scmp.ne.s32.totalorder %s50, %s52
      %p56 = scmp.eq.s32.totalorder %s16, 0
      %p57 = por %p55, %p56
      %p58 = scmp.ne.s32.totalorder %s50, %s52
      %p59 = scmp.eq.s32.totalorder %s21, 1
      %p60 = por %p58, %p59
      %p61 = scmp.ne.s32.totalorder %s52, %s53
      %p62 = scmp.eq.s32.totalorder %s21, 0
      %p63 = por %p61, %p62
      %p64 = scmp.ne.s32.totalorder %s52, %s53
      %p65 = scmp.eq.s32.totalorder %s22, 1
      %p66 = por %p64, %p65
      %p68 = scmp.ne.s32.totalorder %s53, %s67
      %p69 = scmp.eq.s32.totalorder %s22, 0
      %p70 = por %p68, %p69
      %s72 = sadd.s32 %s71, 1
      %p75 = scmp.eq.s32.totalorder %s16, 1
      %p76 = scmp.ne.s32.totalorder %s71, %s73
      %p77 = scmp.eq.s32.totalorder %s16, 0
      %p78 = por %p76, %p77
      %p79 = scmp.ne.s32.totalorder %s71, %s73
      %p80 = scmp.eq.s32.totalorder %s21, 1
      %p81 = por %p79, %p80
      %p82 = scmp.ne.s32.totalorder %s73, %s74
      %p83 = scmp.eq.s32.totalorder %s21, 0
      %p84 = por %p82, %p83
      %p85 = scmp.ne.s32.totalorder %s73, %s74
      %p86 = scmp.eq.s32.totalorder %s22, 1
      %p87 = por %p85, %p86
      %p89 = scmp.ne.s32.totalorder %s74, %s88
      %p90 = scmp.eq.s32.totalorder %s22, 0
      %p91 = por %p89, %p90
      %s93 = sadd.s32 %s92, 1
      %p96 = scmp.eq.s32.totalorder %s16, 1
      %p97 = scmp.ne.s32.totalorder %s92, %s94
      %p98 = scmp.eq.s32.totalorder %s16, 0
      %p99 = por %p97, %p98
      %p100 = scmp.ne.s32.totalorder %s92, %s94
      %p101 = scmp.eq.s32.totalorder %s21, 1
      %p102 = por %p100, %p101
      %p103 = scmp.ne.s32.totalorder %s94, %s95
      %p104 = scmp.eq.s32.totalorder %s21, 0
      %p105 = por %p103, %p104
      %p106 = scmp.ne.s32.totalorder %s94, %s95
      %p107 = scmp.eq.s32.totalorder %s22, 1
      %p108 = por %p106, %p107
      %p110 = scmp.ne.s32.totalorder %s95, %s109
      %p111 = scmp.eq.s32.totalorder %s22, 0
      %p112 = por %p110, %p111
      %s114 = sadd.s32 %s113, 1
      %p117 = scmp.eq.s32.totalorder %s16, 1
      %p118 = scmp.ne.s32.totalorder %s113, %s115
      %p119 = scmp.eq.s32.totalorder %s16, 0
      %p120 = por %p118, %p119
      %p121 = scmp.ne.s32.totalorder %s113, %s115
      %p122 = scmp.eq.s32.totalorder %s21, 1
      %p123 = por %p121, %p122
      %p124 = scmp.ne.s32.totalorder %s115, %s116
      %p125 = scmp.eq.s32.totalorder %s21, 0
      %p126 = por %p124, %p125
      %p127 = scmp.ne.s32.totalorder %s115, %s116
      %p128 = scmp.eq.s32.totalorder %s22, 1
      %p129 = por %p127, %p128
      %p131 = scmp.ne.s32.totalorder %s116, %s130
      %p132 = scmp.eq.s32.totalorder %s22, 0
      %p133 = por %p131, %p132
      %s135 = sadd.s32 %s134, 1
      %p138 = scmp.eq.s32.totalorder %s16, 1
      %p139 = scmp.ne.s32.totalorder %s134, %s136
      %p140 = scmp.eq.s32.totalorder %s16, 0
      %p141 = por %p139, %p140
      %p142 = scmp.ne.s32.totalorder %s134, %s136
      %p143 = scmp.eq.s32.totalorder %s21, 1
      %p144 = por %p142, %p143
      %p145 = scmp.ne.s32.totalorder %s136, %s137
      %p146 = scmp.eq.s32.totalorder %s21, 0
      %p147 = por %p145, %p146
      %p148 = scmp.ne.s32.totalorder %s136, %s137
      %p149 = scmp.eq.s32.totalorder %s22, 1
      %p150 = por %p148, %p149
      %p152 = scmp.ne.s32.totalorder %s137, %s151
      %p153 = scmp.eq.s32.totalorder %s22, 0
      %p154 = por %p152, %p153
      %s156 = sadd.s32 %s155, 1
      %p159 = scmp.eq.s32.totalorder %s16, 1
      %p160 = scmp.ne.s32.totalorder %s155, %s157
      %p161 = scmp.eq.s32.totalorder %s16, 0
      %p162 = por %p160, %p161
      %p163 = scmp.ne.s32.totalorder %s155, %s157
      %p164 = scmp.eq.s32.totalorder %s21, 1
      %p165 = por %p163, %p164
      %p166 = scmp.ne.s32.totalorder %s157, %s158
      %p167 = scmp.eq.s32.totalorder %s21, 0
      %p168 = por %p166, %p167
      %p169 = scmp.ne.s32.totalorder %s157, %s158
      %p170 = scmp.eq.s32.totalorder %s22, 1
      %p171 = por %p169, %p170
      %p173 = scmp.ne.s32.totalorder %s158, %s172
      %p174 = scmp.eq.s32.totalorder %s22, 0
      %p175 = por %p173, %p174
      %s176 = ssub.s32 %s16, %s23
      %p177 = scmp.eq.s32.totalorder %s176, 0
      %s179 = sadd.s32 %s178, 1
      %s180 = scalar_select %p177, %s178, %s179
      %p183 = pneg %p177
      %p184 = scmp.eq.s32.totalorder %s16, 1
      %p185 = por %p183, %p184
      %p186 = scmp.ne.s32.totalorder %s178, %s181
      %p187 = scmp.eq.s32.totalorder %s16, 0
      %p188 = por %p186, %p187
      %p189 = scmp.ne.s32.totalorder %s178, %s181
      %p190 = scmp.eq.s32.totalorder %s21, 1
      %p191 = por %p189, %p190
      %p192 = scmp.ne.s32.totalorder %s181, %s182
      %p193 = scmp.eq.s32.totalorder %s21, 0
      %p194 = por %p192, %p193
      %p195 = scmp.ne.s32.totalorder %s181, %s182
      %p196 = scmp.eq.s32.totalorder %s22, 1
      %p197 = por %p195, %p196
      %p199 = scmp.ne.s32.totalorder %s182, %s198
      %p200 = scmp.eq.s32.totalorder %s22, 0
      %p201 = por %p199, %p200
      %p202 = scmp.le.s32.totalorder 1, %s16
      %p203 = scmp.lt.s32.totalorder %s16, 3
      %p204 = pnand %p202, %p203
      %p205 = pneg %p204
      // Predicated region
      $region9: #{tpu_custom_call.1} parent=5 // pred_check
        _
      $region10: #{tpu_custom_call.1} parent=5 // pred_check_branch
        %207 = sbr.rel (%p204) target = $region12
      $region11: #{tpu_custom_call.1} parent=5 // pred_region
        %s208 = ssub.s32 %s16, 1
        // Predicated region
        $region13: #{tpu_custom_call.1} parent=11 // pred_check
          %p209 = pneg %p63
        $region14: #{tpu_custom_call.1} parent=11 // pred_check_branch
          %211 = sbr.rel (%p209) target = $region16
        $region15: #{tpu_custom_call.1} parent=11 // pred_region
          _
        $region16: #{tpu_custom_call.1} parent=11 // pred_fallthru
          _
        // Predicated region
        $region17: #{tpu_custom_call.1} parent=11 // pred_check
          %p212 = pneg %p84
        $region18: #{tpu_custom_call.1} parent=11 // pred_check_branch
          %214 = sbr.rel (%p212) target = $region20
        $region19: #{tpu_custom_call.1} parent=11 // pred_region
          _
        $region20: #{tpu_custom_call.1} parent=11 // pred_fallthru
          _
        // Predicated region
        $region21: #{tpu_custom_call.1} parent=11 // pred_check
          %p215 = pneg %p105
        $region22: #{tpu_custom_call.1} parent=11 // pred_check_branch
          %217 = sbr.rel (%p215) target = $region24
        $region23: #{tpu_custom_call.1} parent=11 // pred_region
          _
        $region24: #{tpu_custom_call.1} parent=11 // pred_fallthru
          _
        // Predicated region
        $region25: #{tpu_custom_call.1} parent=11 // pred_check
          %p218 = pneg %p126
        $region26: #{tpu_custom_call.1} parent=11 // pred_check_branch
          %220 = sbr.rel (%p218) target = $region28
        $region27: #{tpu_custom_call.1} parent=11 // pred_region
          _
        $region28: #{tpu_custom_call.1} parent=11 // pred_fallthru
          _
        // Predicated region
        $region29: #{tpu_custom_call.1} parent=11 // pred_check
          %p221 = pneg %p147
        $region30: #{tpu_custom_call.1} parent=11 // pred_check_branch
          %223 = sbr.rel (%p221) target = $region32
        $region31: #{tpu_custom_call.1} parent=11 // pred_region
          _
        $region32: #{tpu_custom_call.1} parent=11 // pred_fallthru
          _
        // Predicated region
        $region33: #{tpu_custom_call.1} parent=11 // pred_check
          %p224 = pneg %p168
        $region34: #{tpu_custom_call.1} parent=11 // pred_check_branch
          %226 = sbr.rel (%p224) target = $region36
        $region35: #{tpu_custom_call.1} parent=11 // pred_region
          _
        $region36: #{tpu_custom_call.1} parent=11 // pred_fallthru
          _
      $region12: #{tpu_custom_call.1} parent=5 // pred_fallthru
        _
      %p227 = scmp.lt.s32.totalorder %s16, 2
      // Predicated region
      $region37: #{tpu_custom_call.1} parent=5 // pred_check
        %p228 = pneg %p227
      $region38: #{tpu_custom_call.1} parent=5 // pred_check_branch
        %230 = sbr.rel (%p228) target = $region40
      $region39: #{tpu_custom_call.1} parent=5 // pred_region
        // Predicated region
        $region41: #{tpu_custom_call.1} parent=39 // pred_check
          %p231 = pneg %p36
        $region42: #{tpu_custom_call.1} parent=39 // pred_check_branch
          %233 = sbr.rel (%p231) target = $region44
        $region43: #{tpu_custom_call.1} parent=39 // pred_region
          %s234 = smul.u32 32, %s16
          %p235 = scmp.lt.s32.totalorder %s234, 63
          %s236 = scalar_select %p235, %s234, 63
          %s237 = smul.addr %s236, 8
          %s238 = scalar_lea.vmem %s0, %s237
          %s239 = smul.u32 32, %s16
        $region44: #{tpu_custom_call.1} parent=39 // pred_fallthru
          _
      $region40: #{tpu_custom_call.1} parent=5 // pred_fallthru
        _
      %p240 = scmp.le.s32.totalorder 1, %s16
      %p241 = scmp.lt.s32.totalorder %s16, 3
      %p242 = pnand %p240, %p241
      %p243 = pneg %p242
      // Predicated region
      $region45: #{tpu_custom_call.1} parent=5 // pred_check
        _
      $region46: #{tpu_custom_call.1} parent=5 // pred_check_branch
        %245 = sbr.rel (%p242) target = $region48
      $region47: #{tpu_custom_call.1} parent=5 // pred_region
        %s246 = ssub.s32 %s16, 1
        %s247 = smul.u32 32, %s21
        %p248 = scmp.lt.s32.totalorder %s247, 63
        %s249 = scalar_select %p248, %s247, 63
        %s250 = smul.addr %s249, 8
        %s251 = scalar_lea.vmem %s0, %s250
        %p252 = pneg %p42
        %p253 = pneg %p39
        %p254 = pneg %p63
        %p255 = pneg %p60
        %p256 = pneg %p84
        %p257 = pneg %p81
        %p258 = pneg %p105
        %p259 = pneg %p102
        %p260 = pneg %p126
        %p261 = pneg %p123
        %p262 = pneg %p147
        %p263 = pneg %p144
        %p264 = pneg %p168
        %p265 = pneg %p165
        %p266 = pneg %p194
        %p267 = pneg %p191
        %s268 = sand.u32 %s181, 1
        %s269 = scalar_lea.sflag [#allocation3], %s268
        %s270 = sand.u32 %s181, 1
        %s271 = smul.addr %s270, 256
        %s272 = scalar_lea.vmem [#allocation2], %s271
        %s273 = smul.u32 32, %s21
        %p274 = scmp.lt.s32.totalorder %s273, 63
        %s275 = scalar_select %p274, %s273, 63
        %s276 = smul.addr %s275, 8
        %s277 = scalar_lea.vmem %s0, %s276
        %s278 = smul.u32 32, %s21
        %s279 = smul.u32 32, %s21
        %v280 = vld [vmem:[%s277] sm:$0xff]
        %v281 = vld [vmem:[%s277 + $0x8] sm:$0xff]
        %v282 = vld [vmem:[%s277 + $0x10] sm:$0xff]
        %v283 = vld [vmem:[%s277 + $0x18] sm:$0xff]
        %v284 = vld [vmem:[%s277 + $0x20] sm:$0xff]
        %v285 = vld [vmem:[%s277 + $0x28] sm:$0xff]
        %v286 = vld [vmem:[%s277 + $0x30] sm:$0xff]
        %v287 = vld [vmem:[%s277 + $0x38] sm:$0xff]
        %v288 = vld [vmem:[%s277 + $0x40] sm:$0xff]
        %v289 = vld [vmem:[%s277 + $0x48] sm:$0xff]
        %v290 = vld [vmem:[%s277 + $0x50] sm:$0xff]
        %v291 = vld [vmem:[%s277 + $0x58] sm:$0xff]
        %v292 = vld [vmem:[%s277 + $0x60] sm:$0xff]
        %v293 = vld [vmem:[%s277 + $0x68] sm:$0xff]
        %v294 = vld [vmem:[%s277 + $0x70] sm:$0xff]
        %v295 = vld [vmem:[%s277 + $0x78] sm:$0xff]
        %v296 = vld [vmem:[%s277 + $0x80] sm:$0xff]
        %v297 = vld [vmem:[%s277 + $0x88] sm:$0xff]
        %v298 = vld [vmem:[%s277 + $0x90] sm:$0xff]
        %v299 = vld [vmem:[%s277 + $0x98] sm:$0xff]
        %v300 = vld [vmem:[%s277 + $0xa0] sm:$0xff]
        %v301 = vld [vmem:[%s277 + $0xa8] sm:$0xff]
        %v302 = vld [vmem:[%s277 + $0xb0] sm:$0xff]
        %v303 = vld [vmem:[%s277 + $0xb8] sm:$0xff]
        %v304 = vld [vmem:[%s277 + $0xc0] sm:$0xff]
        %v305 = vld [vmem:[%s277 + $0xc8] sm:$0xff]
        %v306 = vld [vmem:[%s277 + $0xd0] sm:$0xff]
        %v307 = vld [vmem:[%s277 + $0xd8] sm:$0xff]
        %v308 = vld [vmem:[%s277 + $0xe0] sm:$0xff]
        %v309 = vld [vmem:[%s277 + $0xe8] sm:$0xff]
        %v310 = vld [vmem:[%s277 + $0xf0] sm:$0xff]
        %v311 = vld [vmem:[%s277 + $0xf8] sm:$0xff]
        %v312 = vld [vmem:[%s1] sm:$0xff]
        %v313 = vld [vmem:[%s1 + $0x8] sm:$0xff]
        %v314 = vld [vmem:[%s1 + $0x10] sm:$0xff]
        %v315 = vld [vmem:[%s1 + $0x18] sm:$0xff]
        %v316 = vld [vmem:[%s1 + $0x20] sm:$0xff]
        %v317 = vld [vmem:[%s1 + $0x28] sm:$0xff]
        %v318 = vld [vmem:[%s1 + $0x30] sm:$0xff]
        %v319 = vld [vmem:[%s1 + $0x38] sm:$0xff]
        %v320 = vld [vmem:[%s2] sm:$0x1]
        %v322 = vlaneseq
        %v323 = vshrl.u32 %v322, 7
        %v324 = vsub.s32 0, %v323
        %v325 = vrot.slane %v320, %v324
        %vm327 = vcmask 523264
        %v329 = vsel %vm327, %v280, 0
        %v332 = vsel %vm327, %v281, 0
        %v335 = vsel %vm327, %v282, 0
        %v338 = vsel %vm327, %v283, 0
        %v341 = vsel %vm327, %v284, 0
        %v344 = vsel %vm327, %v285, 0
        %v347 = vsel %vm327, %v286, 0
        %v350 = vsel %vm327, %v287, 0
        %v353 = vsel %vm327, %v288, 0
        %v356 = vsel %vm327, %v289, 0
        %v359 = vsel %vm327, %v290, 0
        %v362 = vsel %vm327, %v291, 0
        %v365 = vsel %vm327, %v292, 0
        %v368 = vsel %vm327, %v293, 0
        %v371 = vsel %vm327, %v294, 0
        %v374 = vsel %vm327, %v295, 0
        %v377 = vsel %vm327, %v296, 0
        %v380 = vsel %vm327, %v297, 0
        %v383 = vsel %vm327, %v298, 0
        %v386 = vsel %vm327, %v299, 0
        %v389 = vsel %vm327, %v300, 0
        %v392 = vsel %vm327, %v301, 0
        %v395 = vsel %vm327, %v302, 0
        %v398 = vsel %vm327, %v303, 0
        %v401 = vsel %vm327, %v304, 0
        %v404 = vsel %vm327, %v305, 0
        %v407 = vsel %vm327, %v306, 0
        %v410 = vsel %vm327, %v307, 0
        %v413 = vsel %vm327, %v308, 0
        %v416 = vsel %vm327, %v309, 0
        %v419 = vsel %vm327, %v310, 0
        %v422 = vsel %vm327, %v311, 0
        %424 = vmatprep.subr.mxu0 0.0
        %425 = vmatpush1.msra.mxu0 %v312
        %426 = vmatprep.subr.mxu0 0.0
        %427 = vmatpush1.msra.mxu0 %v313
        %428 = vmatprep.subr.mxu0 0.0
        %429 = vmatpush1.msra.mxu0 %v314
        %430 = vmatprep.subr.mxu0 0.0
        %431 = vmatpush1.msra.mxu0 %v315
        %432 = vmatprep.subr.mxu0 0.0
        %433 = vmatpush1.msra.mxu0 %v316
        %434 = vmatprep.subr.mxu0 0.0
        %435 = vmatpush1.msra.mxu0 %v317
        %436 = vmatprep.subr.mxu0 0.0
        %437 = vmatpush1.msra.mxu0 %v318
        %438 = vmatprep.subr.mxu0 0.0
        %439 = vmatpush1.msra.mxu0 %v319
        %440 = vmatprep.subr.mxu0 0.0
        %441 = vmatpush1.msra.mxu0 0.0
        %442 = vmatprep.subr.mxu0 0.0
        %443 = vmatpush1.msra.mxu0 0.0
        %444 = vmatprep.subr.mxu0 0.0
        %445 = vmatpush1.msra.mxu0 0.0
        %446 = vmatprep.subr.mxu0 0.0
        %447 = vmatpush1.msra.mxu0 0.0
        %448 = vmatprep.subr.mxu0 0.0
        %449 = vmatpush1.msra.mxu0 0.0
        %450 = vmatprep.subr.mxu0 0.0
        %451 = vmatpush1.msra.mxu0 0.0
        %452 = vmatprep.subr.mxu0 0.0
        %453 = vmatpush1.msra.mxu0 0.0
        %454 = vmatprep.subr.mxu0 0.0
        %455 = vmatpush1.msra.mxu0 0.0
        %456 = vmatprep.subr.mxu0 0.0
        %457 = vmatpush1.msra.mxu0 0.0
        %458 = vmatprep.subr.mxu0 0.0
        %459 = vmatpush1.msra.mxu0 0.0
        %460 = vmatprep.subr.mxu0 0.0
        %461 = vmatpush1.msra.mxu0 0.0
        %462 = vmatprep.subr.mxu0 0.0
        %463 = vmatpush1.msra.mxu0 0.0
        %464 = vmatprep.subr.mxu0 0.0
        %465 = vmatpush1.msra.mxu0 0.0
        %466 = vmatprep.subr.mxu0 0.0
        %467 = vmatpush1.msra.mxu0 0.0
        %468 = vmatprep.subr.mxu0 0.0
        %469 = vmatpush1.msra.mxu0 0.0
        %470 = vmatprep.subr.mxu0 0.0
        %471 = vmatpush1.msra.mxu0 0.0
        %472 = vmatprep.subr.mxu0 0.0
        %473 = vmatpush1.msra.mxu0 0.0
        %474 = vmatprep.subr.mxu0 0.0
        %475 = vmatpush1.msra.mxu0 0.0
        %476 = vmatprep.subr.mxu0 0.0
        %477 = vmatpush1.msra.mxu0 0.0
        %478 = vmatprep.subr.mxu0 0.0
        %479 = vmatpush1.msra.mxu0 0.0
        %480 = vmatprep.subr.mxu0 0.0
        %481 = vmatpush1.msra.mxu0 0.0
        %482 = vmatprep.subr.mxu0 0.0
        %483 = vmatpush1.msra.mxu0 0.0
        %484 = vmatprep.subr.mxu0 0.0
        %485 = vmatpush1.msra.mxu0 0.0
        %486 = vmatprep.subr.mxu0 0.0
        %487 = vmatpush1.msra.mxu0 0.0
        %488 = vmatprep.mubr.f32.mxu0 0.0
        %489 = vmatmul.mubr.f32.gmra.mrb[0].mxu0 %v329
        %v490 = vpop.f32.mrb[0].mxu0
        %v491 = vadd.f32 %v325, %v490
        %v492 = vpop.f32.mrb[0].mxu0
        %493 = vmatprep.mubr.f32.mxu0 0.0
        %494 = vmatmul.mubr.f32.gmra.mrb[0].mxu0 %v332
        %v495 = vpop.f32.mrb[0].mxu0
        %v496 = vadd.f32 %v325, %v495
        %v497 = vpop.f32.mrb[0].mxu0
        %498 = vmatprep.mubr.f32.mxu0 0.0
        %499 = vmatmul.mubr.f32.gmra.mrb[0].mxu0 %v335
        %v500 = vpop.f32.mrb[0].mxu0
        %v501 = vadd.f32 %v325, %v500
        %v502 = vpop.f32.mrb[0].mxu0
        %503 = vmatprep.mubr.f32.mxu0 0.0
        %504 = vmatmul.mubr.f32.gmra.mrb[0].mxu0 %v338
        %v505 = vpop.f32.mrb[0].mxu0
        %v506 = vadd.f32 %v325, %v505
        %v507 = vpop.f32.mrb[0].mxu0
        %508 = vmatprep.mubr.f32.mxu0 0.0
        %509 = vmatmul.mubr.f32.gmra.mrb[0].mxu0 %v341
        %v510 = vpop.f32.mrb[0].mxu0
        %v511 = vadd.f32 %v325, %v510
        %v512 = vpop.f32.mrb[0].mxu0
        %513 = vmatprep.mubr.f32.mxu0 0.0
        %514 = vmatmul.mubr.f32.gmra.mrb[0].mxu0 %v344
        %v515 = vpop.f32.mrb[0].mxu0
        %v516 = vadd.f32 %v325, %v515
        %v517 = vpop.f32.mrb[0].mxu0
        %518 = vmatprep.mubr.f32.mxu0 0.0
        %519 = vmatmul.mubr.f32.gmra.mrb[0].mxu0 %v347
        %v520 = vpop.f32.mrb[0].mxu0
        %v521 = vadd.f32 %v325, %v520
        %v522 = vpop.f32.mrb[0].mxu0
        %523 = vmatprep.mubr.f32.mxu0 0.0
        %524 = vmatmul.mubr.f32.gmra.mrb[0].mxu0 %v350
        %v525 = vpop.f32.mrb[0].mxu0
        %v526 = vadd.f32 %v325, %v525
        %v527 = vpop.f32.mrb[0].mxu0
        %528 = vmatprep.mubr.f32.mxu0 0.0
        %529 = vmatmul.mubr.f32.gmra.mrb[0].mxu0 %v353
        %v530 = vpop.f32.mrb[0].mxu0
        %v531 = vadd.f32 %v325, %v530
        %v532 = vpop.f32.mrb[0].mxu0
        %533 = vmatprep.mubr.f32.mxu0 0.0
        %534 = vmatmul.mubr.f32.gmra.mrb[0].mxu0 %v356
        %v535 = vpop.f32.mrb[0].mxu0
        %v536 = vadd.f32 %v325, %v535
        %v537 = vpop.f32.mrb[0].mxu0
        %538 = vmatprep.mubr.f32.mxu0 0.0
        %539 = vmatmul.mubr.f32.gmra.mrb[0].mxu0 %v359
        %v540 = vpop.f32.mrb[0].mxu0
        %v541 = vadd.f32 %v325, %v540
        %v542 = vpop.f32.mrb[0].mxu0
        %543 = vmatprep.mubr.f32.mxu0 0.0
        %544 = vmatmul.mubr.f32.gmra.mrb[0].mxu0 %v362
        %v545 = vpop.f32.mrb[0].mxu0
        %v546 = vadd.f32 %v325, %v545
        %v547 = vpop.f32.mrb[0].mxu0
        %548 = vmatprep.mubr.f32.mxu0 0.0
        %549 = vmatmul.mubr.f32.gmra.mrb[0].mxu0 %v365
        %v550 = vpop.f32.mrb[0].mxu0
        %v551 = vadd.f32 %v325, %v550
        %v552 = vpop.f32.mrb[0].mxu0
        %553 = vmatprep.mubr.f32.mxu0 0.0
        %554 = vmatmul.mubr.f32.gmra.mrb[0].mxu0 %v368
        %v555 = vpop.f32.mrb[0].mxu0
        %v556 = vadd.f32 %v325, %v555
        %v557 = vpop.f32.mrb[0].mxu0
        %558 = vmatprep.mubr.f32.mxu0 0.0
        %559 = vmatmul.mubr.f32.gmra.mrb[0].mxu0 %v371
        %v560 = vpop.f32.mrb[0].mxu0
        %v561 = vadd.f32 %v325, %v560
        %v562 = vpop.f32.mrb[0].mxu0
        %563 = vmatprep.mubr.f32.mxu0 0.0
        %564 = vmatmul.mubr.f32.gmra.mrb[0].mxu0 %v374
        %v565 = vpop.f32.mrb[0].mxu0
        %v566 = vadd.f32 %v325, %v565
        %v567 = vpop.f32.mrb[0].mxu0
        %568 = vmatprep.mubr.f32.mxu0 0.0
        %569 = vmatmul.mubr.f32.gmra.mrb[0].mxu0 %v377
        %v570 = vpop.f32.mrb[0].mxu0
        %v571 = vadd.f32 %v325, %v570
        %v572 = vpop.f32.mrb[0].mxu0
        %573 = vmatprep.mubr.f32.mxu0 0.0
        %574 = vmatmul.mubr.f32.gmra.mrb[0].mxu0 %v380
        %v575 = vpop.f32.mrb[0].mxu0
        %v576 = vadd.f32 %v325, %v575
        %v577 = vpop.f32.mrb[0].mxu0
        %578 = vmatprep.mubr.f32.mxu0 0.0
        %579 = vmatmul.mubr.f32.gmra.mrb[0].mxu0 %v383
        %v580 = vpop.f32.mrb[0].mxu0
        %v581 = vadd.f32 %v325, %v580
        %v582 = vpop.f32.mrb[0].mxu0
        %583 = vmatprep.mubr.f32.mxu0 0.0
        %584 = vmatmul.mubr.f32.gmra.mrb[0].mxu0 %v386
        %v585 = vpop.f32.mrb[0].mxu0
        %v586 = vadd.f32 %v325, %v585
        %v587 = vpop.f32.mrb[0].mxu0
        %588 = vmatprep.mubr.f32.mxu0 0.0
        %589 = vmatmul.mubr.f32.gmra.mrb[0].mxu0 %v389
        %v590 = vpop.f32.mrb[0].mxu0
        %v591 = vadd.f32 %v325, %v590
        %v592 = vpop.f32.mrb[0].mxu0
        %593 = vmatprep.mubr.f32.mxu0 0.0
        %594 = vmatmul.mubr.f32.gmra.mrb[0].mxu0 %v392
        %v595 = vpop.f32.mrb[0].mxu0
        %v596 = vadd.f32 %v325, %v595
        %v597 = vpop.f32.mrb[0].mxu0
        %598 = vmatprep.mubr.f32.mxu0 0.0
        %599 = vmatmul.mubr.f32.gmra.mrb[0].mxu0 %v395
        %v600 = vpop.f32.mrb[0].mxu0
        %v601 = vadd.f32 %v325, %v600
        %v602 = vpop.f32.mrb[0].mxu0
        %603 = vmatprep.mubr.f32.mxu0 0.0
        %604 = vmatmul.mubr.f32.gmra.mrb[0].mxu0 %v398
        %v605 = vpop.f32.mrb[0].mxu0
        %v606 = vadd.f32 %v325, %v605
        %v607 = vpop.f32.mrb[0].mxu0
        %608 = vmatprep.mubr.f32.mxu0 0.0
        %609 = vmatmul.mubr.f32.gmra.mrb[0].mxu0 %v401
        %v610 = vpop.f32.mrb[0].mxu0
        %v611 = vadd.f32 %v325, %v610
        %v612 = vpop.f32.mrb[0].mxu0
        %613 = vmatprep.mubr.f32.mxu0 0.0
        %614 = vmatmul.mubr.f32.gmra.mrb[0].mxu0 %v404
        %v615 = vpop.f32.mrb[0].mxu0
        %v616 = vadd.f32 %v325, %v615
        %v617 = vpop.f32.mrb[0].mxu0
        %618 = vmatprep.mubr.f32.mxu0 0.0
        %619 = vmatmul.mubr.f32.gmra.mrb[0].mxu0 %v407
        %v620 = vpop.f32.mrb[0].mxu0
        %v621 = vadd.f32 %v325, %v620
        %v622 = vpop.f32.mrb[0].mxu0
        %623 = vmatprep.mubr.f32.mxu0 0.0
        %624 = vmatmul.mubr.f32.gmra.mrb[0].mxu0 %v410
        %v625 = vpop.f32.mrb[0].mxu0
        %v626 = vadd.f32 %v325, %v625
        %v627 = vpop.f32.mrb[0].mxu0
        %628 = vmatprep.mubr.f32.mxu0 0.0
        %629 = vmatmul.mubr.f32.gmra.mrb[0].mxu0 %v413
        %v630 = vpop.f32.mrb[0].mxu0
        %v631 = vadd.f32 %v325, %v630
        %v632 = vpop.f32.mrb[0].mxu0
        %633 = vmatprep.mubr.f32.mxu0 0.0
        %634 = vmatmul.mubr.f32.gmra.mrb[0].mxu0 %v416
        %v635 = vpop.f32.mrb[0].mxu0
        %v636 = vadd.f32 %v325, %v635
        %v637 = vpop.f32.mrb[0].mxu0
        %638 = vmatprep.mubr.f32.mxu0 0.0
        %639 = vmatmul.mubr.f32.gmra.mrb[0].mxu0 %v419
        %v640 = vpop.f32.mrb[0].mxu0
        %v641 = vadd.f32 %v325, %v640
        %v642 = vpop.f32.mrb[0].mxu0
        %643 = vmatprep.mubr.f32.mxu0 0.0
        %644 = vmatmul.mubr.f32.gmra.mrb[0].mxu0 %v422
        %v645 = vpop.f32.mrb[0].mxu0
        %v646 = vadd.f32 %v325, %v645
        %v647 = vpop.f32.mrb[0].mxu0
        %648 = vdwg.mxu0
        %v649 = vxor.u32 %v491, 2147483648
        %v650 = vxor.u32 %v496, 2147483648
        %v651 = vxor.u32 %v501, 2147483648
        %v652 = vxor.u32 %v506, 2147483648
        %v653 = vxor.u32 %v511, 2147483648
        %v654 = vxor.u32 %v516, 2147483648
        %v655 = vxor.u32 %v521, 2147483648
        %v656 = vxor.u32 %v526, 2147483648
        %v657 = vxor.u32 %v531, 2147483648
        %v658 = vxor.u32 %v536, 2147483648
        %v659 = vxor.u32 %v541, 2147483648
        %v660 = vxor.u32 %v546, 2147483648
        %v661 = vxor.u32 %v551, 2147483648
        %v662 = vxor.u32 %v556, 2147483648
        %v663 = vxor.u32 %v561, 2147483648
        %v664 = vxor.u32 %v566, 2147483648
        %v665 = vxor.u32 %v571, 2147483648
        %v666 = vxor.u32 %v576, 2147483648
        %v667 = vxor.u32 %v581, 2147483648
        %v668 = vxor.u32 %v586, 2147483648
        %v669 = vxor.u32 %v591, 2147483648
        %v670 = vxor.u32 %v596, 2147483648
        %v671 = vxor.u32 %v601, 2147483648
        %v672 = vxor.u32 %v606, 2147483648
        %v673 = vxor.u32 %v611, 2147483648
        %v674 = vxor.u32 %v616, 2147483648
        %v675 = vxor.u32 %v621, 2147483648
        %v676 = vxor.u32 %v626, 2147483648
        %v677 = vxor.u32 %v631, 2147483648
        %v678 = vxor.u32 %v636, 2147483648
        %v679 = vxor.u32 %v641, 2147483648
        %v680 = vxor.u32 %v646, 2147483648
        %v681 = vmul.f32 %v649, 1.442695
        %v682 = vpow.pop %v681
        %v683 = vmul.f32 %v650, 1.442695
        %v684 = vpow.pop %v683
        %v685 = vmul.f32 %v651, 1.442695
        %v686 = vpow.pop %v685
        %v687 = vmul.f32 %v652, 1.442695
        %v688 = vpow.pop %v687
        %v689 = vmul.f32 %v653, 1.442695
        %v690 = vpow.pop %v689
        %v691 = vmul.f32 %v654, 1.442695
        %v692 = vpow.pop %v691
        %v693 = vmul.f32 %v655, 1.442695
        %v694 = vpow.pop %v693
        %v695 = vmul.f32 %v656, 1.442695
        %v696 = vpow.pop %v695
        %v697 = vmul.f32 %v657, 1.442695
        %v698 = vpow.pop %v697
        %v699 = vmul.f32 %v658, 1.442695
        %v700 = vpow.pop %v699
        %v701 = vmul.f32 %v659, 1.442695
        %v702 = vpow.pop %v701
        %v703 = vmul.f32 %v660, 1.442695
        %v704 = vpow.pop %v703
        %v705 = vmul.f32 %v661, 1.442695
        %v706 = vpow.pop %v705
        %v707 = vmul.f32 %v662, 1.442695
        %v708 = vpow.pop %v707
        %v709 = vmul.f32 %v663, 1.442695
        %v710 = vpow.pop %v709
        %v711 = vmul.f32 %v664, 1.442695
        %v712 = vpow.pop %v711
        %v713 = vmul.f32 %v665, 1.442695
        %v714 = vpow.pop %v713
        %v715 = vmul.f32 %v666, 1.442695
        %v716 = vpow.pop %v715
        %v717 = vmul.f32 %v667, 1.442695
        %v718 = vpow.pop %v717
        %v719 = vmul.f32 %v668, 1.442695
        %v720 = vpow.pop %v719
        %v721 = vmul.f32 %v669, 1.442695
        %v722 = vpow.pop %v721
        %v723 = vmul.f32 %v670, 1.442695
        %v724 = vpow.pop %v723
        %v725 = vmul.f32 %v671, 1.442695
        %v726 = vpow.pop %v725
        %v727 = vmul.f32 %v672, 1.442695
        %v728 = vpow.pop %v727
        %v729 = vmul.f32 %v673, 1.442695
        %v730 = vpow.pop %v729
        %v731 = vmul.f32 %v674, 1.442695
        %v732 = vpow.pop %v731
        %v733 = vmul.f32 %v675, 1.442695
        %v734 = vpow.pop %v733
        %v735 = vmul.f32 %v676, 1.442695
        %v736 = vpow.pop %v735
        %v737 = vmul.f32 %v677, 1.442695
        %v738 = vpow.pop %v737
        %v739 = vmul.f32 %v678, 1.442695
        %v740 = vpow.pop %v739
        %v741 = vmul.f32 %v679, 1.442695
        %v742 = vpow.pop %v741
        %v743 = vmul.f32 %v680, 1.442695
        %v744 = vpow.pop %v743
        %v745 = vadd.f32 %v682, 1.0
        %v746 = vadd.f32 %v684, 1.0
        %v747 = vadd.f32 %v686, 1.0
        %v748 = vadd.f32 %v688, 1.0
        %v749 = vadd.f32 %v690, 1.0
        %v750 = vadd.f32 %v692, 1.0
        %v751 = vadd.f32 %v694, 1.0
        %v752 = vadd.f32 %v696, 1.0
        %v753 = vadd.f32 %v698, 1.0
        %v754 = vadd.f32 %v700, 1.0
        %v755 = vadd.f32 %v702, 1.0
        %v756 = vadd.f32 %v704, 1.0
        %v757 = vadd.f32 %v706, 1.0
        %v758 = vadd.f32 %v708, 1.0
        %v759 = vadd.f32 %v710, 1.0
        %v760 = vadd.f32 %v712, 1.0
        %v761 = vadd.f32 %v714, 1.0
        %v762 = vadd.f32 %v716, 1.0
        %v763 = vadd.f32 %v718, 1.0
        %v764 = vadd.f32 %v720, 1.0
        %v765 = vadd.f32 %v722, 1.0
        %v766 = vadd.f32 %v724, 1.0
        %v767 = vadd.f32 %v726, 1.0
        %v768 = vadd.f32 %v728, 1.0
        %v769 = vadd.f32 %v730, 1.0
        %v770 = vadd.f32 %v732, 1.0
        %v771 = vadd.f32 %v734, 1.0
        %v772 = vadd.f32 %v736, 1.0
        %v773 = vadd.f32 %v738, 1.0
        %v774 = vadd.f32 %v740, 1.0
        %v775 = vadd.f32 %v742, 1.0
        %v776 = vadd.f32 %v744, 1.0
        %v777 = vrcp.pop %v745
        %v778 = vmul.f32 1.0, %v777
        %v779 = vrcp.pop %v746
        %v780 = vmul.f32 1.0, %v779
        %v781 = vrcp.pop %v747
        %v782 = vmul.f32 1.0, %v781
        %v783 = vrcp.pop %v748
        %v784 = vmul.f32 1.0, %v783
        %v785 = vrcp.pop %v749
        %v786 = vmul.f32 1.0, %v785
        %v787 = vrcp.pop %v750
        %v788 = vmul.f32 1.0, %v787
        %v789 = vrcp.pop %v751
        %v790 = vmul.f32 1.0, %v789
        %v791 = vrcp.pop %v752
        %v792 = vmul.f32 1.0, %v791
        %v793 = vrcp.pop %v753
        %v794 = vmul.f32 1.0, %v793
        %v795 = vrcp.pop %v754
        %v796 = vmul.f32 1.0, %v795
        %v797 = vrcp.pop %v755
        %v798 = vmul.f32 1.0, %v797
        %v799 = vrcp.pop %v756
        %v800 = vmul.f32 1.0, %v799
        %v801 = vrcp.pop %v757
        %v802 = vmul.f32 1.0, %v801
        %v803 = vrcp.pop %v758
        %v804 = vmul.f32 1.0, %v803
        %v805 = vrcp.pop %v759
        %v806 = vmul.f32 1.0, %v805
        %v807 = vrcp.pop %v760
        %v808 = vmul.f32 1.0, %v807
        %v809 = vrcp.pop %v761
        %v810 = vmul.f32 1.0, %v809
        %v811 = vrcp.pop %v762
        %v812 = vmul.f32 1.0, %v811
        %v813 = vrcp.pop %v763
        %v814 = vmul.f32 1.0, %v813
        %v815 = vrcp.pop %v764
        %v816 = vmul.f32 1.0, %v815
        %v817 = vrcp.pop %v765
        %v818 = vmul.f32 1.0, %v817
        %v819 = vrcp.pop %v766
        %v820 = vmul.f32 1.0, %v819
        %v821 = vrcp.pop %v767
        %v822 = vmul.f32 1.0, %v821
        %v823 = vrcp.pop %v768
        %v824 = vmul.f32 1.0, %v823
        %v825 = vrcp.pop %v769
        %v826 = vmul.f32 1.0, %v825
        %v827 = vrcp.pop %v770
        %v828 = vmul.f32 1.0, %v827
        %v829 = vrcp.pop %v771
        %v830 = vmul.f32 1.0, %v829
        %v831 = vrcp.pop %v772
        %v832 = vmul.f32 1.0, %v831
        %v833 = vrcp.pop %v773
        %v834 = vmul.f32 1.0, %v833
        %v835 = vrcp.pop %v774
        %v836 = vmul.f32 1.0, %v835
        %v837 = vrcp.pop %v775
        %v838 = vmul.f32 1.0, %v837
        %v839 = vrcp.pop %v776
        %v840 = vmul.f32 1.0, %v839
        %v841 = vmul.f32 %v491, %v778
        %v842 = vmul.f32 %v496, %v780
        %v843 = vmul.f32 %v501, %v782
        %v844 = vmul.f32 %v506, %v784
        %v845 = vmul.f32 %v511, %v786
        %v846 = vmul.f32 %v516, %v788
        %v847 = vmul.f32 %v521, %v790
        %v848 = vmul.f32 %v526, %v792
        %v849 = vmul.f32 %v531, %v794
        %v850 = vmul.f32 %v536, %v796
        %v851 = vmul.f32 %v541, %v798
        %v852 = vmul.f32 %v546, %v800
        %v853 = vmul.f32 %v551, %v802
        %v854 = vmul.f32 %v556, %v804
        %v855 = vmul.f32 %v561, %v806
        %v856 = vmul.f32 %v566, %v808
        %v857 = vmul.f32 %v571, %v810
        %v858 = vmul.f32 %v576, %v812
        %v859 = vmul.f32 %v581, %v814
        %v860 = vmul.f32 %v586, %v816
        %v861 = vmul.f32 %v591, %v818
        %v862 = vmul.f32 %v596, %v820
        %v863 = vmul.f32 %v601, %v822
        %v864 = vmul.f32 %v606, %v824
        %v865 = vmul.f32 %v611, %v826
        %v866 = vmul.f32 %v616, %v828
        %v867 = vmul.f32 %v621, %v830
        %v868 = vmul.f32 %v626, %v832
        %v869 = vmul.f32 %v631, %v834
        %v870 = vmul.f32 %v636, %v836
        %v871 = vmul.f32 %v641, %v838
        %v872 = vmul.f32 %v646, %v840
        %v873 = vld [vmem:[%s3] sm:$0xff]
        %v874 = vld [vmem:[%s3 + $0x8] sm:$0xff]
        %v875 = vld [vmem:[%s3 + $0x10] sm:$0xff]
        %v876 = vld [vmem:[%s3 + $0x18] sm:$0xff]
        %v877 = vld [vmem:[%s3 + $0x20] sm:$0xff]
        %v878 = vld [vmem:[%s3 + $0x28] sm:$0xff]
        %v879 = vld [vmem:[%s3 + $0x30] sm:$0xff]
        %v880 = vld [vmem:[%s3 + $0x38] sm:$0xff]
        %v881 = vld [vmem:[%s3 + $0x40] sm:$0xff]
        %v882 = vld [vmem:[%s3 + $0x48] sm:$0xff]
        %v883 = vld [vmem:[%s3 + $0x50] sm:$0xff]
        %v884 = vld [vmem:[%s3 + $0x58] sm:$0xff]
        %v885 = vld [vmem:[%s3 + $0x60] sm:$0xff]
        %v886 = vld [vmem:[%s3 + $0x68] sm:$0xff]
        %v887 = vld [vmem:[%s3 + $0x70] sm:$0xff]
        %v888 = vld [vmem:[%s3 + $0x78] sm:$0xff]
        %v889 = vld [vmem:[%s4] sm:$0x1]
        %v891 = vlaneseq
        %v892 = vshrl.u32 %v891, 7
        %v893 = vsub.s32 0, %v892
        %v894 = vrot.slane %v889, %v893
        %896 = vmatprep.subr.mxu0 0.0
        %897 = vmatpush1.msra.mxu0 %v873
        %898 = vmatprep.subr.mxu0 0.0
        %899 = vmatpush1.msra.mxu0 %v874
        %900 = vmatprep.subr.mxu0 0.0
        %901 = vmatpush1.msra.mxu0 %v875
        %902 = vmatprep.subr.mxu0 0.0
        %903 = vmatpush1.msra.mxu0 %v876
        %904 = vmatprep.subr.mxu0 0.0
        %905 = vmatpush1.msra.mxu0 %v877
        %906 = vmatprep.subr.mxu0 0.0
        %907 = vmatpush1.msra.mxu0 %v878
        %908 = vmatprep.subr.mxu0 0.0
        %909 = vmatpush1.msra.mxu0 %v879
        %910 = vmatprep.subr.mxu0 0.0
        %911 = vmatpush1.msra.mxu0 %v880
        %912 = vmatprep.subr.mxu0 0.0
        %913 = vmatpush1.msra.mxu0 %v881
        %914 = vmatprep.subr.mxu0 0.0
        %915 = vmatpush1.msra.mxu0 %v882
        %916 = vmatprep.subr.mxu0 0.0
        %917 = vmatpush1.msra.mxu0 %v883
        %918 = vmatprep.subr.mxu0 0.0
        %919 = vmatpush1.msra.mxu0 %v884
        %920 = vmatprep.subr.mxu0 0.0
        %921 = vmatpush1.msra.mxu0 %v885
        %922 = vmatprep.subr.mxu0 0.0
        %923 = vmatpush1.msra.mxu0 %v886
        %924 = vmatprep.subr.mxu0 0.0
        %925 = vmatpush1.msra.mxu0 %v887
        %926 = vmatprep.subr.mxu0 0.0
        %927 = vmatpush1.msra.mxu0 %v888
        %928 = vmatprep.subr.mxu0 0.0
        %929 = vmatpush1.msra.mxu0 0.0
        %930 = vmatprep.subr.mxu0 0.0
        %931 = vmatpush1.msra.mxu0 0.0
        %932 = vmatprep.subr.mxu0 0.0
        %933 = vmatpush1.msra.mxu0 0.0
        %934 = vmatprep.subr.mxu0 0.0
        %935 = vmatpush1.msra.mxu0 0.0
        %936 = vmatprep.subr.mxu0 0.0
        %937 = vmatpush1.msra.mxu0 0.0
        %938 = vmatprep.subr.mxu0 0.0
        %939 = vmatpush1.msra.mxu0 0.0
        %940 = vmatprep.subr.mxu0 0.0
        %941 = vmatpush1.msra.mxu0 0.0
        %942 = vmatprep.subr.mxu0 0.0
        %943 = vmatpush1.msra.mxu0 0.0
        %944 = vmatprep.subr.mxu0 0.0
        %945 = vmatpush1.msra.mxu0 0.0
        %946 = vmatprep.subr.mxu0 0.0
        %947 = vmatpush1.msra.mxu0 0.0
        %948 = vmatprep.subr.mxu0 0.0
        %949 = vmatpush1.msra.mxu0 0.0
        %950 = vmatprep.subr.mxu0 0.0
        %951 = vmatpush1.msra.mxu0 0.0
        %952 = vmatprep.subr.mxu0 0.0
        %953 = vmatpush1.msra.mxu0 0.0
        %954 = vmatprep.subr.mxu0 0.0
        %955 = vmatpush1.msra.mxu0 0.0
        %956 = vmatprep.subr.mxu0 0.0
        %957 = vmatpush1.msra.mxu0 0.0
        %958 = vmatprep.subr.mxu0 0.0
        %959 = vmatpush1.msra.mxu0 0.0
        %960 = vmatprep.mubr.f32.mxu0 0.0
        %961 = vmatmul.mubr.f32.gmra.mrb[0].mxu0 %v841
        %v962 = vpop.f32.mrb[0].mxu0
        %v963 = vadd.f32 %v894, %v962
        %v964 = vpop.f32.mrb[0].mxu0
        %965 = vmatprep.mubr.f32.mxu0 0.0
        %966 = vmatmul.mubr.f32.gmra.mrb[0].mxu0 %v842
        %v967 = vpop.f32.mrb[0].mxu0
        %v968 = vadd.f32 %v894, %v967
        %v969 = vpop.f32.mrb[0].mxu0
        %970 = vmatprep.mubr.f32.mxu0 0.0
        %971 = vmatmul.mubr.f32.gmra.mrb[0].mxu0 %v843
        %v972 = vpop.f32.mrb[0].mxu0
        %v973 = vadd.f32 %v894, %v972
        %v974 = vpop.f32.mrb[0].mxu0
        %975 = vmatprep.mubr.f32.mxu0 0.0
        %976 = vmatmul.mubr.f32.gmra.mrb[0].mxu0 %v844
        %v977 = vpop.f32.mrb[0].mxu0
        %v978 = vadd.f32 %v894, %v977
        %v979 = vpop.f32.mrb[0].mxu0
        %980 = vmatprep.mubr.f32.mxu0 0.0
        %981 = vmatmul.mubr.f32.gmra.mrb[0].mxu0 %v845
        %v982 = vpop.f32.mrb[0].mxu0
        %v983 = vadd.f32 %v894, %v982
        %v984 = vpop.f32.mrb[0].mxu0
        %985 = vmatprep.mubr.f32.mxu0 0.0
        %986 = vmatmul.mubr.f32.gmra.mrb[0].mxu0 %v846
        %v987 = vpop.f32.mrb[0].mxu0
        %v988 = vadd.f32 %v894, %v987
        %v989 = vpop.f32.mrb[0].mxu0
        %990 = vmatprep.mubr.f32.mxu0 0.0
        %991 = vmatmul.mubr.f32.gmra.mrb[0].mxu0 %v847
        %v992 = vpop.f32.mrb[0].mxu0
        %v993 = vadd.f32 %v894, %v992
        %v994 = vpop.f32.mrb[0].mxu0
        %995 = vmatprep.mubr.f32.mxu0 0.0
        %996 = vmatmul.mubr.f32.gmra.mrb[0].mxu0 %v848
        %v997 = vpop.f32.mrb[0].mxu0
        %v998 = vadd.f32 %v894, %v997
        %v999 = vpop.f32.mrb[0].mxu0
        %1000 = vmatprep.mubr.f32.mxu0 0.0
        %1001 = vmatmul.mubr.f32.gmra.mrb[0].mxu0 %v849
        %v1002 = vpop.f32.mrb[0].mxu0
        %v1003 = vadd.f32 %v894, %v1002
        %v1004 = vpop.f32.mrb[0].mxu0
        %1005 = vmatprep.mubr.f32.mxu0 0.0
        %1006 = vmatmul.mubr.f32.gmra.mrb[0].mxu0 %v850
        %v1007 = vpop.f32.mrb[0].mxu0
        %v1008 = vadd.f32 %v894, %v1007
        %v1009 = vpop.f32.mrb[0].mxu0
        %1010 = vmatprep.mubr.f32.mxu0 0.0
        %1011 = vmatmul.mubr.f32.gmra.mrb[0].mxu0 %v851
        %v1012 = vpop.f32.mrb[0].mxu0
        %v1013 = vadd.f32 %v894, %v1012
        %v1014 = vpop.f32.mrb[0].mxu0
        %1015 = vmatprep.mubr.f32.mxu0 0.0
        %1016 = vmatmul.mubr.f32.gmra.mrb[0].mxu0 %v852
        %v1017 = vpop.f32.mrb[0].mxu0
        %v1018 = vadd.f32 %v894, %v1017
        %v1019 = vpop.f32.mrb[0].mxu0
        %1020 = vmatprep.mubr.f32.mxu0 0.0
        %1021 = vmatmul.mubr.f32.gmra.mrb[0].mxu0 %v853
        %v1022 = vpop.f32.mrb[0].mxu0
        %v1023 = vadd.f32 %v894, %v1022
        %v1024 = vpop.f32.mrb[0].mxu0
        %1025 = vmatprep.mubr.f32.mxu0 0.0
        %1026 = vmatmul.mubr.f32.gmra.mrb[0].mxu0 %v854
        %v1027 = vpop.f32.mrb[0].mxu0
        %v1028 = vadd.f32 %v894, %v1027
        %v1029 = vpop.f32.mrb[0].mxu0
        %1030 = vmatprep.mubr.f32.mxu0 0.0
        %1031 = vmatmul.mubr.f32.gmra.mrb[0].mxu0 %v855
        %v1032 = vpop.f32.mrb[0].mxu0
        %v1033 = vadd.f32 %v894, %v1032
        %v1034 = vpop.f32.mrb[0].mxu0
        %1035 = vmatprep.mubr.f32.mxu0 0.0
        %1036 = vmatmul.mubr.f32.gmra.mrb[0].mxu0 %v856
        %v1037 = vpop.f32.mrb[0].mxu0
        %v1038 = vadd.f32 %v894, %v1037
        %v1039 = vpop.f32.mrb[0].mxu0
        %1040 = vmatprep.mubr.f32.mxu0 0.0
        %1041 = vmatmul.mubr.f32.gmra.mrb[0].mxu0 %v857
        %v1042 = vpop.f32.mrb[0].mxu0
        %v1043 = vadd.f32 %v894, %v1042
        %v1044 = vpop.f32.mrb[0].mxu0
        %1045 = vmatprep.mubr.f32.mxu0 0.0
        %1046 = vmatmul.mubr.f32.gmra.mrb[0].mxu0 %v858
        %v1047 = vpop.f32.mrb[0].mxu0
        %v1048 = vadd.f32 %v894, %v1047
        %v1049 = vpop.f32.mrb[0].mxu0
        %1050 = vmatprep.mubr.f32.mxu0 0.0
        %1051 = vmatmul.mubr.f32.gmra.mrb[0].mxu0 %v859
        %v1052 = vpop.f32.mrb[0].mxu0
        %v1053 = vadd.f32 %v894, %v1052
        %v1054 = vpop.f32.mrb[0].mxu0
        %1055 = vmatprep.mubr.f32.mxu0 0.0
        %1056 = vmatmul.mubr.f32.gmra.mrb[0].mxu0 %v860
        %v1057 = vpop.f32.mrb[0].mxu0
        %v1058 = vadd.f32 %v894, %v1057
        %v1059 = vpop.f32.mrb[0].mxu0
        %1060 = vmatprep.mubr.f32.mxu0 0.0
        %1061 = vmatmul.mubr.f32.gmra.mrb[0].mxu0 %v861
        %v1062 = vpop.f32.mrb[0].mxu0
        %v1063 = vadd.f32 %v894, %v1062
        %v1064 = vpop.f32.mrb[0].mxu0
        %1065 = vmatprep.mubr.f32.mxu0 0.0
        %1066 = vmatmul.mubr.f32.gmra.mrb[0].mxu0 %v862
        %v1067 = vpop.f32.mrb[0].mxu0
        %v1068 = vadd.f32 %v894, %v1067
        %v1069 = vpop.f32.mrb[0].mxu0
        %1070 = vmatprep.mubr.f32.mxu0 0.0
        %1071 = vmatmul.mubr.f32.gmra.mrb[0].mxu0 %v863
        %v1072 = vpop.f32.mrb[0].mxu0
        %v1073 = vadd.f32 %v894, %v1072
        %v1074 = vpop.f32.mrb[0].mxu0
        %1075 = vmatprep.mubr.f32.mxu0 0.0
        %1076 = vmatmul.mubr.f32.gmra.mrb[0].mxu0 %v864
        %v1077 = vpop.f32.mrb[0].mxu0
        %v1078 = vadd.f32 %v894, %v1077
        %v1079 = vpop.f32.mrb[0].mxu0
        %1080 = vmatprep.mubr.f32.mxu0 0.0
        %1081 = vmatmul.mubr.f32.gmra.mrb[0].mxu0 %v865
        %v1082 = vpop.f32.mrb[0].mxu0
        %v1083 = vadd.f32 %v894, %v1082
        %v1084 = vpop.f32.mrb[0].mxu0
        %1085 = vmatprep.mubr.f32.mxu0 0.0
        %1086 = vmatmul.mubr.f32.gmra.mrb[0].mxu0 %v866
        %v1087 = vpop.f32.mrb[0].mxu0
        %v1088 = vadd.f32 %v894, %v1087
        %v1089 = vpop.f32.mrb[0].mxu0
        %1090 = vmatprep.mubr.f32.mxu0 0.0
        %1091 = vmatmul.mubr.f32.gmra.mrb[0].mxu0 %v867
        %v1092 = vpop.f32.mrb[0].mxu0
        %v1093 = vadd.f32 %v894, %v1092
        %v1094 = vpop.f32.mrb[0].mxu0
        %1095 = vmatprep.mubr.f32.mxu0 0.0
        %1096 = vmatmul.mubr.f32.gmra.mrb[0].mxu0 %v868
        %v1097 = vpop.f32.mrb[0].mxu0
        %v1098 = vadd.f32 %v894, %v1097
        %v1099 = vpop.f32.mrb[0].mxu0
        %1100 = vmatprep.mubr.f32.mxu0 0.0
        %1101 = vmatmul.mubr.f32.gmra.mrb[0].mxu0 %v869
        %v1102 = vpop.f32.mrb[0].mxu0
        %v1103 = vadd.f32 %v894, %v1102
        %v1104 = vpop.f32.mrb[0].mxu0
        %1105 = vmatprep.mubr.f32.mxu0 0.0
        %1106 = vmatmul.mubr.f32.gmra.mrb[0].mxu0 %v870
        %v1107 = vpop.f32.mrb[0].mxu0
        %v1108 = vadd.f32 %v894, %v1107
        %v1109 = vpop.f32.mrb[0].mxu0
        %1110 = vmatprep.mubr.f32.mxu0 0.0
        %1111 = vmatmul.mubr.f32.gmra.mrb[0].mxu0 %v871
        %v1112 = vpop.f32.mrb[0].mxu0
        %v1113 = vadd.f32 %v894, %v1112
        %v1114 = vpop.f32.mrb[0].mxu0
        %1115 = vmatprep.mubr.f32.mxu0 0.0
        %1116 = vmatmul.mubr.f32.gmra.mrb[0].mxu0 %v872
        %v1117 = vpop.f32.mrb[0].mxu0
        %v1118 = vadd.f32 %v894, %v1117
        %v1119 = vpop.f32.mrb[0].mxu0
        %1120 = vdwg.mxu0
        %v1121 = vxor.u32 %v963, 2147483648
        %v1122 = vxor.u32 %v968, 2147483648
        %v1123 = vxor.u32 %v973, 2147483648
        %v1124 = vxor.u32 %v978, 2147483648
        %v1125 = vxor.u32 %v983, 2147483648
        %v1126 = vxor.u32 %v988, 2147483648
        %v1127 = vxor.u32 %v993, 2147483648
        %v1128 = vxor.u32 %v998, 2147483648
        %v1129 = vxor.u32 %v1003, 2147483648
        %v1130 = vxor.u32 %v1008, 2147483648
        %v1131 = vxor.u32 %v1013, 2147483648
        %v1132 = vxor.u32 %v1018, 2147483648
        %v1133 = vxor.u32 %v1023, 2147483648
        %v1134 = vxor.u32 %v1028, 2147483648
        %v1135 = vxor.u32 %v1033, 2147483648
        %v1136 = vxor.u32 %v1038, 2147483648
        %v1137 = vxor.u32 %v1043, 2147483648
        %v1138 = vxor.u32 %v1048, 2147483648
        %v1139 = vxor.u32 %v1053, 2147483648
        %v1140 = vxor.u32 %v1058, 2147483648
        %v1141 = vxor.u32 %v1063, 2147483648
        %v1142 = vxor.u32 %v1068, 2147483648
        %v1143 = vxor.u32 %v1073, 2147483648
        %v1144 = vxor.u32 %v1078, 2147483648
        %v1145 = vxor.u32 %v1083, 2147483648
        %v1146 = vxor.u32 %v1088, 2147483648
        %v1147 = vxor.u32 %v1093, 2147483648
        %v1148 = vxor.u32 %v1098, 2147483648
        %v1149 = vxor.u32 %v1103, 2147483648
        %v1150 = vxor.u32 %v1108, 2147483648
        %v1151 = vxor.u32 %v1113, 2147483648
        %v1152 = vxor.u32 %v1118, 2147483648
        %v1153 = vmul.f32 %v1121, 1.442695
        %v1154 = vpow.pop %v1153
        %v1155 = vmul.f32 %v1122, 1.442695
        %v1156 = vpow.pop %v1155
        %v1157 = vmul.f32 %v1123, 1.442695
        %v1158 = vpow.pop %v1157
        %v1159 = vmul.f32 %v1124, 1.442695
        %v1160 = vpow.pop %v1159
        %v1161 = vmul.f32 %v1125, 1.442695
        %v1162 = vpow.pop %v1161
        %v1163 = vmul.f32 %v1126, 1.442695
        %v1164 = vpow.pop %v1163
        %v1165 = vmul.f32 %v1127, 1.442695
        %v1166 = vpow.pop %v1165
        %v1167 = vmul.f32 %v1128, 1.442695
        %v1168 = vpow.pop %v1167
        %v1169 = vmul.f32 %v1129, 1.442695
        %v1170 = vpow.pop %v1169
        %v1171 = vmul.f32 %v1130, 1.442695
        %v1172 = vpow.pop %v1171
        %v1173 = vmul.f32 %v1131, 1.442695
        %v1174 = vpow.pop %v1173
        %v1175 = vmul.f32 %v1132, 1.442695
        %v1176 = vpow.pop %v1175
        %v1177 = vmul.f32 %v1133, 1.442695
        %v1178 = vpow.pop %v1177
        %v1179 = vmul.f32 %v1134, 1.442695
        %v1180 = vpow.pop %v1179
        %v1181 = vmul.f32 %v1135, 1.442695
        %v1182 = vpow.pop %v1181
        %v1183 = vmul.f32 %v1136, 1.442695
        %v1184 = vpow.pop %v1183
        %v1185 = vmul.f32 %v1137, 1.442695
        %v1186 = vpow.pop %v1185
        %v1187 = vmul.f32 %v1138, 1.442695
        %v1188 = vpow.pop %v1187
        %v1189 = vmul.f32 %v1139, 1.442695
        %v1190 = vpow.pop %v1189
        %v1191 = vmul.f32 %v1140, 1.442695
        %v1192 = vpow.pop %v1191
        %v1193 = vmul.f32 %v1141, 1.442695
        %v1194 = vpow.pop %v1193
        %v1195 = vmul.f32 %v1142, 1.442695
        %v1196 = vpow.pop %v1195
        %v1197 = vmul.f32 %v1143, 1.442695
        %v1198 = vpow.pop %v1197
        %v1199 = vmul.f32 %v1144, 1.442695
        %v1200 = vpow.pop %v1199
        %v1201 = vmul.f32 %v1145, 1.442695
        %v1202 = vpow.pop %v1201
        %v1203 = vmul.f32 %v1146, 1.442695
        %v1204 = vpow.pop %v1203
        %v1205 = vmul.f32 %v1147, 1.442695
        %v1206 = vpow.pop %v1205
        %v1207 = vmul.f32 %v1148, 1.442695
        %v1208 = vpow.pop %v1207
        %v1209 = vmul.f32 %v1149, 1.442695
        %v1210 = vpow.pop %v1209
        %v1211 = vmul.f32 %v1150, 1.442695
        %v1212 = vpow.pop %v1211
        %v1213 = vmul.f32 %v1151, 1.442695
        %v1214 = vpow.pop %v1213
        %v1215 = vmul.f32 %v1152, 1.442695
        %v1216 = vpow.pop %v1215
        %v1217 = vadd.f32 %v1154, 1.0
        %v1218 = vadd.f32 %v1156, 1.0
        %v1219 = vadd.f32 %v1158, 1.0
        %v1220 = vadd.f32 %v1160, 1.0
        %v1221 = vadd.f32 %v1162, 1.0
        %v1222 = vadd.f32 %v1164, 1.0
        %v1223 = vadd.f32 %v1166, 1.0
        %v1224 = vadd.f32 %v1168, 1.0
        %v1225 = vadd.f32 %v1170, 1.0
        %v1226 = vadd.f32 %v1172, 1.0
        %v1227 = vadd.f32 %v1174, 1.0
        %v1228 = vadd.f32 %v1176, 1.0
        %v1229 = vadd.f32 %v1178, 1.0
        %v1230 = vadd.f32 %v1180, 1.0
        %v1231 = vadd.f32 %v1182, 1.0
        %v1232 = vadd.f32 %v1184, 1.0
        %v1233 = vadd.f32 %v1186, 1.0
        %v1234 = vadd.f32 %v1188, 1.0
        %v1235 = vadd.f32 %v1190, 1.0
        %v1236 = vadd.f32 %v1192, 1.0
        %v1237 = vadd.f32 %v1194, 1.0
        %v1238 = vadd.f32 %v1196, 1.0
        %v1239 = vadd.f32 %v1198, 1.0
        %v1240 = vadd.f32 %v1200, 1.0
        %v1241 = vadd.f32 %v1202, 1.0
        %v1242 = vadd.f32 %v1204, 1.0
        %v1243 = vadd.f32 %v1206, 1.0
        %v1244 = vadd.f32 %v1208, 1.0
        %v1245 = vadd.f32 %v1210, 1.0
        %v1246 = vadd.f32 %v1212, 1.0
        %v1247 = vadd.f32 %v1214, 1.0
        %v1248 = vadd.f32 %v1216, 1.0
        %v1249 = vrcp.pop %v1217
        %v1250 = vmul.f32 1.0, %v1249
        %v1251 = vrcp.pop %v1218
        %v1252 = vmul.f32 1.0, %v1251
        %v1253 = vrcp.pop %v1219
        %v1254 = vmul.f32 1.0, %v1253
        %v1255 = vrcp.pop %v1220
        %v1256 = vmul.f32 1.0, %v1255
        %v1257 = vrcp.pop %v1221
        %v1258 = vmul.f32 1.0, %v1257
        %v1259 = vrcp.pop %v1222
        %v1260 = vmul.f32 1.0, %v1259
        %v1261 = vrcp.pop %v1223
        %v1262 = vmul.f32 1.0, %v1261
        %v1263 = vrcp.pop %v1224
        %v1264 = vmul.f32 1.0, %v1263
        %v1265 = vrcp.pop %v1225
        %v1266 = vmul.f32 1.0, %v1265
        %v1267 = vrcp.pop %v1226
        %v1268 = vmul.f32 1.0, %v1267
        %v1269 = vrcp.pop %v1227
        %v1270 = vmul.f32 1.0, %v1269
        %v1271 = vrcp.pop %v1228
        %v1272 = vmul.f32 1.0, %v1271
        %v1273 = vrcp.pop %v1229
        %v1274 = vmul.f32 1.0, %v1273
        %v1275 = vrcp.pop %v1230
        %v1276 = vmul.f32 1.0, %v1275
        %v1277 = vrcp.pop %v1231
        %v1278 = vmul.f32 1.0, %v1277
        %v1279 = vrcp.pop %v1232
        %v1280 = vmul.f32 1.0, %v1279
        %v1281 = vrcp.pop %v1233
        %v1282 = vmul.f32 1.0, %v1281
        %v1283 = vrcp.pop %v1234
        %v1284 = vmul.f32 1.0, %v1283
        %v1285 = vrcp.pop %v1235
        %v1286 = vmul.f32 1.0, %v1285
        %v1287 = vrcp.pop %v1236
        %v1288 = vmul.f32 1.0, %v1287
        %v1289 = vrcp.pop %v1237
        %v1290 = vmul.f32 1.0, %v1289
        %v1291 = vrcp.pop %v1238
        %v1292 = vmul.f32 1.0, %v1291
        %v1293 = vrcp.pop %v1239
        %v1294 = vmul.f32 1.0, %v1293
        %v1295 = vrcp.pop %v1240
        %v1296 = vmul.f32 1.0, %v1295
        %v1297 = vrcp.pop %v1241
        %v1298 = vmul.f32 1.0, %v1297
        %v1299 = vrcp.pop %v1242
        %v1300 = vmul.f32 1.0, %v1299
        %v1301 = vrcp.pop %v1243
        %v1302 = vmul.f32 1.0, %v1301
        %v1303 = vrcp.pop %v1244
        %v1304 = vmul.f32 1.0, %v1303
        %v1305 = vrcp.pop %v1245
        %v1306 = vmul.f32 1.0, %v1305
        %v1307 = vrcp.pop %v1246
        %v1308 = vmul.f32 1.0, %v1307
        %v1309 = vrcp.pop %v1247
        %v1310 = vmul.f32 1.0, %v1309
        %v1311 = vrcp.pop %v1248
        %v1312 = vmul.f32 1.0, %v1311
        %v1313 = vmul.f32 %v963, %v1250
        %v1314 = vmul.f32 %v968, %v1252
        %v1315 = vmul.f32 %v973, %v1254
        %v1316 = vmul.f32 %v978, %v1256
        %v1317 = vmul.f32 %v983, %v1258
        %v1318 = vmul.f32 %v988, %v1260
        %v1319 = vmul.f32 %v993, %v1262
        %v1320 = vmul.f32 %v998, %v1264
        %v1321 = vmul.f32 %v1003, %v1266
        %v1322 = vmul.f32 %v1008, %v1268
        %v1323 = vmul.f32 %v1013, %v1270
        %v1324 = vmul.f32 %v1018, %v1272
        %v1325 = vmul.f32 %v1023, %v1274
        %v1326 = vmul.f32 %v1028, %v1276
        %v1327 = vmul.f32 %v1033, %v1278
        %v1328 = vmul.f32 %v1038, %v1280
        %v1329 = vmul.f32 %v1043, %v1282
        %v1330 = vmul.f32 %v1048, %v1284
        %v1331 = vmul.f32 %v1053, %v1286
        %v1332 = vmul.f32 %v1058, %v1288
        %v1333 = vmul.f32 %v1063, %v1290
        %v1334 = vmul.f32 %v1068, %v1292
        %v1335 = vmul.f32 %v1073, %v1294
        %v1336 = vmul.f32 %v1078, %v1296
        %v1337 = vmul.f32 %v1083, %v1298
        %v1338 = vmul.f32 %v1088, %v1300
        %v1339 = vmul.f32 %v1093, %v1302
        %v1340 = vmul.f32 %v1098, %v1304
        %v1341 = vmul.f32 %v1103, %v1306
        %v1342 = vmul.f32 %v1108, %v1308
        %v1343 = vmul.f32 %v1113, %v1310
        %v1344 = vmul.f32 %v1118, %v1312
        %v1345 = vld [vmem:[%s5] sm:$0xff]
        %v1346 = vld [vmem:[%s5 + $0x8] sm:$0xff]
        %v1347 = vld [vmem:[%s5 + $0x10] sm:$0xff]
        %v1348 = vld [vmem:[%s5 + $0x18] sm:$0xff]
        %v1349 = vld [vmem:[%s5 + $0x20] sm:$0xff]
        %v1350 = vld [vmem:[%s5 + $0x28] sm:$0xff]
        %v1351 = vld [vmem:[%s5 + $0x30] sm:$0xff]
        %v1352 = vld [vmem:[%s5 + $0x38] sm:$0xff]
        %v1353 = vld [vmem:[%s5 + $0x40] sm:$0xff]
        %v1354 = vld [vmem:[%s5 + $0x48] sm:$0xff]
        %v1355 = vld [vmem:[%s5 + $0x50] sm:$0xff]
        %v1356 = vld [vmem:[%s5 + $0x58] sm:$0xff]
        %v1357 = vld [vmem:[%s5 + $0x60] sm:$0xff]
        %v1358 = vld [vmem:[%s5 + $0x68] sm:$0xff]
        %v1359 = vld [vmem:[%s5 + $0x70] sm:$0xff]
        %v1360 = vld [vmem:[%s5 + $0x78] sm:$0xff]
        %v1361 = vld [vmem:[%s6] sm:$0x1]
        %v1363 = vlaneseq
        %v1364 = vshrl.u32 %v1363, 7
        %v1365 = vsub.s32 0, %v1364
        %v1366 = vrot.slane %v1361, %v1365
        %1368 = vmatprep.subr.mxu0 0.0
        %1369 = vmatpush1.msra.mxu0 %v1345
        %1370 = vmatprep.subr.mxu0 0.0
        %1371 = vmatpush1.msra.mxu0 %v1346
        %1372 = vmatprep.subr.mxu0 0.0
        %1373 = vmatpush1.msra.mxu0 %v1347
        %1374 = vmatprep.subr.mxu0 0.0
        %1375 = vmatpush1.msra.mxu0 %v1348
        %1376 = vmatprep.subr.mxu0 0.0
        %1377 = vmatpush1.msra.mxu0 %v1349
        %1378 = vmatprep.subr.mxu0 0.0
        %1379 = vmatpush1.msra.mxu0 %v1350
        %1380 = vmatprep.subr.mxu0 0.0
        %1381 = vmatpush1.msra.mxu0 %v1351
        %1382 = vmatprep.subr.mxu0 0.0
        %1383 = vmatpush1.msra.mxu0 %v1352
        %1384 = vmatprep.subr.mxu0 0.0
        %1385 = vmatpush1.msra.mxu0 %v1353
        %1386 = vmatprep.subr.mxu0 0.0
        %1387 = vmatpush1.msra.mxu0 %v1354
        %1388 = vmatprep.subr.mxu0 0.0
        %1389 = vmatpush1.msra.mxu0 %v1355
        %1390 = vmatprep.subr.mxu0 0.0
        %1391 = vmatpush1.msra.mxu0 %v1356
        %1392 = vmatprep.subr.mxu0 0.0
        %1393 = vmatpush1.msra.mxu0 %v1357
        %1394 = vmatprep.subr.mxu0 0.0
        %1395 = vmatpush1.msra.mxu0 %v1358
        %1396 = vmatprep.subr.mxu0 0.0
        %1397 = vmatpush1.msra.mxu0 %v1359
        %1398 = vmatprep.subr.mxu0 0.0
        %1399 = vmatpush1.msra.mxu0 %v1360
        %1400 = vmatprep.subr.mxu0 0.0
        %1401 = vmatpush1.msra.mxu0 0.0
        %1402 = vmatprep.subr.mxu0 0.0
        %1403 = vmatpush1.msra.mxu0 0.0
        %1404 = vmatprep.subr.mxu0 0.0
        %1405 = vmatpush1.msra.mxu0 0.0
        %1406 = vmatprep.subr.mxu0 0.0
        %1407 = vmatpush1.msra.mxu0 0.0
        %1408 = vmatprep.subr.mxu0 0.0
        %1409 = vmatpush1.msra.mxu0 0.0
        %1410 = vmatprep.subr.mxu0 0.0
        %1411 = vmatpush1.msra.mxu0 0.0
        %1412 = vmatprep.subr.mxu0 0.0
        %1413 = vmatpush1.msra.mxu0 0.0
        %1414 = vmatprep.subr.mxu0 0.0
        %1415 = vmatpush1.msra.mxu0 0.0
        %1416 = vmatprep.subr.mxu0 0.0
        %1417 = vmatpush1.msra.mxu0 0.0
        %1418 = vmatprep.subr.mxu0 0.0
        %1419 = vmatpush1.msra.mxu0 0.0
        %1420 = vmatprep.subr.mxu0 0.0
        %1421 = vmatpush1.msra.mxu0 0.0
        %1422 = vmatprep.subr.mxu0 0.0
        %1423 = vmatpush1.msra.mxu0 0.0
        %1424 = vmatprep.subr.mxu0 0.0
        %1425 = vmatpush1.msra.mxu0 0.0
        %1426 = vmatprep.subr.mxu0 0.0
        %1427 = vmatpush1.msra.mxu0 0.0
        %1428 = vmatprep.subr.mxu0 0.0
        %1429 = vmatpush1.msra.mxu0 0.0
        %1430 = vmatprep.subr.mxu0 0.0
        %1431 = vmatpush1.msra.mxu0 0.0
        %1432 = vmatprep.mubr.f32.mxu0 0.0
        %1433 = vmatmul.mubr.f32.gmra.mrb[0].mxu0 %v1313
        %v1434 = vpop.f32.mrb[0].mxu0
        %v1435 = vadd.f32 %v1366, %v1434
        %v1436 = vpop.f32.mrb[0].mxu0
        %1437 = vmatprep.mubr.f32.mxu0 0.0
        %1438 = vmatmul.mubr.f32.gmra.mrb[0].mxu0 %v1314
        %v1439 = vpop.f32.mrb[0].mxu0
        %v1440 = vadd.f32 %v1366, %v1439
        %v1441 = vpop.f32.mrb[0].mxu0
        %1442 = vmatprep.mubr.f32.mxu0 0.0
        %1443 = vmatmul.mubr.f32.gmra.mrb[0].mxu0 %v1315
        %v1444 = vpop.f32.mrb[0].mxu0
        %v1445 = vadd.f32 %v1366, %v1444
        %v1446 = vpop.f32.mrb[0].mxu0
        %1447 = vmatprep.mubr.f32.mxu0 0.0
        %1448 = vmatmul.mubr.f32.gmra.mrb[0].mxu0 %v1316
        %v1449 = vpop.f32.mrb[0].mxu0
        %v1450 = vadd.f32 %v1366, %v1449
        %v1451 = vpop.f32.mrb[0].mxu0
        %1452 = vmatprep.mubr.f32.mxu0 0.0
        %1453 = vmatmul.mubr.f32.gmra.mrb[0].mxu0 %v1317
        %v1454 = vpop.f32.mrb[0].mxu0
        %v1455 = vadd.f32 %v1366, %v1454
        %v1456 = vpop.f32.mrb[0].mxu0
        %1457 = vmatprep.mubr.f32.mxu0 0.0
        %1458 = vmatmul.mubr.f32.gmra.mrb[0].mxu0 %v1318
        %v1459 = vpop.f32.mrb[0].mxu0
        %v1460 = vadd.f32 %v1366, %v1459
        %v1461 = vpop.f32.mrb[0].mxu0
        %1462 = vmatprep.mubr.f32.mxu0 0.0
        %1463 = vmatmul.mubr.f32.gmra.mrb[0].mxu0 %v1319
        %v1464 = vpop.f32.mrb[0].mxu0
        %v1465 = vadd.f32 %v1366, %v1464
        %v1466 = vpop.f32.mrb[0].mxu0
        %1467 = vmatprep.mubr.f32.mxu0 0.0
        %1468 = vmatmul.mubr.f32.gmra.mrb[0].mxu0 %v1320
        %v1469 = vpop.f32.mrb[0].mxu0
        %v1470 = vadd.f32 %v1366, %v1469
        %v1471 = vpop.f32.mrb[0].mxu0
        %1472 = vmatprep.mubr.f32.mxu0 0.0
        %1473 = vmatmul.mubr.f32.gmra.mrb[0].mxu0 %v1321
        %v1474 = vpop.f32.mrb[0].mxu0
        %v1475 = vadd.f32 %v1366, %v1474
        %v1476 = vpop.f32.mrb[0].mxu0
        %1477 = vmatprep.mubr.f32.mxu0 0.0
        %1478 = vmatmul.mubr.f32.gmra.mrb[0].mxu0 %v1322
        %v1479 = vpop.f32.mrb[0].mxu0
        %v1480 = vadd.f32 %v1366, %v1479
        %v1481 = vpop.f32.mrb[0].mxu0
        %1482 = vmatprep.mubr.f32.mxu0 0.0
        %1483 = vmatmul.mubr.f32.gmra.mrb[0].mxu0 %v1323
        %v1484 = vpop.f32.mrb[0].mxu0
        %v1485 = vadd.f32 %v1366, %v1484
        %v1486 = vpop.f32.mrb[0].mxu0
        %1487 = vmatprep.mubr.f32.mxu0 0.0
        %1488 = vmatmul.mubr.f32.gmra.mrb[0].mxu0 %v1324
        %v1489 = vpop.f32.mrb[0].mxu0
        %v1490 = vadd.f32 %v1366, %v1489
        %v1491 = vpop.f32.mrb[0].mxu0
        %1492 = vmatprep.mubr.f32.mxu0 0.0
        %1493 = vmatmul.mubr.f32.gmra.mrb[0].mxu0 %v1325
        %v1494 = vpop.f32.mrb[0].mxu0
        %v1495 = vadd.f32 %v1366, %v1494
        %v1496 = vpop.f32.mrb[0].mxu0
        %1497 = vmatprep.mubr.f32.mxu0 0.0
        %1498 = vmatmul.mubr.f32.gmra.mrb[0].mxu0 %v1326
        %v1499 = vpop.f32.mrb[0].mxu0
        %v1500 = vadd.f32 %v1366, %v1499
        %v1501 = vpop.f32.mrb[0].mxu0
        %1502 = vmatprep.mubr.f32.mxu0 0.0
        %1503 = vmatmul.mubr.f32.gmra.mrb[0].mxu0 %v1327
        %v1504 = vpop.f32.mrb[0].mxu0
        %v1505 = vadd.f32 %v1366, %v1504
        %v1506 = vpop.f32.mrb[0].mxu0
        %1507 = vmatprep.mubr.f32.mxu0 0.0
        %1508 = vmatmul.mubr.f32.gmra.mrb[0].mxu0 %v1328
        %v1509 = vpop.f32.mrb[0].mxu0
        %v1510 = vadd.f32 %v1366, %v1509
        %v1511 = vpop.f32.mrb[0].mxu0
        %1512 = vmatprep.mubr.f32.mxu0 0.0
        %1513 = vmatmul.mubr.f32.gmra.mrb[0].mxu0 %v1329
        %v1514 = vpop.f32.mrb[0].mxu0
        %v1515 = vadd.f32 %v1366, %v1514
        %v1516 = vpop.f32.mrb[0].mxu0
        %1517 = vmatprep.mubr.f32.mxu0 0.0
        %1518 = vmatmul.mubr.f32.gmra.mrb[0].mxu0 %v1330
        %v1519 = vpop.f32.mrb[0].mxu0
        %v1520 = vadd.f32 %v1366, %v1519
        %v1521 = vpop.f32.mrb[0].mxu0
        %1522 = vmatprep.mubr.f32.mxu0 0.0
        %1523 = vmatmul.mubr.f32.gmra.mrb[0].mxu0 %v1331
        %v1524 = vpop.f32.mrb[0].mxu0
        %v1525 = vadd.f32 %v1366, %v1524
        %v1526 = vpop.f32.mrb[0].mxu0
        %1527 = vmatprep.mubr.f32.mxu0 0.0
        %1528 = vmatmul.mubr.f32.gmra.mrb[0].mxu0 %v1332
        %v1529 = vpop.f32.mrb[0].mxu0
        %v1530 = vadd.f32 %v1366, %v1529
        %v1531 = vpop.f32.mrb[0].mxu0
        %1532 = vmatprep.mubr.f32.mxu0 0.0
        %1533 = vmatmul.mubr.f32.gmra.mrb[0].mxu0 %v1333
        %v1534 = vpop.f32.mrb[0].mxu0
        %v1535 = vadd.f32 %v1366, %v1534
        %v1536 = vpop.f32.mrb[0].mxu0
        %1537 = vmatprep.mubr.f32.mxu0 0.0
        %1538 = vmatmul.mubr.f32.gmra.mrb[0].mxu0 %v1334
        %v1539 = vpop.f32.mrb[0].mxu0
        %v1540 = vadd.f32 %v1366, %v1539
        %v1541 = vpop.f32.mrb[0].mxu0
        %1542 = vmatprep.mubr.f32.mxu0 0.0
        %1543 = vmatmul.mubr.f32.gmra.mrb[0].mxu0 %v1335
        %v1544 = vpop.f32.mrb[0].mxu0
        %v1545 = vadd.f32 %v1366, %v1544
        %v1546 = vpop.f32.mrb[0].mxu0
        %1547 = vmatprep.mubr.f32.mxu0 0.0
        %1548 = vmatmul.mubr.f32.gmra.mrb[0].mxu0 %v1336
        %v1549 = vpop.f32.mrb[0].mxu0
        %v1550 = vadd.f32 %v1366, %v1549
        %v1551 = vpop.f32.mrb[0].mxu0
        %1552 = vmatprep.mubr.f32.mxu0 0.0
        %1553 = vmatmul.mubr.f32.gmra.mrb[0].mxu0 %v1337
        %v1554 = vpop.f32.mrb[0].mxu0
        %v1555 = vadd.f32 %v1366, %v1554
        %v1556 = vpop.f32.mrb[0].mxu0
        %1557 = vmatprep.mubr.f32.mxu0 0.0
        %1558 = vmatmul.mubr.f32.gmra.mrb[0].mxu0 %v1338
        %v1559 = vpop.f32.mrb[0].mxu0
        %v1560 = vadd.f32 %v1366, %v1559
        %v1561 = vpop.f32.mrb[0].mxu0
        %1562 = vmatprep.mubr.f32.mxu0 0.0
        %1563 = vmatmul.mubr.f32.gmra.mrb[0].mxu0 %v1339
        %v1564 = vpop.f32.mrb[0].mxu0
        %v1565 = vadd.f32 %v1366, %v1564
        %v1566 = vpop.f32.mrb[0].mxu0
        %1567 = vmatprep.mubr.f32.mxu0 0.0
        %1568 = vmatmul.mubr.f32.gmra.mrb[0].mxu0 %v1340
        %v1569 = vpop.f32.mrb[0].mxu0
        %v1570 = vadd.f32 %v1366, %v1569
        %v1571 = vpop.f32.mrb[0].mxu0
        %1572 = vmatprep.mubr.f32.mxu0 0.0
        %1573 = vmatmul.mubr.f32.gmra.mrb[0].mxu0 %v1341
        %v1574 = vpop.f32.mrb[0].mxu0
        %v1575 = vadd.f32 %v1366, %v1574
        %v1576 = vpop.f32.mrb[0].mxu0
        %1577 = vmatprep.mubr.f32.mxu0 0.0
        %1578 = vmatmul.mubr.f32.gmra.mrb[0].mxu0 %v1342
        %v1579 = vpop.f32.mrb[0].mxu0
        %v1580 = vadd.f32 %v1366, %v1579
        %v1581 = vpop.f32.mrb[0].mxu0
        %1582 = vmatprep.mubr.f32.mxu0 0.0
        %1583 = vmatmul.mubr.f32.gmra.mrb[0].mxu0 %v1343
        %v1584 = vpop.f32.mrb[0].mxu0
        %v1585 = vadd.f32 %v1366, %v1584
        %v1586 = vpop.f32.mrb[0].mxu0
        %1587 = vmatprep.mubr.f32.mxu0 0.0
        %1588 = vmatmul.mubr.f32.gmra.mrb[0].mxu0 %v1344
        %v1589 = vpop.f32.mrb[0].mxu0
        %v1590 = vadd.f32 %v1366, %v1589
        %v1591 = vpop.f32.mrb[0].mxu0
        %1592 = vdwg.mxu0
        %1593 = vst [vmem:[%s272] sm:$0xff] %v1435
        %1594 = vst [vmem:[%s272 + $0x8] sm:$0xff] %v1440
        %1595 = vst [vmem:[%s272 + $0x10] sm:$0xff] %v1445
        %1596 = vst [vmem:[%s272 + $0x18] sm:$0xff] %v1450
        %1597 = vst [vmem:[%s272 + $0x20] sm:$0xff] %v1455
        %1598 = vst [vmem:[%s272 + $0x28] sm:$0xff] %v1460
        %1599 = vst [vmem:[%s272 + $0x30] sm:$0xff] %v1465
        %1600 = vst [vmem:[%s272 + $0x38] sm:$0xff] %v1470
        %1601 = vst [vmem:[%s272 + $0x40] sm:$0xff] %v1475
        %1602 = vst [vmem:[%s272 + $0x48] sm:$0xff] %v1480
        %1603 = vst [vmem:[%s272 + $0x50] sm:$0xff] %v1485
        %1604 = vst [vmem:[%s272 + $0x58] sm:$0xff] %v1490
        %1605 = vst [vmem:[%s272 + $0x60] sm:$0xff] %v1495
        %1606 = vst [vmem:[%s272 + $0x68] sm:$0xff] %v1500
        %1607 = vst [vmem:[%s272 + $0x70] sm:$0xff] %v1505
        %1608 = vst [vmem:[%s272 + $0x78] sm:$0xff] %v1510
        %1609 = vst [vmem:[%s272 + $0x80] sm:$0xff] %v1515
        %1610 = vst [vmem:[%s272 + $0x88] sm:$0xff] %v1520
        %1611 = vst [vmem:[%s272 + $0x90] sm:$0xff] %v1525
        %1612 = vst [vmem:[%s272 + $0x98] sm:$0xff] %v1530
        %1613 = vst [vmem:[%s272 + $0xa0] sm:$0xff] %v1535
        %1614 = vst [vmem:[%s272 + $0xa8] sm:$0xff] %v1540
        %1615 = vst [vmem:[%s272 + $0xb0] sm:$0xff] %v1545
        %1616 = vst [vmem:[%s272 + $0xb8] sm:$0xff] %v1550
        %1617 = vst [vmem:[%s272 + $0xc0] sm:$0xff] %v1555
        %1618 = vst [vmem:[%s272 + $0xc8] sm:$0xff] %v1560
        %1619 = vst [vmem:[%s272 + $0xd0] sm:$0xff] %v1565
        %1620 = vst [vmem:[%s272 + $0xd8] sm:$0xff] %v1570
        %1621 = vst [vmem:[%s272 + $0xe0] sm:$0xff] %v1575
        %1622 = vst [vmem:[%s272 + $0xe8] sm:$0xff] %v1580
        %1623 = vst [vmem:[%s272 + $0xf0] sm:$0xff] %v1585
        %1624 = vst [vmem:[%s272 + $0xf8] sm:$0xff] %v1590
        %s1625 = sand.u32 %s181, 1
        %s1626 = scalar_lea.sflag [#allocation3], %s1625
        %s1627 = sand.u32 %s181, 1
        %s1628 = smul.addr %s1627, 256
        %s1629 = scalar_lea.vmem [#allocation2], %s1628
        // Predicated region
        $region49: #{tpu_custom_call.1} parent=47 // pred_check
          %p1630 = pneg %p191
        $region50: #{tpu_custom_call.1} parent=47 // pred_check_branch
          %1632 = sbr.rel (%p1630) target = $region52
        $region51: #{tpu_custom_call.1} parent=47 // pred_region
          %s1633 = smul.u32 32, %s21
          %s1635 = ssub.s32 4096, 4096
          %1636 = vsyncadd %s1626, %s1635
          %s1637 = smul.addr %s1633, 128
          %s1638 = scalar_lea.hbm %s7, %s1637
          %s1639 = sshll.u32 %s1629, 4
          %s1640 = int_to_ptr.vmem [resolvable:$true] %s1639
          %1645 = dma.vmem_to_hbm [thread:$0]  %s1640, 4096, %s1638, %s1626, 128, 128, 8
        $region52: #{tpu_custom_call.1} parent=47 // pred_fallthru
          _
      $region48: #{tpu_custom_call.1} parent=5 // pred_fallthru
        _
      %p1646 = scmp.le.s32.totalorder 2, %s16
      // Predicated region
      $region53: #{tpu_custom_call.1} parent=5 // pred_check
        %p1647 = pneg %p1646
      $region54: #{tpu_custom_call.1} parent=5 // pred_check_branch
        %1649 = sbr.rel (%p1647) target = $region56
      $region55: #{tpu_custom_call.1} parent=5 // pred_region
        %s1650 = ssub.s32 %s16, 2
        // Predicated region
        $region57: #{tpu_custom_call.1} parent=55 // pred_check
          %p1651 = pneg %p197
        $region58: #{tpu_custom_call.1} parent=55 // pred_check_branch
          %1653 = sbr.rel (%p1651) target = $region60
        $region59: #{tpu_custom_call.1} parent=55 // pred_region
          %s1654 = sand.u32 %s182, 1
          %s1655 = scalar_lea.sflag [#allocation3], %s1654
          %s1656 = sand.u32 %s182, 1
          %s1657 = smul.addr %s1656, 256
          %s1658 = scalar_lea.vmem [#allocation2], %s1657
          %1659 = dma.done %s1655, 4096
        $region60: #{tpu_custom_call.1} parent=55 // pred_fallthru
          _
      $region56: #{tpu_custom_call.1} parent=5 // pred_fallthru
        _
    $region6: #{tpu_custom_call.1} parent=1 // loop_footer
      %s20 = sadd.s32 1, %s16
    $region7: #{tpu_custom_call.1} parent=1 // loop_footer_branch
      %15 = sbr.rel target = $region3
    $region8: #{tpu_custom_call.1} parent=1 // loop_exit
      _
    %1660 = vsyncpa [#allocation3], 1
    %s1661 = scalar_lea.sflag [#allocation3], 1
    %1662 = vsyncpa %s1661, 1

// kernel: tpu_custom_call.1
$region0: #{tpu_custom_call.1}
  #allocation0 [shape = 'u32[]', space=smem, size = 0x4, offset = 0x4, fixed_abs, tag = 'smem constant byte address 0x4 - core index']
  #allocation1 [shape = 'u32[144,128]{1,0:T(1,128)}', space=vmem, size = 0x12000, scoped, tag = 'internal scratch']
  %s0 = inlined_call_operand.vmem [shape: f32[512,64], index: 0, kind: input, shape index: {}]
  %s1 = inlined_call_operand.vmem [shape: f32[64,128], index: 1, kind: input, shape index: {}]
  %s2 = inlined_call_operand.vmem [shape: f32[1,128], index: 2, kind: input, shape index: {}]
  %s3 = inlined_call_operand.vmem [shape: f32[128,128], index: 3, kind: input, shape index: {}]
  %s4 = inlined_call_operand.vmem [shape: f32[1,128], index: 4, kind: input, shape index: {}]
  %s5 = inlined_call_operand.vmem [shape: f32[128,128], index: 5, kind: input, shape index: {}]
  %s6 = inlined_call_operand.vmem [shape: f32[1,128], index: 6, kind: input, shape index: {}]
  %s7 = inlined_call_operand.hbm [shape: f32[512,128], index: 7, kind: output, shape index: {}]
  %s8 = sld [smem:[#allocation0]]
  $region61: #{tpu_custom_call.1} parent=0
    _
  %s10 = ssub.s32 1, %s8
  %s11 = scalar_select 0, %s10, %s8
  $region1: #{tpu_custom_call.1} parent=0
    #allocation2 [shape = 'u8[262144]{0}', space=vmem, size = 0x40000, scoped, tag = 'output window, operand 0']
    #allocation3 [shape = 's32[2]{0}', space=sflag, size = 0x8, scoped, tag = 'scoped memory for tpu_custom_call.1']
    %12 = vsyncpa [#allocation3], 0
    %s13 = scalar_lea.sflag [#allocation3], 1
    %14 = vsyncpa %s13, 0
    loop: start=0, step=1, limit=4
    $region2: #{tpu_custom_call.1} parent=1 // loop_pre_header
      _
    $region3: #{tpu_custom_call.1} parent=1 // loop_header
      %s16 = sphi 0, %s20
      %p17 = scmp.ge.s32.totalorder %s16, 4
      %s26 = sphi 0, %s28
      %s29 = sphi 0, %s26
      %s30 = sphi 0, %s29
      %s46 = sphi 0, %s30
      %s50 = sphi 0, %s50
      %s52 = sphi 0, %s50
      %s53 = sphi 0, %s52
      %s67 = sphi 0, %s53
      %s71 = sphi 0, %s71
      %s73 = sphi 0, %s71
      %s74 = sphi 0, %s73
      %s88 = sphi 0, %s74
      %s92 = sphi 0, %s92
      %s94 = sphi 0, %s92
      %s95 = sphi 0, %s94
      %s109 = sphi 0, %s95
      %s113 = sphi 0, %s113
      %s115 = sphi 0, %s113
      %s116 = sphi 0, %s115
      %s130 = sphi 0, %s116
      %s134 = sphi 0, %s134
      %s136 = sphi 0, %s134
      %s137 = sphi 0, %s136
      %s151 = sphi 0, %s137
      %s155 = sphi 0, %s155
      %s157 = sphi 0, %s155
      %s158 = sphi 0, %s157
      %s172 = sphi 0, %s158
      %s178 = sphi 0, %s180
      %s181 = sphi 0, %s178
      %s182 = sphi 0, %s181
      %s198 = sphi 0, %s182
    $region4: #{tpu_custom_call.1} parent=1 // loop_header_branch
      %19 = sbr.rel (%p17) target = $region8
    $region5: #{tpu_custom_call.1} parent=1 // loop_body
      %s21 = ssub.s32 %s16, 1
      %s22 = ssub.s32 %s16, 2
      %s23 = sadd.s32 %s16, 1
      %s24 = ssub.s32 %s16, %s23
      %p25 = scmp.eq.s32.totalorder %s24, 0
      %s27 = sadd.s32 %s26, 1
      %s28 = scalar_select %p25, %s26, %s27
      %p31 = pneg %p25
      %p32 = scmp.eq.s32.totalorder %s16, 1
      %p33 = por %p31, %p32
      %p34 = scmp.ne.s32.totalorder %s26, %s29
      %p35 = scmp.eq.s32.totalorder %s16, 0
      %p36 = por %p34, %p35
      %p37 = scmp.ne.s32.totalorder %s26, %s29
      %p38 = scmp.eq.s32.totalorder %s21, 1
      %p39 = por %p37, %p38
      %p40 = scmp.ne.s32.totalorder %s29, %s30
      %p41 = scmp.eq.s32.totalorder %s21, 0
      %p42 = por %p40, %p41
      %p43 = scmp.ne.s32.totalorder %s29, %s30
      %p44 = scmp.eq.s32.totalorder %s22, 1
      %p45 = por %p43, %p44
      %p47 = scmp.ne.s32.totalorder %s30, %s46
      %p48 = scmp.eq.s32.totalorder %s22, 0
      %p49 = por %p47, %p48
      %s51 = sadd.s32 %s50, 1
      %p54 = scmp.eq.s32.totalorder %s16, 1
      %p55 = scmp.ne.s32.totalorder %s50, %s52
      %p56 = scmp.eq.s32.totalorder %s16, 0
      %p57 = por %p55, %p56
      %p58 = scmp.ne.s32.totalorder %s50, %s52
      %p59 = scmp.eq.s32.totalorder %s21, 1
      %p60 = por %p58, %p59
      %p61 = scmp.ne.s32.totalorder %s52, %s53
      %p62 = scmp.eq.s32.totalorder %s21, 0
      %p63 = por %p61, %p62
      %p64 = scmp.ne.s32.totalorder %s52, %s53
      %p65 = scmp.eq.s32.totalorder %s22, 1
      %p66 = por %p64, %p65
      %p68 = scmp.ne.s32.totalorder %s53, %s67
      %p69 = scmp.eq.s32.totalorder %s22, 0
      %p70 = por %p68, %p69
      %s72 = sadd.s32 %s71, 1
      %p75 = scmp.eq.s32.totalorder %s16, 1
      %p76 = scmp.ne.s32.totalorder %s71, %s73
      %p77 = scmp.eq.s32.totalorder %s16, 0
      %p78 = por %p76, %p77
      %p79 = scmp.ne.s32.totalorder %s71, %s73
      %p80 = scmp.eq.s32.totalorder %s21, 1
      %p81 = por %p79, %p80
      %p82 = scmp.ne.s32.totalorder %s73, %s74
      %p83 = scmp.eq.s32.totalorder %s21, 0
      %p84 = por %p82, %p83
      %p85 = scmp.ne.s32.totalorder %s73, %s74
      %p86 = scmp.eq.s32.totalorder %s22, 1
      %p87 = por %p85, %p86
      %p89 = scmp.ne.s32.totalorder %s74, %s88
      %p90 = scmp.eq.s32.totalorder %s22, 0
      %p91 = por %p89, %p90
      %s93 = sadd.s32 %s92, 1
      %p96 = scmp.eq.s32.totalorder %s16, 1
      %p97 = scmp.ne.s32.totalorder %s92, %s94
      %p98 = scmp.eq.s32.totalorder %s16, 0
      %p99 = por %p97, %p98
      %p100 = scmp.ne.s32.totalorder %s92, %s94
      %p101 = scmp.eq.s32.totalorder %s21, 1
      %p102 = por %p100, %p101
      %p103 = scmp.ne.s32.totalorder %s94, %s95
      %p104 = scmp.eq.s32.totalorder %s21, 0
      %p105 = por %p103, %p104
      %p106 = scmp.ne.s32.totalorder %s94, %s95
      %p107 = scmp.eq.s32.totalorder %s22, 1
      %p108 = por %p106, %p107
      %p110 = scmp.ne.s32.totalorder %s95, %s109
      %p111 = scmp.eq.s32.totalorder %s22, 0
      %p112 = por %p110, %p111
      %s114 = sadd.s32 %s113, 1
      %p117 = scmp.eq.s32.totalorder %s16, 1
      %p118 = scmp.ne.s32.totalorder %s113, %s115
      %p119 = scmp.eq.s32.totalorder %s16, 0
      %p120 = por %p118, %p119
      %p121 = scmp.ne.s32.totalorder %s113, %s115
      %p122 = scmp.eq.s32.totalorder %s21, 1
      %p123 = por %p121, %p122
      %p124 = scmp.ne.s32.totalorder %s115, %s116
      %p125 = scmp.eq.s32.totalorder %s21, 0
      %p126 = por %p124, %p125
      %p127 = scmp.ne.s32.totalorder %s115, %s116
      %p128 = scmp.eq.s32.totalorder %s22, 1
      %p129 = por %p127, %p128
      %p131 = scmp.ne.s32.totalorder %s116, %s130
      %p132 = scmp.eq.s32.totalorder %s22, 0
      %p133 = por %p131, %p132
      %s135 = sadd.s32 %s134, 1
      %p138 = scmp.eq.s32.totalorder %s16, 1
      %p139 = scmp.ne.s32.totalorder %s134, %s136
      %p140 = scmp.eq.s32.totalorder %s16, 0
      %p141 = por %p139, %p140
      %p142 = scmp.ne.s32.totalorder %s134, %s136
      %p143 = scmp.eq.s32.totalorder %s21, 1
      %p144 = por %p142, %p143
      %p145 = scmp.ne.s32.totalorder %s136, %s137
      %p146 = scmp.eq.s32.totalorder %s21, 0
      %p147 = por %p145, %p146
      %p148 = scmp.ne.s32.totalorder %s136, %s137
      %p149 = scmp.eq.s32.totalorder %s22, 1
      %p150 = por %p148, %p149
      %p152 = scmp.ne.s32.totalorder %s137, %s151
      %p153 = scmp.eq.s32.totalorder %s22, 0
      %p154 = por %p152, %p153
      %s156 = sadd.s32 %s155, 1
      %p159 = scmp.eq.s32.totalorder %s16, 1
      %p160 = scmp.ne.s32.totalorder %s155, %s157
      %p161 = scmp.eq.s32.totalorder %s16, 0
      %p162 = por %p160, %p161
      %p163 = scmp.ne.s32.totalorder %s155, %s157
      %p164 = scmp.eq.s32.totalorder %s21, 1
      %p165 = por %p163, %p164
      %p166 = scmp.ne.s32.totalorder %s157, %s158
      %p167 = scmp.eq.s32.totalorder %s21, 0
      %p168 = por %p166, %p167
      %p169 = scmp.ne.s32.totalorder %s157, %s158
      %p170 = scmp.eq.s32.totalorder %s22, 1
      %p171 = por %p169, %p170
      %p173 = scmp.ne.s32.totalorder %s158, %s172
      %p174 = scmp.eq.s32.totalorder %s22, 0
      %p175 = por %p173, %p174
      %s176 = ssub.s32 %s16, %s23
      %p177 = scmp.eq.s32.totalorder %s176, 0
      %s179 = sadd.s32 %s178, 1
      %s180 = scalar_select %p177, %s178, %s179
      %p183 = pneg %p177
      %p184 = scmp.eq.s32.totalorder %s16, 1
      %p185 = por %p183, %p184
      %p186 = scmp.ne.s32.totalorder %s178, %s181
      %p187 = scmp.eq.s32.totalorder %s16, 0
      %p188 = por %p186, %p187
      %p189 = scmp.ne.s32.totalorder %s178, %s181
      %p190 = scmp.eq.s32.totalorder %s21, 1
      %p191 = por %p189, %p190
      %p192 = scmp.ne.s32.totalorder %s181, %s182
      %p193 = scmp.eq.s32.totalorder %s21, 0
      %p194 = por %p192, %p193
      %p195 = scmp.ne.s32.totalorder %s181, %s182
      %p196 = scmp.eq.s32.totalorder %s22, 1
      %p197 = por %p195, %p196
      %p199 = scmp.ne.s32.totalorder %s182, %s198
      %p200 = scmp.eq.s32.totalorder %s22, 0
      %p201 = por %p199, %p200
      %p202 = scmp.le.s32.totalorder 1, %s16
      %p203 = scmp.lt.s32.totalorder %s16, 3
      %p204 = pnand %p202, %p203
      %p205 = pneg %p204
      // Predicated region
      $region9: #{tpu_custom_call.1} parent=5 // pred_check
        _
      $region10: #{tpu_custom_call.1} parent=5 // pred_check_branch
        %207 = sbr.rel (%p204) target = $region12
      $region11: #{tpu_custom_call.1} parent=5 // pred_region
        %s208 = ssub.s32 %s16, 1
        // Predicated region
        $region13: #{tpu_custom_call.1} parent=11 // pred_check
          %p209 = pneg %p63
        $region14: #{tpu_custom_call.1} parent=11 // pred_check_branch
          %211 = sbr.rel (%p209) target = $region16
        $region15: #{tpu_custom_call.1} parent=11 // pred_region
          _
        $region16: #{tpu_custom_call.1} parent=11 // pred_fallthru
          _
        // Predicated region
        $region17: #{tpu_custom_call.1} parent=11 // pred_check
          %p212 = pneg %p84
        $region18: #{tpu_custom_call.1} parent=11 // pred_check_branch
          %214 = sbr.rel (%p212) target = $region20
        $region19: #{tpu_custom_call.1} parent=11 // pred_region
          _
        $region20: #{tpu_custom_call.1} parent=11 // pred_fallthru
          _
        // Predicated region
        $region21: #{tpu_custom_call.1} parent=11 // pred_check
          %p215 = pneg %p105
        $region22: #{tpu_custom_call.1} parent=11 // pred_check_branch
          %217 = sbr.rel (%p215) target = $region24
        $region23: #{tpu_custom_call.1} parent=11 // pred_region
          _
        $region24: #{tpu_custom_call.1} parent=11 // pred_fallthru
          _
        // Predicated region
        $region25: #{tpu_custom_call.1} parent=11 // pred_check
          %p218 = pneg %p126
        $region26: #{tpu_custom_call.1} parent=11 // pred_check_branch
          %220 = sbr.rel (%p218) target = $region28
        $region27: #{tpu_custom_call.1} parent=11 // pred_region
          _
        $region28: #{tpu_custom_call.1} parent=11 // pred_fallthru
          _
        // Predicated region
        $region29: #{tpu_custom_call.1} parent=11 // pred_check
          %p221 = pneg %p147
        $region30: #{tpu_custom_call.1} parent=11 // pred_check_branch
          %223 = sbr.rel (%p221) target = $region32
        $region31: #{tpu_custom_call.1} parent=11 // pred_region
          _
        $region32: #{tpu_custom_call.1} parent=11 // pred_fallthru
          _
        // Predicated region
        $region33: #{tpu_custom_call.1} parent=11 // pred_check
          %p224 = pneg %p168
        $region34: #{tpu_custom_call.1} parent=11 // pred_check_branch
          %226 = sbr.rel (%p224) target = $region36
        $region35: #{tpu_custom_call.1} parent=11 // pred_region
          _
        $region36: #{tpu_custom_call.1} parent=11 // pred_fallthru
          _
      $region12: #{tpu_custom_call.1} parent=5 // pred_fallthru
        _
      %p227 = scmp.lt.s32.totalorder %s16, 2
      // Predicated region
      $region37: #{tpu_custom_call.1} parent=5 // pred_check
        %p228 = pneg %p227
      $region38: #{tpu_custom_call.1} parent=5 // pred_check_branch
        %230 = sbr.rel (%p228) target = $region40
      $region39: #{tpu_custom_call.1} parent=5 // pred_region
        // Predicated region
        $region41: #{tpu_custom_call.1} parent=39 // pred_check
          %p231 = pneg %p36
        $region42: #{tpu_custom_call.1} parent=39 // pred_check_branch
          %233 = sbr.rel (%p231) target = $region44
        $region43: #{tpu_custom_call.1} parent=39 // pred_region
          %s234 = smul.u32 32, %s16
          %p235 = scmp.lt.s32.totalorder %s234, 63
          %s236 = scalar_select %p235, %s234, 63
          %s237 = smul.addr %s236, 8
          %s238 = scalar_lea.vmem %s0, %s237
          %s239 = smul.u32 32, %s16
        $region44: #{tpu_custom_call.1} parent=39 // pred_fallthru
          _
      $region40: #{tpu_custom_call.1} parent=5 // pred_fallthru
        _
      %p240 = scmp.le.s32.totalorder 1, %s16
      %p241 = scmp.lt.s32.totalorder %s16, 3
      %p242 = pnand %p240, %p241
      %p243 = pneg %p242
      // Predicated region
      $region45: #{tpu_custom_call.1} parent=5 // pred_check
        _
      $region46: #{tpu_custom_call.1} parent=5 // pred_check_branch
        %245 = sbr.rel (%p242) target = $region48
      $region47: #{tpu_custom_call.1} parent=5 // pred_region
        %s246 = ssub.s32 %s16, 1
        %s247 = smul.u32 32, %s21
        %p248 = scmp.lt.s32.totalorder %s247, 63
        %s249 = scalar_select %p248, %s247, 63
        %s250 = smul.addr %s249, 8
        %s251 = scalar_lea.vmem %s0, %s250
        %p252 = pneg %p42
        %p253 = pneg %p39
        %p254 = pneg %p63
        %p255 = pneg %p60
        %p256 = pneg %p84
        %p257 = pneg %p81
        %p258 = pneg %p105
        %p259 = pneg %p102
        %p260 = pneg %p126
        %p261 = pneg %p123
        %p262 = pneg %p147
        %p263 = pneg %p144
        %p264 = pneg %p168
        %p265 = pneg %p165
        %p266 = pneg %p194
        %p267 = pneg %p191
        %s268 = sand.u32 %s181, 1
        %s269 = scalar_lea.sflag [#allocation3], %s268
        %s270 = sand.u32 %s181, 1
        %s271 = smul.addr %s270, 256
        %s272 = scalar_lea.vmem [#allocation2], %s271
        %s273 = smul.u32 32, %s21
        %p274 = scmp.lt.s32.totalorder %s273, 63
        %s275 = scalar_select %p274, %s273, 63
        %s276 = smul.addr %s275, 8
        %s277 = scalar_lea.vmem %s0, %s276
        %s278 = smul.u32 32, %s21
        %s279 = smul.u32 32, %s21
        %v280 = vld [vmem:[%s277] sm:$0xff]
        %v281 = vld [vmem:[%s277 + $0x8] sm:$0xff]
        %v282 = vld [vmem:[%s277 + $0x10] sm:$0xff]
        %v283 = vld [vmem:[%s277 + $0x18] sm:$0xff]
        %v284 = vld [vmem:[%s277 + $0x20] sm:$0xff]
        %v285 = vld [vmem:[%s277 + $0x28] sm:$0xff]
        %v286 = vld [vmem:[%s277 + $0x30] sm:$0xff]
        %v287 = vld [vmem:[%s277 + $0x38] sm:$0xff]
        %v288 = vld [vmem:[%s277 + $0x40] sm:$0xff]
        %v289 = vld [vmem:[%s277 + $0x48] sm:$0xff]
        %v290 = vld [vmem:[%s277 + $0x50] sm:$0xff]
        %v291 = vld [vmem:[%s277 + $0x58] sm:$0xff]
        %v292 = vld [vmem:[%s277 + $0x60] sm:$0xff]
        %v293 = vld [vmem:[%s277 + $0x68] sm:$0xff]
        %v294 = vld [vmem:[%s277 + $0x70] sm:$0xff]
        %v295 = vld [vmem:[%s277 + $0x78] sm:$0xff]
        %v296 = vld [vmem:[%s277 + $0x80] sm:$0xff]
        %v297 = vld [vmem:[%s277 + $0x88] sm:$0xff]
        %v298 = vld [vmem:[%s277 + $0x90] sm:$0xff]
        %v299 = vld [vmem:[%s277 + $0x98] sm:$0xff]
        %v300 = vld [vmem:[%s277 + $0xa0] sm:$0xff]
        %v301 = vld [vmem:[%s277 + $0xa8] sm:$0xff]
        %v302 = vld [vmem:[%s277 + $0xb0] sm:$0xff]
        %v303 = vld [vmem:[%s277 + $0xb8] sm:$0xff]
        %v304 = vld [vmem:[%s277 + $0xc0] sm:$0xff]
        %v305 = vld [vmem:[%s277 + $0xc8] sm:$0xff]
        %v306 = vld [vmem:[%s277 + $0xd0] sm:$0xff]
        %v307 = vld [vmem:[%s277 + $0xd8] sm:$0xff]
        %v308 = vld [vmem:[%s277 + $0xe0] sm:$0xff]
        %v309 = vld [vmem:[%s277 + $0xe8] sm:$0xff]
        %v310 = vld [vmem:[%s277 + $0xf0] sm:$0xff]
        %v311 = vld [vmem:[%s277 + $0xf8] sm:$0xff]
        %v312 = vld [vmem:[%s1] sm:$0xff]
        %v313 = vld [vmem:[%s1 + $0x8] sm:$0xff]
        %v314 = vld [vmem:[%s1 + $0x10] sm:$0xff]
        %v315 = vld [vmem:[%s1 + $0x18] sm:$0xff]
        %v316 = vld [vmem:[%s1 + $0x20] sm:$0xff]
        %v317 = vld [vmem:[%s1 + $0x28] sm:$0xff]
        %v318 = vld [vmem:[%s1 + $0x30] sm:$0xff]
        %v319 = vld [vmem:[%s1 + $0x38] sm:$0xff]
        %v320 = vld [vmem:[%s2] sm:$0x1]
        %v322 = vlaneseq
        %v323 = vshrl.u32 %v322, 7
        %v324 = vsub.s32 0, %v323
        %v325 = vrot.slane %v320, %v324
        %vm327 = vcmask 523264
        %v329 = vsel %vm327, %v280, 0
        %v332 = vsel %vm327, %v281, 0
        %v335 = vsel %vm327, %v282, 0
        %v338 = vsel %vm327, %v283, 0
        %v341 = vsel %vm327, %v284, 0
        %v344 = vsel %vm327, %v285, 0
        %v347 = vsel %vm327, %v286, 0
        %v350 = vsel %vm327, %v287, 0
        %v353 = vsel %vm327, %v288, 0
        %v356 = vsel %vm327, %v289, 0
        %v359 = vsel %vm327, %v290, 0
        %v362 = vsel %vm327, %v291, 0
        %v365 = vsel %vm327, %v292, 0
        %v368 = vsel %vm327, %v293, 0
        %v371 = vsel %vm327, %v294, 0
        %v374 = vsel %vm327, %v295, 0
        %v377 = vsel %vm327, %v296, 0
        %v380 = vsel %vm327, %v297, 0
        %v383 = vsel %vm327, %v298, 0
        %v386 = vsel %vm327, %v299, 0
        %v389 = vsel %vm327, %v300, 0
        %v392 = vsel %vm327, %v301, 0
        %v395 = vsel %vm327, %v302, 0
        %v398 = vsel %vm327, %v303, 0
        %v401 = vsel %vm327, %v304, 0
        %v404 = vsel %vm327, %v305, 0
        %v407 = vsel %vm327, %v306, 0
        %v410 = vsel %vm327, %v307, 0
        %v413 = vsel %vm327, %v308, 0
        %v416 = vsel %vm327, %v309, 0
        %v419 = vsel %vm327, %v310, 0
        %v422 = vsel %vm327, %v311, 0
        %424 = vmatprep.subr.mxu0 0.0
        %425 = vmatpush1.msra.mxu0 %v312
        %426 = vmatprep.subr.mxu0 0.0
        %427 = vmatpush1.msra.mxu0 %v313
        %428 = vmatprep.subr.mxu0 0.0
        %429 = vmatpush1.msra.mxu0 %v314
        %430 = vmatprep.subr.mxu0 0.0
        %431 = vmatpush1.msra.mxu0 %v315
        %432 = vmatprep.subr.mxu0 0.0
        %433 = vmatpush1.msra.mxu0 %v316
        %434 = vmatprep.subr.mxu0 0.0
        %435 = vmatpush1.msra.mxu0 %v317
        %436 = vmatprep.subr.mxu0 0.0
        %437 = vmatpush1.msra.mxu0 %v318
        %438 = vmatprep.subr.mxu0 0.0
        %439 = vmatpush1.msra.mxu0 %v319
        %440 = vmatprep.subr.mxu0 0.0
        %441 = vmatpush1.msra.mxu0 0.0
        %442 = vmatprep.subr.mxu0 0.0
        %443 = vmatpush1.msra.mxu0 0.0
        %444 = vmatprep.subr.mxu0 0.0
        %445 = vmatpush1.msra.mxu0 0.0
        %446 = vmatprep.subr.mxu0 0.0
        %447 = vmatpush1.msra.mxu0 0.0
        %448 = vmatprep.subr.mxu0 0.0
        %449 = vmatpush1.msra.mxu0 0.0
        %450 = vmatprep.subr.mxu0 0.0
        %451 = vmatpush1.msra.mxu0 0.0
        %452 = vmatprep.subr.mxu0 0.0
        %453 = vmatpush1.msra.mxu0 0.0
        %454 = vmatprep.subr.mxu0 0.0
        %455 = vmatpush1.msra.mxu0 0.0
        %456 = vmatprep.subr.mxu0 0.0
        %457 = vmatpush1.msra.mxu0 0.0
        %458 = vmatprep.subr.mxu0 0.0
        %459 = vmatpush1.msra.mxu0 0.0
        %460 = vmatprep.subr.mxu0 0.0
        %461 = vmatpush1.msra.mxu0 0.0
        %462 = vmatprep.subr.mxu0 0.0
        %463 = vmatpush1.msra.mxu0 0.0
        %464 = vmatprep.subr.mxu0 0.0
        %465 = vmatpush1.msra.mxu0 0.0
        %466 = vmatprep.subr.mxu0 0.0
        %467 = vmatpush1.msra.mxu0 0.0
        %468 = vmatprep.subr.mxu0 0.0
        %469 = vmatpush1.msra.mxu0 0.0
        %470 = vmatprep.subr.mxu0 0.0
        %471 = vmatpush1.msra.mxu0 0.0
        %472 = vmatprep.subr.mxu0 0.0
        %473 = vmatpush1.msra.mxu0 0.0
        %474 = vmatprep.subr.mxu0 0.0
        %475 = vmatpush1.msra.mxu0 0.0
        %476 = vmatprep.subr.mxu0 0.0
        %477 = vmatpush1.msra.mxu0 0.0
        %478 = vmatprep.subr.mxu0 0.0
        %479 = vmatpush1.msra.mxu0 0.0
        %480 = vmatprep.subr.mxu0 0.0
        %481 = vmatpush1.msra.mxu0 0.0
        %482 = vmatprep.subr.mxu0 0.0
        %483 = vmatpush1.msra.mxu0 0.0
        %484 = vmatprep.subr.mxu0 0.0
        %485 = vmatpush1.msra.mxu0 0.0
        %486 = vmatprep.subr.mxu0 0.0
        %487 = vmatpush1.msra.mxu0 0.0
        %488 = vmatprep.mubr.f32.mxu0 0.0
        %489 = vmatmul.mubr.f32.gmra.mrb[0].mxu0 %v329
        %v490 = vpop.f32.mrb[0].mxu0
        %v491 = vadd.f32 %v325, %v490
        %v492 = vpop.f32.mrb[0].mxu0
        %493 = vmatprep.mubr.f32.mxu0 0.0
        %494 = vmatmul.mubr.f32.gmra.mrb[0].mxu0 %v332
        %v495 = vpop.f32.mrb[0].mxu0
        %v496 = vadd.f32 %v325, %v495
        %v497 = vpop.f32.mrb[0].mxu0
        %498 = vmatprep.mubr.f32.mxu0 0.0
        %499 = vmatmul.mubr.f32.gmra.mrb[0].mxu0 %v335
        %v500 = vpop.f32.mrb[0].mxu0
        %v501 = vadd.f32 %v325, %v500
        %v502 = vpop.f32.mrb[0].mxu0
        %503 = vmatprep.mubr.f32.mxu0 0.0
        %504 = vmatmul.mubr.f32.gmra.mrb[0].mxu0 %v338
        %v505 = vpop.f32.mrb[0].mxu0
        %v506 = vadd.f32 %v325, %v505
        %v507 = vpop.f32.mrb[0].mxu0
        %508 = vmatprep.mubr.f32.mxu0 0.0
        %509 = vmatmul.mubr.f32.gmra.mrb[0].mxu0 %v341
        %v510 = vpop.f32.mrb[0].mxu0
        %v511 = vadd.f32 %v325, %v510
        %v512 = vpop.f32.mrb[0].mxu0
        %513 = vmatprep.mubr.f32.mxu0 0.0
        %514 = vmatmul.mubr.f32.gmra.mrb[0].mxu0 %v344
        %v515 = vpop.f32.mrb[0].mxu0
        %v516 = vadd.f32 %v325, %v515
        %v517 = vpop.f32.mrb[0].mxu0
        %518 = vmatprep.mubr.f32.mxu0 0.0
        %519 = vmatmul.mubr.f32.gmra.mrb[0].mxu0 %v347
        %v520 = vpop.f32.mrb[0].mxu0
        %v521 = vadd.f32 %v325, %v520
        %v522 = vpop.f32.mrb[0].mxu0
        %523 = vmatprep.mubr.f32.mxu0 0.0
        %524 = vmatmul.mubr.f32.gmra.mrb[0].mxu0 %v350
        %v525 = vpop.f32.mrb[0].mxu0
        %v526 = vadd.f32 %v325, %v525
        %v527 = vpop.f32.mrb[0].mxu0
        %528 = vmatprep.mubr.f32.mxu0 0.0
        %529 = vmatmul.mubr.f32.gmra.mrb[0].mxu0 %v353
        %v530 = vpop.f32.mrb[0].mxu0
        %v531 = vadd.f32 %v325, %v530
        %v532 = vpop.f32.mrb[0].mxu0
        %533 = vmatprep.mubr.f32.mxu0 0.0
        %534 = vmatmul.mubr.f32.gmra.mrb[0].mxu0 %v356
        %v535 = vpop.f32.mrb[0].mxu0
        %v536 = vadd.f32 %v325, %v535
        %v537 = vpop.f32.mrb[0].mxu0
        %538 = vmatprep.mubr.f32.mxu0 0.0
        %539 = vmatmul.mubr.f32.gmra.mrb[0].mxu0 %v359
        %v540 = vpop.f32.mrb[0].mxu0
        %v541 = vadd.f32 %v325, %v540
        %v542 = vpop.f32.mrb[0].mxu0
        %543 = vmatprep.mubr.f32.mxu0 0.0
        %544 = vmatmul.mubr.f32.gmra.mrb[0].mxu0 %v362
        %v545 = vpop.f32.mrb[0].mxu0
        %v546 = vadd.f32 %v325, %v545
        %v547 = vpop.f32.mrb[0].mxu0
        %548 = vmatprep.mubr.f32.mxu0 0.0
        %549 = vmatmul.mubr.f32.gmra.mrb[0].mxu0 %v365
        %v550 = vpop.f32.mrb[0].mxu0
        %v551 = vadd.f32 %v325, %v550
        %v552 = vpop.f32.mrb[0].mxu0
        %553 = vmatprep.mubr.f32.mxu0 0.0
        %554 = vmatmul.mubr.f32.gmra.mrb[0].mxu0 %v368
        %v555 = vpop.f32.mrb[0].mxu0
        %v556 = vadd.f32 %v325, %v555
        %v557 = vpop.f32.mrb[0].mxu0
        %558 = vmatprep.mubr.f32.mxu0 0.0
        %559 = vmatmul.mubr.f32.gmra.mrb[0].mxu0 %v371
        %v560 = vpop.f32.mrb[0].mxu0
        %v561 = vadd.f32 %v325, %v560
        %v562 = vpop.f32.mrb[0].mxu0
        %563 = vmatprep.mubr.f32.mxu0 0.0
        %564 = vmatmul.mubr.f32.gmra.mrb[0].mxu0 %v374
        %v565 = vpop.f32.mrb[0].mxu0
        %v566 = vadd.f32 %v325, %v565
        %v567 = vpop.f32.mrb[0].mxu0
        %568 = vmatprep.mubr.f32.mxu0 0.0
        %569 = vmatmul.mubr.f32.gmra.mrb[0].mxu0 %v377
        %v570 = vpop.f32.mrb[0].mxu0
        %v571 = vadd.f32 %v325, %v570
        %v572 = vpop.f32.mrb[0].mxu0
        %573 = vmatprep.mubr.f32.mxu0 0.0
        %574 = vmatmul.mubr.f32.gmra.mrb[0].mxu0 %v380
        %v575 = vpop.f32.mrb[0].mxu0
        %v576 = vadd.f32 %v325, %v575
        %v577 = vpop.f32.mrb[0].mxu0
        %578 = vmatprep.mubr.f32.mxu0 0.0
        %579 = vmatmul.mubr.f32.gmra.mrb[0].mxu0 %v383
        %v580 = vpop.f32.mrb[0].mxu0
        %v581 = vadd.f32 %v325, %v580
        %v582 = vpop.f32.mrb[0].mxu0
        %583 = vmatprep.mubr.f32.mxu0 0.0
        %584 = vmatmul.mubr.f32.gmra.mrb[0].mxu0 %v386
        %v585 = vpop.f32.mrb[0].mxu0
        %v586 = vadd.f32 %v325, %v585
        %v587 = vpop.f32.mrb[0].mxu0
        %588 = vmatprep.mubr.f32.mxu0 0.0
        %589 = vmatmul.mubr.f32.gmra.mrb[0].mxu0 %v389
        %v590 = vpop.f32.mrb[0].mxu0
        %v591 = vadd.f32 %v325, %v590
        %v592 = vpop.f32.mrb[0].mxu0
        %593 = vmatprep.mubr.f32.mxu0 0.0
        %594 = vmatmul.mubr.f32.gmra.mrb[0].mxu0 %v392
        %v595 = vpop.f32.mrb[0].mxu0
        %v596 = vadd.f32 %v325, %v595
        %v597 = vpop.f32.mrb[0].mxu0
        %598 = vmatprep.mubr.f32.mxu0 0.0
        %599 = vmatmul.mubr.f32.gmra.mrb[0].mxu0 %v395
        %v600 = vpop.f32.mrb[0].mxu0
        %v601 = vadd.f32 %v325, %v600
        %v602 = vpop.f32.mrb[0].mxu0
        %603 = vmatprep.mubr.f32.mxu0 0.0
        %604 = vmatmul.mubr.f32.gmra.mrb[0].mxu0 %v398
        %v605 = vpop.f32.mrb[0].mxu0
        %v606 = vadd.f32 %v325, %v605
        %v607 = vpop.f32.mrb[0].mxu0
        %608 = vmatprep.mubr.f32.mxu0 0.0
        %609 = vmatmul.mubr.f32.gmra.mrb[0].mxu0 %v401
        %v610 = vpop.f32.mrb[0].mxu0
        %v611 = vadd.f32 %v325, %v610
        %v612 = vpop.f32.mrb[0].mxu0
        %613 = vmatprep.mubr.f32.mxu0 0.0
        %614 = vmatmul.mubr.f32.gmra.mrb[0].mxu0 %v404
        %v615 = vpop.f32.mrb[0].mxu0
        %v616 = vadd.f32 %v325, %v615
        %v617 = vpop.f32.mrb[0].mxu0
        %618 = vmatprep.mubr.f32.mxu0 0.0
        %619 = vmatmul.mubr.f32.gmra.mrb[0].mxu0 %v407
        %v620 = vpop.f32.mrb[0].mxu0
        %v621 = vadd.f32 %v325, %v620
        %v622 = vpop.f32.mrb[0].mxu0
        %623 = vmatprep.mubr.f32.mxu0 0.0
        %624 = vmatmul.mubr.f32.gmra.mrb[0].mxu0 %v410
        %v625 = vpop.f32.mrb[0].mxu0
        %v626 = vadd.f32 %v325, %v625
        %v627 = vpop.f32.mrb[0].mxu0
        %628 = vmatprep.mubr.f32.mxu0 0.0
        %629 = vmatmul.mubr.f32.gmra.mrb[0].mxu0 %v413
        %v630 = vpop.f32.mrb[0].mxu0
        %v631 = vadd.f32 %v325, %v630
        %v632 = vpop.f32.mrb[0].mxu0
        %633 = vmatprep.mubr.f32.mxu0 0.0
        %634 = vmatmul.mubr.f32.gmra.mrb[0].mxu0 %v416
        %v635 = vpop.f32.mrb[0].mxu0
        %v636 = vadd.f32 %v325, %v635
        %v637 = vpop.f32.mrb[0].mxu0
        %638 = vmatprep.mubr.f32.mxu0 0.0
        %639 = vmatmul.mubr.f32.gmra.mrb[0].mxu0 %v419
        %v640 = vpop.f32.mrb[0].mxu0
        %v641 = vadd.f32 %v325, %v640
        %v642 = vpop.f32.mrb[0].mxu0
        %643 = vmatprep.mubr.f32.mxu0 0.0
        %644 = vmatmul.mubr.f32.gmra.mrb[0].mxu0 %v422
        %v645 = vpop.f32.mrb[0].mxu0
        %v646 = vadd.f32 %v325, %v645
        %v647 = vpop.f32.mrb[0].mxu0
        %648 = vdwg.mxu0
        %v649 = vxor.u32 %v491, 2147483648
        %v650 = vxor.u32 %v496, 2147483648
        %v651 = vxor.u32 %v501, 2147483648
        %v652 = vxor.u32 %v506, 2147483648
        %v653 = vxor.u32 %v511, 2147483648
        %v654 = vxor.u32 %v516, 2147483648
        %v655 = vxor.u32 %v521, 2147483648
        %v656 = vxor.u32 %v526, 2147483648
        %v657 = vxor.u32 %v531, 2147483648
        %v658 = vxor.u32 %v536, 2147483648
        %v659 = vxor.u32 %v541, 2147483648
        %v660 = vxor.u32 %v546, 2147483648
        %v661 = vxor.u32 %v551, 2147483648
        %v662 = vxor.u32 %v556, 2147483648
        %v663 = vxor.u32 %v561, 2147483648
        %v664 = vxor.u32 %v566, 2147483648
        %v665 = vxor.u32 %v571, 2147483648
        %v666 = vxor.u32 %v576, 2147483648
        %v667 = vxor.u32 %v581, 2147483648
        %v668 = vxor.u32 %v586, 2147483648
        %v669 = vxor.u32 %v591, 2147483648
        %v670 = vxor.u32 %v596, 2147483648
        %v671 = vxor.u32 %v601, 2147483648
        %v672 = vxor.u32 %v606, 2147483648
        %v673 = vxor.u32 %v611, 2147483648
        %v674 = vxor.u32 %v616, 2147483648
        %v675 = vxor.u32 %v621, 2147483648
        %v676 = vxor.u32 %v626, 2147483648
        %v677 = vxor.u32 %v631, 2147483648
        %v678 = vxor.u32 %v636, 2147483648
        %v679 = vxor.u32 %v641, 2147483648
        %v680 = vxor.u32 %v646, 2147483648
        %v681 = vmul.f32 %v649, 1.442695
        %v682 = vpow.pop %v681
        %v683 = vmul.f32 %v650, 1.442695
        %v684 = vpow.pop %v683
        %v685 = vmul.f32 %v651, 1.442695
        %v686 = vpow.pop %v685
        %v687 = vmul.f32 %v652, 1.442695
        %v688 = vpow.pop %v687
        %v689 = vmul.f32 %v653, 1.442695
        %v690 = vpow.pop %v689
        %v691 = vmul.f32 %v654, 1.442695
        %v692 = vpow.pop %v691
        %v693 = vmul.f32 %v655, 1.442695
        %v694 = vpow.pop %v693
        %v695 = vmul.f32 %v656, 1.442695
        %v696 = vpow.pop %v695
        %v697 = vmul.f32 %v657, 1.442695
        %v698 = vpow.pop %v697
        %v699 = vmul.f32 %v658, 1.442695
        %v700 = vpow.pop %v699
        %v701 = vmul.f32 %v659, 1.442695
        %v702 = vpow.pop %v701
        %v703 = vmul.f32 %v660, 1.442695
        %v704 = vpow.pop %v703
        %v705 = vmul.f32 %v661, 1.442695
        %v706 = vpow.pop %v705
        %v707 = vmul.f32 %v662, 1.442695
        %v708 = vpow.pop %v707
        %v709 = vmul.f32 %v663, 1.442695
        %v710 = vpow.pop %v709
        %v711 = vmul.f32 %v664, 1.442695
        %v712 = vpow.pop %v711
        %v713 = vmul.f32 %v665, 1.442695
        %v714 = vpow.pop %v713
        %v715 = vmul.f32 %v666, 1.442695
        %v716 = vpow.pop %v715
        %v717 = vmul.f32 %v667, 1.442695
        %v718 = vpow.pop %v717
        %v719 = vmul.f32 %v668, 1.442695
        %v720 = vpow.pop %v719
        %v721 = vmul.f32 %v669, 1.442695
        %v722 = vpow.pop %v721
        %v723 = vmul.f32 %v670, 1.442695
        %v724 = vpow.pop %v723
        %v725 = vmul.f32 %v671, 1.442695
        %v726 = vpow.pop %v725
        %v727 = vmul.f32 %v672, 1.442695
        %v728 = vpow.pop %v727
        %v729 = vmul.f32 %v673, 1.442695
        %v730 = vpow.pop %v729
        %v731 = vmul.f32 %v674, 1.442695
        %v732 = vpow.pop %v731
        %v733 = vmul.f32 %v675, 1.442695
        %v734 = vpow.pop %v733
        %v735 = vmul.f32 %v676, 1.442695
        %v736 = vpow.pop %v735
        %v737 = vmul.f32 %v677, 1.442695
        %v738 = vpow.pop %v737
        %v739 = vmul.f32 %v678, 1.442695
        %v740 = vpow.pop %v739
        %v741 = vmul.f32 %v679, 1.442695
        %v742 = vpow.pop %v741
        %v743 = vmul.f32 %v680, 1.442695
        %v744 = vpow.pop %v743
        %v745 = vadd.f32 %v682, 1.0
        %v746 = vadd.f32 %v684, 1.0
        %v747 = vadd.f32 %v686, 1.0
        %v748 = vadd.f32 %v688, 1.0
        %v749 = vadd.f32 %v690, 1.0
        %v750 = vadd.f32 %v692, 1.0
        %v751 = vadd.f32 %v694, 1.0
        %v752 = vadd.f32 %v696, 1.0
        %v753 = vadd.f32 %v698, 1.0
        %v754 = vadd.f32 %v700, 1.0
        %v755 = vadd.f32 %v702, 1.0
        %v756 = vadd.f32 %v704, 1.0
        %v757 = vadd.f32 %v706, 1.0
        %v758 = vadd.f32 %v708, 1.0
        %v759 = vadd.f32 %v710, 1.0
        %v760 = vadd.f32 %v712, 1.0
        %v761 = vadd.f32 %v714, 1.0
        %v762 = vadd.f32 %v716, 1.0
        %v763 = vadd.f32 %v718, 1.0
        %v764 = vadd.f32 %v720, 1.0
        %v765 = vadd.f32 %v722, 1.0
        %v766 = vadd.f32 %v724, 1.0
        %v767 = vadd.f32 %v726, 1.0
        %v768 = vadd.f32 %v728, 1.0
        %v769 = vadd.f32 %v730, 1.0
        %v770 = vadd.f32 %v732, 1.0
        %v771 = vadd.f32 %v734, 1.0
        %v772 = vadd.f32 %v736, 1.0
        %v773 = vadd.f32 %v738, 1.0
        %v774 = vadd.f32 %v740, 1.0
        %v775 = vadd.f32 %v742, 1.0
        %v776 = vadd.f32 %v744, 1.0
        %v777 = vrcp.pop %v745
        %v778 = vmul.f32 1.0, %v777
        %v779 = vrcp.pop %v746
        %v780 = vmul.f32 1.0, %v779
        %v781 = vrcp.pop %v747
        %v782 = vmul.f32 1.0, %v781
        %v783 = vrcp.pop %v748
        %v784 = vmul.f32 1.0, %v783
        %v785 = vrcp.pop %v749
        %v786 = vmul.f32 1.0, %v785
        %v787 = vrcp.pop %v750
        %v788 = vmul.f32 1.0, %v787
        %v789 = vrcp.pop %v751
        %v790 = vmul.f32 1.0, %v789
        %v791 = vrcp.pop %v752
        %v792 = vmul.f32 1.0, %v791
        %v793 = vrcp.pop %v753
        %v794 = vmul.f32 1.0, %v793
        %v795 = vrcp.pop %v754
        %v796 = vmul.f32 1.0, %v795
        %v797 = vrcp.pop %v755
        %v798 = vmul.f32 1.0, %v797
        %v799 = vrcp.pop %v756
        %v800 = vmul.f32 1.0, %v799
        %v801 = vrcp.pop %v757
        %v802 = vmul.f32 1.0, %v801
        %v803 = vrcp.pop %v758
        %v804 = vmul.f32 1.0, %v803
        %v805 = vrcp.pop %v759
        %v806 = vmul.f32 1.0, %v805
        %v807 = vrcp.pop %v760
        %v808 = vmul.f32 1.0, %v807
        %v809 = vrcp.pop %v761
        %v810 = vmul.f32 1.0, %v809
        %v811 = vrcp.pop %v762
        %v812 = vmul.f32 1.0, %v811
        %v813 = vrcp.pop %v763
        %v814 = vmul.f32 1.0, %v813
        %v815 = vrcp.pop %v764
        %v816 = vmul.f32 1.0, %v815
        %v817 = vrcp.pop %v765
        %v818 = vmul.f32 1.0, %v817
        %v819 = vrcp.pop %v766
        %v820 = vmul.f32 1.0, %v819
        %v821 = vrcp.pop %v767
        %v822 = vmul.f32 1.0, %v821
        %v823 = vrcp.pop %v768
        %v824 = vmul.f32 1.0, %v823
        %v825 = vrcp.pop %v769
        %v826 = vmul.f32 1.0, %v825
        %v827 = vrcp.pop %v770
        %v828 = vmul.f32 1.0, %v827
        %v829 = vrcp.pop %v771
        %v830 = vmul.f32 1.0, %v829
        %v831 = vrcp.pop %v772
        %v832 = vmul.f32 1.0, %v831
        %v833 = vrcp.pop %v773
        %v834 = vmul.f32 1.0, %v833
        %v835 = vrcp.pop %v774
        %v836 = vmul.f32 1.0, %v835
        %v837 = vrcp.pop %v775
        %v838 = vmul.f32 1.0, %v837
        %v839 = vrcp.pop %v776
        %v840 = vmul.f32 1.0, %v839
        %v841 = vmul.f32 %v491, %v778
        %v842 = vmul.f32 %v496, %v780
        %v843 = vmul.f32 %v501, %v782
        %v844 = vmul.f32 %v506, %v784
        %v845 = vmul.f32 %v511, %v786
        %v846 = vmul.f32 %v516, %v788
        %v847 = vmul.f32 %v521, %v790
        %v848 = vmul.f32 %v526, %v792
        %v849 = vmul.f32 %v531, %v794
        %v850 = vmul.f32 %v536, %v796
        %v851 = vmul.f32 %v541, %v798
        %v852 = vmul.f32 %v546, %v800
        %v853 = vmul.f32 %v551, %v802
        %v854 = vmul.f32 %v556, %v804
        %v855 = vmul.f32 %v561, %v806
        %v856 = vmul.f32 %v566, %v808
        %v857 = vmul.f32 %v571, %v810
        %v858 = vmul.f32 %v576, %v812
        %v859 = vmul.f32 %v581, %v814
        %v860 = vmul.f32 %v586, %v816
        %v861 = vmul.f32 %v591, %v818
        %v862 = vmul.f32 %v596, %v820
        %v863 = vmul.f32 %v601, %v822
        %v864 = vmul.f32 %v606, %v824
        %v865 = vmul.f32 %v611, %v826
        %v866 = vmul.f32 %v616, %v828
        %v867 = vmul.f32 %v621, %v830
        %v868 = vmul.f32 %v626, %v832
        %v869 = vmul.f32 %v631, %v834
        %v870 = vmul.f32 %v636, %v836
        %v871 = vmul.f32 %v641, %v838
        %v872 = vmul.f32 %v646, %v840
        %v873 = vld [vmem:[%s3] sm:$0xff]
        %v874 = vld [vmem:[%s3 + $0x8] sm:$0xff]
        %v875 = vld [vmem:[%s3 + $0x10] sm:$0xff]
        %v876 = vld [vmem:[%s3 + $0x18] sm:$0xff]
        %v877 = vld [vmem:[%s3 + $0x20] sm:$0xff]
        %v878 = vld [vmem:[%s3 + $0x28] sm:$0xff]
        %v879 = vld [vmem:[%s3 + $0x30] sm:$0xff]
        %v880 = vld [vmem:[%s3 + $0x38] sm:$0xff]
        %v881 = vld [vmem:[%s3 + $0x40] sm:$0xff]
        %v882 = vld [vmem:[%s3 + $0x48] sm:$0xff]
        %v883 = vld [vmem:[%s3 + $0x50] sm:$0xff]
        %v884 = vld [vmem:[%s3 + $0x58] sm:$0xff]
        %v885 = vld [vmem:[%s3 + $0x60] sm:$0xff]
        %v886 = vld [vmem:[%s3 + $0x68] sm:$0xff]
        %v887 = vld [vmem:[%s3 + $0x70] sm:$0xff]
        %v888 = vld [vmem:[%s3 + $0x78] sm:$0xff]
        %v889 = vld [vmem:[%s4] sm:$0x1]
        %v891 = vlaneseq
        %v892 = vshrl.u32 %v891, 7
        %v893 = vsub.s32 0, %v892
        %v894 = vrot.slane %v889, %v893
        %896 = vmatprep.subr.mxu0 0.0
        %897 = vmatpush1.msra.mxu0 %v873
        %898 = vmatprep.subr.mxu0 0.0
        %899 = vmatpush1.msra.mxu0 %v874
        %900 = vmatprep.subr.mxu0 0.0
        %901 = vmatpush1.msra.mxu0 %v875
        %902 = vmatprep.subr.mxu0 0.0
        %903 = vmatpush1.msra.mxu0 %v876
        %904 = vmatprep.subr.mxu0 0.0
        %905 = vmatpush1.msra.mxu0 %v877
        %906 = vmatprep.subr.mxu0 0.0
        %907 = vmatpush1.msra.mxu0 %v878
        %908 = vmatprep.subr.mxu0 0.0
        %909 = vmatpush1.msra.mxu0 %v879
        %910 = vmatprep.subr.mxu0 0.0
        %911 = vmatpush1.msra.mxu0 %v880
        %912 = vmatprep.subr.mxu0 0.0
        %913 = vmatpush1.msra.mxu0 %v881
        %914 = vmatprep.subr.mxu0 0.0
        %915 = vmatpush1.msra.mxu0 %v882
        %916 = vmatprep.subr.mxu0 0.0
        %917 = vmatpush1.msra.mxu0 %v883
        %918 = vmatprep.subr.mxu0 0.0
        %919 = vmatpush1.msra.mxu0 %v884
        %920 = vmatprep.subr.mxu0 0.0
        %921 = vmatpush1.msra.mxu0 %v885
        %922 = vmatprep.subr.mxu0 0.0
        %923 = vmatpush1.msra.mxu0 %v886
        %924 = vmatprep.subr.mxu0 0.0
        %925 = vmatpush1.msra.mxu0 %v887
        %926 = vmatprep.subr.mxu0 0.0
        %927 = vmatpush1.msra.mxu0 %v888
        %928 = vmatprep.subr.mxu0 0.0
        %929 = vmatpush1.msra.mxu0 0.0
        %930 = vmatprep.subr.mxu0 0.0
        %931 = vmatpush1.msra.mxu0 0.0
        %932 = vmatprep.subr.mxu0 0.0
        %933 = vmatpush1.msra.mxu0 0.0
        %934 = vmatprep.subr.mxu0 0.0
        %935 = vmatpush1.msra.mxu0 0.0
        %936 = vmatprep.subr.mxu0 0.0
        %937 = vmatpush1.msra.mxu0 0.0
        %938 = vmatprep.subr.mxu0 0.0
        %939 = vmatpush1.msra.mxu0 0.0
        %940 = vmatprep.subr.mxu0 0.0
        %941 = vmatpush1.msra.mxu0 0.0
        %942 = vmatprep.subr.mxu0 0.0
        %943 = vmatpush1.msra.mxu0 0.0
        %944 = vmatprep.subr.mxu0 0.0
        %945 = vmatpush1.msra.mxu0 0.0
        %946 = vmatprep.subr.mxu0 0.0
        %947 = vmatpush1.msra.mxu0 0.0
        %948 = vmatprep.subr.mxu0 0.0
        %949 = vmatpush1.msra.mxu0 0.0
        %950 = vmatprep.subr.mxu0 0.0
        %951 = vmatpush1.msra.mxu0 0.0
        %952 = vmatprep.subr.mxu0 0.0
        %953 = vmatpush1.msra.mxu0 0.0
        %954 = vmatprep.subr.mxu0 0.0
        %955 = vmatpush1.msra.mxu0 0.0
        %956 = vmatprep.subr.mxu0 0.0
        %957 = vmatpush1.msra.mxu0 0.0
        %958 = vmatprep.subr.mxu0 0.0
        %959 = vmatpush1.msra.mxu0 0.0
        %960 = vmatprep.mubr.f32.mxu0 0.0
        %961 = vmatmul.mubr.f32.gmra.mrb[0].mxu0 %v841
        %v962 = vpop.f32.mrb[0].mxu0
        %v963 = vadd.f32 %v894, %v962
        %v964 = vpop.f32.mrb[0].mxu0
        %965 = vmatprep.mubr.f32.mxu0 0.0
        %966 = vmatmul.mubr.f32.gmra.mrb[0].mxu0 %v842
        %v967 = vpop.f32.mrb[0].mxu0
        %v968 = vadd.f32 %v894, %v967
        %v969 = vpop.f32.mrb[0].mxu0
        %970 = vmatprep.mubr.f32.mxu0 0.0
        %971 = vmatmul.mubr.f32.gmra.mrb[0].mxu0 %v843
        %v972 = vpop.f32.mrb[0].mxu0
        %v973 = vadd.f32 %v894, %v972
        %v974 = vpop.f32.mrb[0].mxu0
        %975 = vmatprep.mubr.f32.mxu0 0.0
        %976 = vmatmul.mubr.f32.gmra.mrb[0].mxu0 %v844
        %v977 = vpop.f32.mrb[0].mxu0
        %v978 = vadd.f32 %v894, %v977
        %v979 = vpop.f32.mrb[0].mxu0
        %980 = vmatprep.mubr.f32.mxu0 0.0
        %981 = vmatmul.mubr.f32.gmra.mrb[0].mxu0 %v845
        %v982 = vpop.f32.mrb[0].mxu0
        %v983 = vadd.f32 %v894, %v982
        %v984 = vpop.f32.mrb[0].mxu0
        %985 = vmatprep.mubr.f32.mxu0 0.0
        %986 = vmatmul.mubr.f32.gmra.mrb[0].mxu0 %v846
        %v987 = vpop.f32.mrb[0].mxu0
        %v988 = vadd.f32 %v894, %v987
        %v989 = vpop.f32.mrb[0].mxu0
        %990 = vmatprep.mubr.f32.mxu0 0.0
        %991 = vmatmul.mubr.f32.gmra.mrb[0].mxu0 %v847
        %v992 = vpop.f32.mrb[0].mxu0
        %v993 = vadd.f32 %v894, %v992
        %v994 = vpop.f32.mrb[0].mxu0
        %995 = vmatprep.mubr.f32.mxu0 0.0
        %996 = vmatmul.mubr.f32.gmra.mrb[0].mxu0 %v848
        %v997 = vpop.f32.mrb[0].mxu0
        %v998 = vadd.f32 %v894, %v997
        %v999 = vpop.f32.mrb[0].mxu0
        %1000 = vmatprep.mubr.f32.mxu0 0.0
        %1001 = vmatmul.mubr.f32.gmra.mrb[0].mxu0 %v849
        %v1002 = vpop.f32.mrb[0].mxu0
        %v1003 = vadd.f32 %v894, %v1002
        %v1004 = vpop.f32.mrb[0].mxu0
        %1005 = vmatprep.mubr.f32.mxu0 0.0
        %1006 = vmatmul.mubr.f32.gmra.mrb[0].mxu0 %v850
        %v1007 = vpop.f32.mrb[0].mxu0
        %v1008 = vadd.f32 %v894, %v1007
        %v1009 = vpop.f32.mrb[0].mxu0
        %1010 = vmatprep.mubr.f32.mxu0 0.0
        %1011 = vmatmul.mubr.f32.gmra.mrb[0].mxu0 %v851
        %v1012 = vpop.f32.mrb[0].mxu0
        %v1013 = vadd.f32 %v894, %v1012
        %v1014 = vpop.f32.mrb[0].mxu0
        %1015 = vmatprep.mubr.f32.mxu0 0.0
        %1016 = vmatmul.mubr.f32.gmra.mrb[0].mxu0 %v852
        %v1017 = vpop.f32.mrb[0].mxu0
        %v1018 = vadd.f32 %v894, %v1017
        %v1019 = vpop.f32.mrb[0].mxu0
        %1020 = vmatprep.mubr.f32.mxu0 0.0
        %1021 = vmatmul.mubr.f32.gmra.mrb[0].mxu0 %v853
        %v1022 = vpop.f32.mrb[0].mxu0
        %v1023 = vadd.f32 %v894, %v1022
        %v1024 = vpop.f32.mrb[0].mxu0
        %1025 = vmatprep.mubr.f32.mxu0 0.0
        %1026 = vmatmul.mubr.f32.gmra.mrb[0].mxu0 %v854
        %v1027 = vpop.f32.mrb[0].mxu0
        %v1028 = vadd.f32 %v894, %v1027
        %v1029 = vpop.f32.mrb[0].mxu0
        %1030 = vmatprep.mubr.f32.mxu0 0.0
        %1031 = vmatmul.mubr.f32.gmra.mrb[0].mxu0 %v855
        %v1032 = vpop.f32.mrb[0].mxu0
        %v1033 = vadd.f32 %v894, %v1032
        %v1034 = vpop.f32.mrb[0].mxu0
        %1035 = vmatprep.mubr.f32.mxu0 0.0
        %1036 = vmatmul.mubr.f32.gmra.mrb[0].mxu0 %v856
        %v1037 = vpop.f32.mrb[0].mxu0
        %v1038 = vadd.f32 %v894, %v1037
        %v1039 = vpop.f32.mrb[0].mxu0
        %1040 = vmatprep.mubr.f32.mxu0 0.0
        %1041 = vmatmul.mubr.f32.gmra.mrb[0].mxu0 %v857
        %v1042 = vpop.f32.mrb[0].mxu0
        %v1043 = vadd.f32 %v894, %v1042
        %v1044 = vpop.f32.mrb[0].mxu0
        %1045 = vmatprep.mubr.f32.mxu0 0.0
        %1046 = vmatmul.mubr.f32.gmra.mrb[0].mxu0 %v858
        %v1047 = vpop.f32.mrb[0].mxu0
        %v1048 = vadd.f32 %v894, %v1047
        %v1049 = vpop.f32.mrb[0].mxu0
        %1050 = vmatprep.mubr.f32.mxu0 0.0
        %1051 = vmatmul.mubr.f32.gmra.mrb[0].mxu0 %v859
        %v1052 = vpop.f32.mrb[0].mxu0
        %v1053 = vadd.f32 %v894, %v1052
        %v1054 = vpop.f32.mrb[0].mxu0
        %1055 = vmatprep.mubr.f32.mxu0 0.0
        %1056 = vmatmul.mubr.f32.gmra.mrb[0].mxu0 %v860
        %v1057 = vpop.f32.mrb[0].mxu0
        %v1058 = vadd.f32 %v894, %v1057
        %v1059 = vpop.f32.mrb[0].mxu0
        %1060 = vmatprep.mubr.f32.mxu0 0.0
        %1061 = vmatmul.mubr.f32.gmra.mrb[0].mxu0 %v861
        %v1062 = vpop.f32.mrb[0].mxu0
        %v1063 = vadd.f32 %v894, %v1062
        %v1064 = vpop.f32.mrb[0].mxu0
        %1065 = vmatprep.mubr.f32.mxu0 0.0
        %1066 = vmatmul.mubr.f32.gmra.mrb[0].mxu0 %v862
        %v1067 = vpop.f32.mrb[0].mxu0
        %v1068 = vadd.f32 %v894, %v1067
        %v1069 = vpop.f32.mrb[0].mxu0
        %1070 = vmatprep.mubr.f32.mxu0 0.0
        %1071 = vmatmul.mubr.f32.gmra.mrb[0].mxu0 %v863
        %v1072 = vpop.f32.mrb[0].mxu0
        %v1073 = vadd.f32 %v894, %v1072
        %v1074 = vpop.f32.mrb[0].mxu0
        %1075 = vmatprep.mubr.f32.mxu0 0.0
        %1076 = vmatmul.mubr.f32.gmra.mrb[0].mxu0 %v864
        %v1077 = vpop.f32.mrb[0].mxu0
        %v1078 = vadd.f32 %v894, %v1077
        %v1079 = vpop.f32.mrb[0].mxu0
        %1080 = vmatprep.mubr.f32.mxu0 0.0
        %1081 = vmatmul.mubr.f32.gmra.mrb[0].mxu0 %v865
        %v1082 = vpop.f32.mrb[0].mxu0
        %v1083 = vadd.f32 %v894, %v1082
        %v1084 = vpop.f32.mrb[0].mxu0
        %1085 = vmatprep.mubr.f32.mxu0 0.0
        %1086 = vmatmul.mubr.f32.gmra.mrb[0].mxu0 %v866
        %v1087 = vpop.f32.mrb[0].mxu0
        %v1088 = vadd.f32 %v894, %v1087
        %v1089 = vpop.f32.mrb[0].mxu0
        %1090 = vmatprep.mubr.f32.mxu0 0.0
        %1091 = vmatmul.mubr.f32.gmra.mrb[0].mxu0 %v867
        %v1092 = vpop.f32.mrb[0].mxu0
        %v1093 = vadd.f32 %v894, %v1092
        %v1094 = vpop.f32.mrb[0].mxu0
        %1095 = vmatprep.mubr.f32.mxu0 0.0
        %1096 = vmatmul.mubr.f32.gmra.mrb[0].mxu0 %v868
        %v1097 = vpop.f32.mrb[0].mxu0
        %v1098 = vadd.f32 %v894, %v1097
        %v1099 = vpop.f32.mrb[0].mxu0
        %1100 = vmatprep.mubr.f32.mxu0 0.0
        %1101 = vmatmul.mubr.f32.gmra.mrb[0].mxu0 %v869
        %v1102 = vpop.f32.mrb[0].mxu0
        %v1103 = vadd.f32 %v894, %v1102
        %v1104 = vpop.f32.mrb[0].mxu0
        %1105 = vmatprep.mubr.f32.mxu0 0.0
        %1106 = vmatmul.mubr.f32.gmra.mrb[0].mxu0 %v870
        %v1107 = vpop.f32.mrb[0].mxu0
        %v1108 = vadd.f32 %v894, %v1107
        %v1109 = vpop.f32.mrb[0].mxu0
        %1110 = vmatprep.mubr.f32.mxu0 0.0
        %1111 = vmatmul.mubr.f32.gmra.mrb[0].mxu0 %v871
        %v1112 = vpop.f32.mrb[0].mxu0
        %v1113 = vadd.f32 %v894, %v1112
        %v1114 = vpop.f32.mrb[0].mxu0
        %1115 = vmatprep.mubr.f32.mxu0 0.0
        %1116 = vmatmul.mubr.f32.gmra.mrb[0].mxu0 %v872
        %v1117 = vpop.f32.mrb[0].mxu0
        %v1118 = vadd.f32 %v894, %v1117
        %v1119 = vpop.f32.mrb[0].mxu0
        %1120 = vdwg.mxu0
        %v1121 = vxor.u32 %v963, 2147483648
        %v1122 = vxor.u32 %v968, 2147483648
        %v1123 = vxor.u32 %v973, 2147483648
        %v1124 = vxor.u32 %v978, 2147483648
        %v1125 = vxor.u32 %v983, 2147483648
        %v1126 = vxor.u32 %v988, 2147483648
        %v1127 = vxor.u32 %v993, 2147483648
        %v1128 = vxor.u32 %v998, 2147483648
        %v1129 = vxor.u32 %v1003, 2147483648
        %v1130 = vxor.u32 %v1008, 2147483648
        %v1131 = vxor.u32 %v1013, 2147483648
        %v1132 = vxor.u32 %v1018, 2147483648
        %v1133 = vxor.u32 %v1023, 2147483648
        %v1134 = vxor.u32 %v1028, 2147483648
        %v1135 = vxor.u32 %v1033, 2147483648
        %v1136 = vxor.u32 %v1038, 2147483648
        %v1137 = vxor.u32 %v1043, 2147483648
        %v1138 = vxor.u32 %v1048, 2147483648
        %v1139 = vxor.u32 %v1053, 2147483648
        %v1140 = vxor.u32 %v1058, 2147483648
        %v1141 = vxor.u32 %v1063, 2147483648
        %v1142 = vxor.u32 %v1068, 2147483648
        %v1143 = vxor.u32 %v1073, 2147483648
        %v1144 = vxor.u32 %v1078, 2147483648
        %v1145 = vxor.u32 %v1083, 2147483648
        %v1146 = vxor.u32 %v1088, 2147483648
        %v1147 = vxor.u32 %v1093, 2147483648
        %v1148 = vxor.u32 %v1098, 2147483648
        %v1149 = vxor.u32 %v1103, 2147483648
        %v1150 = vxor.u32 %v1108, 2147483648
        %v1151 = vxor.u32 %v1113, 2147483648
        %v1152 = vxor.u32 %v1118, 2147483648
        %v1153 = vmul.f32 %v1121, 1.442695
        %v1154 = vpow.pop %v1153
        %v1155 = vmul.f32 %v1122, 1.442695
        %v1156 = vpow.pop %v1155
        %v1157 = vmul.f32 %v1123, 1.442695
        %v1158 = vpow.pop %v1157
        %v1159 = vmul.f32 %v1124, 1.442695
        %v1160 = vpow.pop %v1159
        %v1161 = vmul.f32 %v1125, 1.442695
        %v1162 = vpow.pop %v1161
        %v1163 = vmul.f32 %v1126, 1.442695
        %v1164 = vpow.pop %v1163
        %v1165 = vmul.f32 %v1127, 1.442695
        %v1166 = vpow.pop %v1165
        %v1167 = vmul.f32 %v1128, 1.442695
        %v1168 = vpow.pop %v1167
        %v1169 = vmul.f32 %v1129, 1.442695
        %v1170 = vpow.pop %v1169
        %v1171 = vmul.f32 %v1130, 1.442695
        %v1172 = vpow.pop %v1171
        %v1173 = vmul.f32 %v1131, 1.442695
        %v1174 = vpow.pop %v1173
        %v1175 = vmul.f32 %v1132, 1.442695
        %v1176 = vpow.pop %v1175
        %v1177 = vmul.f32 %v1133, 1.442695
        %v1178 = vpow.pop %v1177
        %v1179 = vmul.f32 %v1134, 1.442695
        %v1180 = vpow.pop %v1179
        %v1181 = vmul.f32 %v1135, 1.442695
        %v1182 = vpow.pop %v1181
        %v1183 = vmul.f32 %v1136, 1.442695
        %v1184 = vpow.pop %v1183
        %v1185 = vmul.f32 %v1137, 1.442695
        %v1186 = vpow.pop %v1185
        %v1187 = vmul.f32 %v1138, 1.442695
        %v1188 = vpow.pop %v1187
        %v1189 = vmul.f32 %v1139, 1.442695
        %v1190 = vpow.pop %v1189
        %v1191 = vmul.f32 %v1140, 1.442695
        %v1192 = vpow.pop %v1191
        %v1193 = vmul.f32 %v1141, 1.442695
        %v1194 = vpow.pop %v1193
        %v1195 = vmul.f32 %v1142, 1.442695
        %v1196 = vpow.pop %v1195
        %v1197 = vmul.f32 %v1143, 1.442695
        %v1198 = vpow.pop %v1197
        %v1199 = vmul.f32 %v1144, 1.442695
        %v1200 = vpow.pop %v1199
        %v1201 = vmul.f32 %v1145, 1.442695
        %v1202 = vpow.pop %v1201
        %v1203 = vmul.f32 %v1146, 1.442695
        %v1204 = vpow.pop %v1203
        %v1205 = vmul.f32 %v1147, 1.442695
        %v1206 = vpow.pop %v1205
        %v1207 = vmul.f32 %v1148, 1.442695
        %v1208 = vpow.pop %v1207
        %v1209 = vmul.f32 %v1149, 1.442695
        %v1210 = vpow.pop %v1209
        %v1211 = vmul.f32 %v1150, 1.442695
        %v1212 = vpow.pop %v1211
        %v1213 = vmul.f32 %v1151, 1.442695
        %v1214 = vpow.pop %v1213
        %v1215 = vmul.f32 %v1152, 1.442695
        %v1216 = vpow.pop %v1215
        %v1217 = vadd.f32 %v1154, 1.0
        %v1218 = vadd.f32 %v1156, 1.0
        %v1219 = vadd.f32 %v1158, 1.0
        %v1220 = vadd.f32 %v1160, 1.0
        %v1221 = vadd.f32 %v1162, 1.0
        %v1222 = vadd.f32 %v1164, 1.0
        %v1223 = vadd.f32 %v1166, 1.0
        %v1224 = vadd.f32 %v1168, 1.0
        %v1225 = vadd.f32 %v1170, 1.0
        %v1226 = vadd.f32 %v1172, 1.0
        %v1227 = vadd.f32 %v1174, 1.0
        %v1228 = vadd.f32 %v1176, 1.0
        %v1229 = vadd.f32 %v1178, 1.0
        %v1230 = vadd.f32 %v1180, 1.0
        %v1231 = vadd.f32 %v1182, 1.0
        %v1232 = vadd.f32 %v1184, 1.0
        %v1233 = vadd.f32 %v1186, 1.0
        %v1234 = vadd.f32 %v1188, 1.0
        %v1235 = vadd.f32 %v1190, 1.0
        %v1236 = vadd.f32 %v1192, 1.0
        %v1237 = vadd.f32 %v1194, 1.0
        %v1238 = vadd.f32 %v1196, 1.0
        %v1239 = vadd.f32 %v1198, 1.0
        %v1240 = vadd.f32 %v1200, 1.0
        %v1241 = vadd.f32 %v1202, 1.0
        %v1242 = vadd.f32 %v1204, 1.0
        %v1243 = vadd.f32 %v1206, 1.0
        %v1244 = vadd.f32 %v1208, 1.0
        %v1245 = vadd.f32 %v1210, 1.0
        %v1246 = vadd.f32 %v1212, 1.0
        %v1247 = vadd.f32 %v1214, 1.0
        %v1248 = vadd.f32 %v1216, 1.0
        %v1249 = vrcp.pop %v1217
        %v1250 = vmul.f32 1.0, %v1249
        %v1251 = vrcp.pop %v1218
        %v1252 = vmul.f32 1.0, %v1251
        %v1253 = vrcp.pop %v1219
        %v1254 = vmul.f32 1.0, %v1253
        %v1255 = vrcp.pop %v1220
        %v1256 = vmul.f32 1.0, %v1255
        %v1257 = vrcp.pop %v1221
        %v1258 = vmul.f32 1.0, %v1257
        %v1259 = vrcp.pop %v1222
        %v1260 = vmul.f32 1.0, %v1259
        %v1261 = vrcp.pop %v1223
        %v1262 = vmul.f32 1.0, %v1261
        %v1263 = vrcp.pop %v1224
        %v1264 = vmul.f32 1.0, %v1263
        %v1265 = vrcp.pop %v1225
        %v1266 = vmul.f32 1.0, %v1265
        %v1267 = vrcp.pop %v1226
        %v1268 = vmul.f32 1.0, %v1267
        %v1269 = vrcp.pop %v1227
        %v1270 = vmul.f32 1.0, %v1269
        %v1271 = vrcp.pop %v1228
        %v1272 = vmul.f32 1.0, %v1271
        %v1273 = vrcp.pop %v1229
        %v1274 = vmul.f32 1.0, %v1273
        %v1275 = vrcp.pop %v1230
        %v1276 = vmul.f32 1.0, %v1275
        %v1277 = vrcp.pop %v1231
        %v1278 = vmul.f32 1.0, %v1277
        %v1279 = vrcp.pop %v1232
        %v1280 = vmul.f32 1.0, %v1279
        %v1281 = vrcp.pop %v1233
        %v1282 = vmul.f32 1.0, %v1281
        %v1283 = vrcp.pop %v1234
        %v1284 = vmul.f32 1.0, %v1283
        %v1285 = vrcp.pop %v1235
        %v1286 = vmul.f32 1.0, %v1285
        %v1287 = vrcp.pop %v1236
        %v1288 = vmul.f32 1.0, %v1287
        %v1289 = vrcp.pop %v1237
        %v1290 = vmul.f32 1.0, %v1289
        %v1291 = vrcp.pop %v1238
        %v1292 = vmul.f32 1.0, %v1291
        %v1293 = vrcp.pop %v1239
        %v1294 = vmul.f32 1.0, %v1293
        %v1295 = vrcp.pop %v1240
        %v1296 = vmul.f32 1.0, %v1295
        %v1297 = vrcp.pop %v1241
        %v1298 = vmul.f32 1.0, %v1297
        %v1299 = vrcp.pop %v1242
        %v1300 = vmul.f32 1.0, %v1299
        %v1301 = vrcp.pop %v1243
        %v1302 = vmul.f32 1.0, %v1301
        %v1303 = vrcp.pop %v1244
        %v1304 = vmul.f32 1.0, %v1303
        %v1305 = vrcp.pop %v1245
        %v1306 = vmul.f32 1.0, %v1305
        %v1307 = vrcp.pop %v1246
        %v1308 = vmul.f32 1.0, %v1307
        %v1309 = vrcp.pop %v1247
        %v1310 = vmul.f32 1.0, %v1309
        %v1311 = vrcp.pop %v1248
        %v1312 = vmul.f32 1.0, %v1311
        %v1313 = vmul.f32 %v963, %v1250
        %v1314 = vmul.f32 %v968, %v1252
        %v1315 = vmul.f32 %v973, %v1254
        %v1316 = vmul.f32 %v978, %v1256
        %v1317 = vmul.f32 %v983, %v1258
        %v1318 = vmul.f32 %v988, %v1260
        %v1319 = vmul.f32 %v993, %v1262
        %v1320 = vmul.f32 %v998, %v1264
        %v1321 = vmul.f32 %v1003, %v1266
        %v1322 = vmul.f32 %v1008, %v1268
        %v1323 = vmul.f32 %v1013, %v1270
        %v1324 = vmul.f32 %v1018, %v1272
        %v1325 = vmul.f32 %v1023, %v1274
        %v1326 = vmul.f32 %v1028, %v1276
        %v1327 = vmul.f32 %v1033, %v1278
        %v1328 = vmul.f32 %v1038, %v1280
        %v1329 = vmul.f32 %v1043, %v1282
        %v1330 = vmul.f32 %v1048, %v1284
        %v1331 = vmul.f32 %v1053, %v1286
        %v1332 = vmul.f32 %v1058, %v1288
        %v1333 = vmul.f32 %v1063, %v1290
        %v1334 = vmul.f32 %v1068, %v1292
        %v1335 = vmul.f32 %v1073, %v1294
        %v1336 = vmul.f32 %v1078, %v1296
        %v1337 = vmul.f32 %v1083, %v1298
        %v1338 = vmul.f32 %v1088, %v1300
        %v1339 = vmul.f32 %v1093, %v1302
        %v1340 = vmul.f32 %v1098, %v1304
        %v1341 = vmul.f32 %v1103, %v1306
        %v1342 = vmul.f32 %v1108, %v1308
        %v1343 = vmul.f32 %v1113, %v1310
        %v1344 = vmul.f32 %v1118, %v1312
        %v1345 = vld [vmem:[%s5] sm:$0xff]
        %v1346 = vld [vmem:[%s5 + $0x8] sm:$0xff]
        %v1347 = vld [vmem:[%s5 + $0x10] sm:$0xff]
        %v1348 = vld [vmem:[%s5 + $0x18] sm:$0xff]
        %v1349 = vld [vmem:[%s5 + $0x20] sm:$0xff]
        %v1350 = vld [vmem:[%s5 + $0x28] sm:$0xff]
        %v1351 = vld [vmem:[%s5 + $0x30] sm:$0xff]
        %v1352 = vld [vmem:[%s5 + $0x38] sm:$0xff]
        %v1353 = vld [vmem:[%s5 + $0x40] sm:$0xff]
        %v1354 = vld [vmem:[%s5 + $0x48] sm:$0xff]
        %v1355 = vld [vmem:[%s5 + $0x50] sm:$0xff]
        %v1356 = vld [vmem:[%s5 + $0x58] sm:$0xff]
        %v1357 = vld [vmem:[%s5 + $0x60] sm:$0xff]
        %v1358 = vld [vmem:[%s5 + $0x68] sm:$0xff]
        %v1359 = vld [vmem:[%s5 + $0x70] sm:$0xff]
        %v1360 = vld [vmem:[%s5 + $0x78] sm:$0xff]
        %v1361 = vld [vmem:[%s6] sm:$0x1]
        %v1363 = vlaneseq
        %v1364 = vshrl.u32 %v1363, 7
        %v1365 = vsub.s32 0, %v1364
        %v1366 = vrot.slane %v1361, %v1365
        %1368 = vmatprep.subr.mxu0 0.0
        %1369 = vmatpush1.msra.mxu0 %v1345
        %1370 = vmatprep.subr.mxu0 0.0
        %1371 = vmatpush1.msra.mxu0 %v1346
        %1372 = vmatprep.subr.mxu0 0.0
        %1373 = vmatpush1.msra.mxu0 %v1347
        %1374 = vmatprep.subr.mxu0 0.0
        %1375 = vmatpush1.msra.mxu0 %v1348
        %1376 = vmatprep.subr.mxu0 0.0
        %1377 = vmatpush1.msra.mxu0 %v1349
        %1378 = vmatprep.subr.mxu0 0.0
        %1379 = vmatpush1.msra.mxu0 %v1350
        %1380 = vmatprep.subr.mxu0 0.0
        %1381 = vmatpush1.msra.mxu0 %v1351
        %1382 = vmatprep.subr.mxu0 0.0
        %1383 = vmatpush1.msra.mxu0 %v1352
        %1384 = vmatprep.subr.mxu0 0.0
        %1385 = vmatpush1.msra.mxu0 %v1353
        %1386 = vmatprep.subr.mxu0 0.0
        %1387 = vmatpush1.msra.mxu0 %v1354
        %1388 = vmatprep.subr.mxu0 0.0
        %1389 = vmatpush1.msra.mxu0 %v1355
        %1390 = vmatprep.subr.mxu0 0.0
        %1391 = vmatpush1.msra.mxu0 %v1356
        %1392 = vmatprep.subr.mxu0 0.0
        %1393 = vmatpush1.msra.mxu0 %v1357
        %1394 = vmatprep.subr.mxu0 0.0
        %1395 = vmatpush1.msra.mxu0 %v1358
        %1396 = vmatprep.subr.mxu0 0.0
        %1397 = vmatpush1.msra.mxu0 %v1359
        %1398 = vmatprep.subr.mxu0 0.0
        %1399 = vmatpush1.msra.mxu0 %v1360
        %1400 = vmatprep.subr.mxu0 0.0
        %1401 = vmatpush1.msra.mxu0 0.0
        %1402 = vmatprep.subr.mxu0 0.0
        %1403 = vmatpush1.msra.mxu0 0.0
        %1404 = vmatprep.subr.mxu0 0.0
        %1405 = vmatpush1.msra.mxu0 0.0
        %1406 = vmatprep.subr.mxu0 0.0
        %1407 = vmatpush1.msra.mxu0 0.0
        %1408 = vmatprep.subr.mxu0 0.0
        %1409 = vmatpush1.msra.mxu0 0.0
        %1410 = vmatprep.subr.mxu0 0.0
        %1411 = vmatpush1.msra.mxu0 0.0
        %1412 = vmatprep.subr.mxu0 0.0
        %1413 = vmatpush1.msra.mxu0 0.0
        %1414 = vmatprep.subr.mxu0 0.0
        %1415 = vmatpush1.msra.mxu0 0.0
        %1416 = vmatprep.subr.mxu0 0.0
        %1417 = vmatpush1.msra.mxu0 0.0
        %1418 = vmatprep.subr.mxu0 0.0
        %1419 = vmatpush1.msra.mxu0 0.0
        %1420 = vmatprep.subr.mxu0 0.0
        %1421 = vmatpush1.msra.mxu0 0.0
        %1422 = vmatprep.subr.mxu0 0.0
        %1423 = vmatpush1.msra.mxu0 0.0
        %1424 = vmatprep.subr.mxu0 0.0
        %1425 = vmatpush1.msra.mxu0 0.0
        %1426 = vmatprep.subr.mxu0 0.0
        %1427 = vmatpush1.msra.mxu0 0.0
        %1428 = vmatprep.subr.mxu0 0.0
        %1429 = vmatpush1.msra.mxu0 0.0
        %1430 = vmatprep.subr.mxu0 0.0
        %1431 = vmatpush1.msra.mxu0 0.0
        %1432 = vmatprep.mubr.f32.mxu0 0.0
        %1433 = vmatmul.mubr.f32.gmra.mrb[0].mxu0 %v1313
        %v1434 = vpop.f32.mrb[0].mxu0
        %v1435 = vadd.f32 %v1366, %v1434
        %v1436 = vpop.f32.mrb[0].mxu0
        %1437 = vmatprep.mubr.f32.mxu0 0.0
        %1438 = vmatmul.mubr.f32.gmra.mrb[0].mxu0 %v1314
        %v1439 = vpop.f32.mrb[0].mxu0
        %v1440 = vadd.f32 %v1366, %v1439
        %v1441 = vpop.f32.mrb[0].mxu0
        %1442 = vmatprep.mubr.f32.mxu0 0.0
        %1443 = vmatmul.mubr.f32.gmra.mrb[0].mxu0 %v1315
        %v1444 = vpop.f32.mrb[0].mxu0
        %v1445 = vadd.f32 %v1366, %v1444
        %v1446 = vpop.f32.mrb[0].mxu0
        %1447 = vmatprep.mubr.f32.mxu0 0.0
        %1448 = vmatmul.mubr.f32.gmra.mrb[0].mxu0 %v1316
        %v1449 = vpop.f32.mrb[0].mxu0
        %v1450 = vadd.f32 %v1366, %v1449
        %v1451 = vpop.f32.mrb[0].mxu0
        %1452 = vmatprep.mubr.f32.mxu0 0.0
        %1453 = vmatmul.mubr.f32.gmra.mrb[0].mxu0 %v1317
        %v1454 = vpop.f32.mrb[0].mxu0
        %v1455 = vadd.f32 %v1366, %v1454
        %v1456 = vpop.f32.mrb[0].mxu0
        %1457 = vmatprep.mubr.f32.mxu0 0.0
        %1458 = vmatmul.mubr.f32.gmra.mrb[0].mxu0 %v1318
        %v1459 = vpop.f32.mrb[0].mxu0
        %v1460 = vadd.f32 %v1366, %v1459
        %v1461 = vpop.f32.mrb[0].mxu0
        %1462 = vmatprep.mubr.f32.mxu0 0.0
        %1463 = vmatmul.mubr.f32.gmra.mrb[0].mxu0 %v1319
        %v1464 = vpop.f32.mrb[0].mxu0
        %v1465 = vadd.f32 %v1366, %v1464
        %v1466 = vpop.f32.mrb[0].mxu0
        %1467 = vmatprep.mubr.f32.mxu0 0.0
        %1468 = vmatmul.mubr.f32.gmra.mrb[0].mxu0 %v1320
        %v1469 = vpop.f32.mrb[0].mxu0
        %v1470 = vadd.f32 %v1366, %v1469
        %v1471 = vpop.f32.mrb[0].mxu0
        %1472 = vmatprep.mubr.f32.mxu0 0.0
        %1473 = vmatmul.mubr.f32.gmra.mrb[0].mxu0 %v1321
        %v1474 = vpop.f32.mrb[0].mxu0
        %v1475 = vadd.f32 %v1366, %v1474
        %v1476 = vpop.f32.mrb[0].mxu0
        %1477 = vmatprep.mubr.f32.mxu0 0.0
        %1478 = vmatmul.mubr.f32.gmra.mrb[0].mxu0 %v1322
        %v1479 = vpop.f32.mrb[0].mxu0
        %v1480 = vadd.f32 %v1366, %v1479
        %v1481 = vpop.f32.mrb[0].mxu0
        %1482 = vmatprep.mubr.f32.mxu0 0.0
        %1483 = vmatmul.mubr.f32.gmra.mrb[0].mxu0 %v1323
        %v1484 = vpop.f32.mrb[0].mxu0
        %v1485 = vadd.f32 %v1366, %v1484
        %v1486 = vpop.f32.mrb[0].mxu0
        %1487 = vmatprep.mubr.f32.mxu0 0.0
        %1488 = vmatmul.mubr.f32.gmra.mrb[0].mxu0 %v1324
        %v1489 = vpop.f32.mrb[0].mxu0
        %v1490 = vadd.f32 %v1366, %v1489
        %v1491 = vpop.f32.mrb[0].mxu0
        %1492 = vmatprep.mubr.f32.mxu0 0.0
        %1493 = vmatmul.mubr.f32.gmra.mrb[0].mxu0 %v1325
        %v1494 = vpop.f32.mrb[0].mxu0
        %v1495 = vadd.f32 %v1366, %v1494
        %v1496 = vpop.f32.mrb[0].mxu0
        %1497 = vmatprep.mubr.f32.mxu0 0.0
        %1498 = vmatmul.mubr.f32.gmra.mrb[0].mxu0 %v1326
        %v1499 = vpop.f32.mrb[0].mxu0
        %v1500 = vadd.f32 %v1366, %v1499
        %v1501 = vpop.f32.mrb[0].mxu0
        %1502 = vmatprep.mubr.f32.mxu0 0.0
        %1503 = vmatmul.mubr.f32.gmra.mrb[0].mxu0 %v1327
        %v1504 = vpop.f32.mrb[0].mxu0
        %v1505 = vadd.f32 %v1366, %v1504
        %v1506 = vpop.f32.mrb[0].mxu0
        %1507 = vmatprep.mubr.f32.mxu0 0.0
        %1508 = vmatmul.mubr.f32.gmra.mrb[0].mxu0 %v1328
        %v1509 = vpop.f32.mrb[0].mxu0
        %v1510 = vadd.f32 %v1366, %v1509
        %v1511 = vpop.f32.mrb[0].mxu0
        %1512 = vmatprep.mubr.f32.mxu0 0.0
        %1513 = vmatmul.mubr.f32.gmra.mrb[0].mxu0 %v1329
        %v1514 = vpop.f32.mrb[0].mxu0
        %v1515 = vadd.f32 %v1366, %v1514
        %v1516 = vpop.f32.mrb[0].mxu0
        %1517 = vmatprep.mubr.f32.mxu0 0.0
        %1518 = vmatmul.mubr.f32.gmra.mrb[0].mxu0 %v1330
        %v1519 = vpop.f32.mrb[0].mxu0
        %v1520 = vadd.f32 %v1366, %v1519
        %v1521 = vpop.f32.mrb[0].mxu0
        %1522 = vmatprep.mubr.f32.mxu0 0.0
        %1523 = vmatmul.mubr.f32.gmra.mrb[0].mxu0 %v1331
        %v1524 = vpop.f32.mrb[0].mxu0
        %v1525 = vadd.f32 %v1366, %v1524
        %v1526 = vpop.f32.mrb[0].mxu0
        %1527 = vmatprep.mubr.f32.mxu0 0.0
        %1528 = vmatmul.mubr.f32.gmra.mrb[0].mxu0 %v1332
        %v1529 = vpop.f32.mrb[0].mxu0
        %v1530 = vadd.f32 %v1366, %v1529
        %v1531 = vpop.f32.mrb[0].mxu0
        %1532 = vmatprep.mubr.f32.mxu0 0.0
        %1533 = vmatmul.mubr.f32.gmra.mrb[0].mxu0 %v1333
        %v1534 = vpop.f32.mrb[0].mxu0
        %v1535 = vadd.f32 %v1366, %v1534
        %v1536 = vpop.f32.mrb[0].mxu0
        %1537 = vmatprep.mubr.f32.mxu0 0.0
        %1538 = vmatmul.mubr.f32.gmra.mrb[0].mxu0 %v1334
        %v1539 = vpop.f32.mrb[0].mxu0
        %v1540 = vadd.f32 %v1366, %v1539
        %v1541 = vpop.f32.mrb[0].mxu0
        %1542 = vmatprep.mubr.f32.mxu0 0.0
        %1543 = vmatmul.mubr.f32.gmra.mrb[0].mxu0 %v1335
        %v1544 = vpop.f32.mrb[0].mxu0
        %v1545 = vadd.f32 %v1366, %v1544
        %v1546 = vpop.f32.mrb[0].mxu0
        %1547 = vmatprep.mubr.f32.mxu0 0.0
        %1548 = vmatmul.mubr.f32.gmra.mrb[0].mxu0 %v1336
        %v1549 = vpop.f32.mrb[0].mxu0
        %v1550 = vadd.f32 %v1366, %v1549
        %v1551 = vpop.f32.mrb[0].mxu0
        %1552 = vmatprep.mubr.f32.mxu0 0.0
        %1553 = vmatmul.mubr.f32.gmra.mrb[0].mxu0 %v1337
        %v1554 = vpop.f32.mrb[0].mxu0
        %v1555 = vadd.f32 %v1366, %v1554
        %v1556 = vpop.f32.mrb[0].mxu0
        %1557 = vmatprep.mubr.f32.mxu0 0.0
        %1558 = vmatmul.mubr.f32.gmra.mrb[0].mxu0 %v1338
        %v1559 = vpop.f32.mrb[0].mxu0
        %v1560 = vadd.f32 %v1366, %v1559
        %v1561 = vpop.f32.mrb[0].mxu0
        %1562 = vmatprep.mubr.f32.mxu0 0.0
        %1563 = vmatmul.mubr.f32.gmra.mrb[0].mxu0 %v1339
        %v1564 = vpop.f32.mrb[0].mxu0
        %v1565 = vadd.f32 %v1366, %v1564
        %v1566 = vpop.f32.mrb[0].mxu0
        %1567 = vmatprep.mubr.f32.mxu0 0.0
        %1568 = vmatmul.mubr.f32.gmra.mrb[0].mxu0 %v1340
        %v1569 = vpop.f32.mrb[0].mxu0
        %v1570 = vadd.f32 %v1366, %v1569
        %v1571 = vpop.f32.mrb[0].mxu0
        %1572 = vmatprep.mubr.f32.mxu0 0.0
        %1573 = vmatmul.mubr.f32.gmra.mrb[0].mxu0 %v1341
        %v1574 = vpop.f32.mrb[0].mxu0
        %v1575 = vadd.f32 %v1366, %v1574
        %v1576 = vpop.f32.mrb[0].mxu0
        %1577 = vmatprep.mubr.f32.mxu0 0.0
        %1578 = vmatmul.mubr.f32.gmra.mrb[0].mxu0 %v1342
        %v1579 = vpop.f32.mrb[0].mxu0
        %v1580 = vadd.f32 %v1366, %v1579
        %v1581 = vpop.f32.mrb[0].mxu0
        %1582 = vmatprep.mubr.f32.mxu0 0.0
        %1583 = vmatmul.mubr.f32.gmra.mrb[0].mxu0 %v1343
        %v1584 = vpop.f32.mrb[0].mxu0
        %v1585 = vadd.f32 %v1366, %v1584
        %v1586 = vpop.f32.mrb[0].mxu0
        %1587 = vmatprep.mubr.f32.mxu0 0.0
        %1588 = vmatmul.mubr.f32.gmra.mrb[0].mxu0 %v1344
        %v1589 = vpop.f32.mrb[0].mxu0
        %v1590 = vadd.f32 %v1366, %v1589
        %v1591 = vpop.f32.mrb[0].mxu0
        %1592 = vdwg.mxu0
        %1593 = vst [vmem:[%s272] sm:$0xff] %v1435
        %1594 = vst [vmem:[%s272 + $0x8] sm:$0xff] %v1440
        %1595 = vst [vmem:[%s272 + $0x10] sm:$0xff] %v1445
        %1596 = vst [vmem:[%s272 + $0x18] sm:$0xff] %v1450
        %1597 = vst [vmem:[%s272 + $0x20] sm:$0xff] %v1455
        %1598 = vst [vmem:[%s272 + $0x28] sm:$0xff] %v1460
        %1599 = vst [vmem:[%s272 + $0x30] sm:$0xff] %v1465
        %1600 = vst [vmem:[%s272 + $0x38] sm:$0xff] %v1470
        %1601 = vst [vmem:[%s272 + $0x40] sm:$0xff] %v1475
        %1602 = vst [vmem:[%s272 + $0x48] sm:$0xff] %v1480
        %1603 = vst [vmem:[%s272 + $0x50] sm:$0xff] %v1485
        %1604 = vst [vmem:[%s272 + $0x58] sm:$0xff] %v1490
        %1605 = vst [vmem:[%s272 + $0x60] sm:$0xff] %v1495
        %1606 = vst [vmem:[%s272 + $0x68] sm:$0xff] %v1500
        %1607 = vst [vmem:[%s272 + $0x70] sm:$0xff] %v1505
        %1608 = vst [vmem:[%s272 + $0x78] sm:$0xff] %v1510
        %1609 = vst [vmem:[%s272 + $0x80] sm:$0xff] %v1515
        %1610 = vst [vmem:[%s272 + $0x88] sm:$0xff] %v1520
        %1611 = vst [vmem:[%s272 + $0x90] sm:$0xff] %v1525
        %1612 = vst [vmem:[%s272 + $0x98] sm:$0xff] %v1530
        %1613 = vst [vmem:[%s272 + $0xa0] sm:$0xff] %v1535
        %1614 = vst [vmem:[%s272 + $0xa8] sm:$0xff] %v1540
        %1615 = vst [vmem:[%s272 + $0xb0] sm:$0xff] %v1545
        %1616 = vst [vmem:[%s272 + $0xb8] sm:$0xff] %v1550
        %1617 = vst [vmem:[%s272 + $0xc0] sm:$0xff] %v1555
        %1618 = vst [vmem:[%s272 + $0xc8] sm:$0xff] %v1560
        %1619 = vst [vmem:[%s272 + $0xd0] sm:$0xff] %v1565
        %1620 = vst [vmem:[%s272 + $0xd8] sm:$0xff] %v1570
        %1621 = vst [vmem:[%s272 + $0xe0] sm:$0xff] %v1575
        %1622 = vst [vmem:[%s272 + $0xe8] sm:$0xff] %v1580
        %1623 = vst [vmem:[%s272 + $0xf0] sm:$0xff] %v1585
        %1624 = vst [vmem:[%s272 + $0xf8] sm:$0xff] %v1590
        %s1625 = sand.u32 %s181, 1
        %s1626 = scalar_lea.sflag [#allocation3], %s1625
        %s1627 = sand.u32 %s181, 1
        %s1628 = smul.addr %s1627, 256
        %s1629 = scalar_lea.vmem [#allocation2], %s1628
        // Predicated region
        $region49: #{tpu_custom_call.1} parent=47 // pred_check
          %p1630 = pneg %p191
        $region50: #{tpu_custom_call.1} parent=47 // pred_check_branch
          %1632 = sbr.rel (%p1630) target = $region52
        $region51: #{tpu_custom_call.1} parent=47 // pred_region
          %s1633 = smul.u32 32, %s21
          %s1635 = ssub.s32 4096, 4096
          %1636 = vsyncadd %s1626, %s1635
          %s1637 = smul.addr %s1633, 128
          %s1638 = scalar_lea.hbm %s7, %s1637
          %s1639 = sshll.u32 %s1629, 4
          %s1640 = int_to_ptr.vmem [resolvable:$true] %s1639
          %1645 = dma.vmem_to_hbm [thread:$0]  %s1640, 4096, %s1638, %s1626, 128, 128, 8
        $region52: #{tpu_custom_call.1} parent=47 // pred_fallthru
          _
      $region48: #{tpu_custom_call.1} parent=5 // pred_fallthru
        _
      %p1646 = scmp.le.s32.totalorder 2, %s16
      // Predicated region
      $region53: #{tpu_custom_call.1} parent=5 // pred_check
        %p1647 = pneg %p1646
      $region54: #{tpu_custom_call.1} parent=5 // pred_check_branch
        %1649 = sbr.rel (%p1647) target = $region56
      $region55: #{tpu_custom_call.1} parent=5 // pred_region
        %s1650 = ssub.s32 %s16, 2
        // Predicated region
        $region57: #{tpu_custom_call.1} parent=55 // pred_check
          %p1651 = pneg %p197
        $region58: #{tpu_custom_call.1} parent=55 // pred_check_branch
          %1653 = sbr.rel (%p1651) target = $region60
        $region59: #{tpu_custom_call.1} parent=55 // pred_region
          %s1654 = sand.u32 %s182, 1
          %s1655 = scalar_lea.sflag [#allocation3], %s1654
          %s1656 = sand.u32 %s182, 1
          %s1657 = smul.addr %s1656, 256
          %s1658 = scalar_lea.vmem [#allocation2], %s1657
          %1659 = dma.done %s1655, 4096
        $region60: #{tpu_custom_call.1} parent=55 // pred_fallthru
          _
      $region56: #{tpu_custom_call.1} parent=5 // pred_fallthru
        _
    $region6: #{tpu_custom_call.1} parent=1 // loop_footer
      %s20 = sadd.s32 1, %s16
    $region7: #{tpu_custom_call.1} parent=1 // loop_footer_branch
      %15 = sbr.rel target = $region3
    $region8: #{tpu_custom_call.1} parent=1 // loop_exit
      _
    %1660 = vsyncpa [#allocation3], 1
    %s1661 = scalar_lea.sflag [#allocation3], 1
    %1662 = vsyncpa %s1661, 1

</llo_original>
